<compile_context>
chip_gen: v5e
topology: v5e:2x2
jax: 0.10.0
libtpu: 0.0.40
codegen_flags: <defaults>
</compile_context>

<pallas_src>
import functools

import jax
import jax.numpy as jnp
from jax.experimental import pallas as pl
from jax.experimental.pallas import tpu as pltpu

EPS = 1e-5  # torch.nn.GroupNorm default eps


# --------------------------------------------------------------------------
# In-kernel helper: single-pass GroupNorm over the trailing two axes
# --------------------------------------------------------------------------
def _sum_last2(v):
    return jnp.sum(jnp.sum(v, axis=-1, keepdims=True), axis=-2, keepdims=True)


def _gn(x, gamma, beta, *, relu):
    """GroupNorm over the trailing two axes of x (independent per leading
    index).  Single-pass stats (sum, sum of squares), torch biased variance,
    affine folded into one fused multiply-add."""
    n = x.shape[-1] * x.shape[-2]
    s1 = _sum_last2(x)
    s2 = _sum_last2(x * x)
    mu = s1 * (1.0 / n)
    var = s2 * (1.0 / n) - mu * mu
    inv = jax.lax.rsqrt(var + EPS)
    scale = inv * gamma
    shift = beta - mu * scale
    out = x * scale + shift
    return jnp.maximum(out, 0.0) if relu else out


# --------------------------------------------------------------------------
# Pallas kernel: SA_block_def forward for a (Bt, C, L) block of the batch
# --------------------------------------------------------------------------
def sa_block_def_kernel(x_ref, y_ref, wtg_ref, wpt_ref, wpct_ref, wz_ref,
                        aff_t_ref, aff_g_ref, aff_p_ref, aff_pc_ref,
                        aff_gn_ref, out_ref, *, groups):
    Bt, C, L = x_ref.shape                      # static block shape
    G = groups
    gc = C // G                                 # channels per group
    half = wpt_ref.shape[1]                     # planes // 2
    f32, bf16 = jnp.float32, jnp.bfloat16

    x = x_ref[...]                              # (Bt, C, L) f32  (residual / query)
    y = y_ref[...]                              # (Bt, C, L) f32

    w_tg = wtg_ref[...]                         # (2C, C)   bf16  [w_t; w_g]
    w_pt = wpt_ref[...]                         # (L, C/2)  bf16  == w_p^T
    w_pct = wpct_ref[...]                       # (C/2, C)  bf16  == w_pc^T
    w_z = wz_ref[...]                           # (C, C)    bf16  block-diag grouped conv

    # ---- self.t / self.g: fused 1x1 conv, then GN(1) + ReLU per batch elem --
    w_tg_b = jnp.broadcast_to(w_tg[None], (Bt,) + w_tg.shape)
    tg = jnp.einsum("boc,bcl->bol", w_tg_b, y.astype(bf16),
                    preferred_element_type=f32)                     # (Bt, 2C, L)
    t = _gn(tg[:, :C, :], aff_t_ref[0], aff_t_ref[1], relu=True)    # (Bt, C, L)
    g = _gn(tg[:, C:, :], aff_g_ref[0], aff_g_ref[1], relu=True)    # (Bt, C, L)

    # ---- self.p on the transposed qk; x-path and g-path stacked along M ----
    q1x = jnp.dot(x.reshape(Bt * C, L).astype(bf16), w_pt,
                  preferred_element_type=f32)                       # (Bt*C, C/2)
    q1g = jnp.dot(g.reshape(Bt * C, L).astype(bf16), w_pt,
                  preferred_element_type=f32)                       # (Bt*C, C/2)
    # interleave AFTER the projection (half lane width): per (b, group) the
    # transposed qk rows are [x-part (gc rows); g-part (gc rows)].
    q1 = jnp.concatenate([q1x.reshape(Bt, G, gc, half),
                          q1g.reshape(Bt, G, gc, half)], axis=2)    # (Bt,G,2gc,C/2)
    q1 = _gn(q1, aff_p_ref[0], aff_p_ref[1], relu=True)

    # ---- self.p_cov, still stacked along M ----
    q2 = jnp.dot(q1.reshape(Bt * 2 * C, half).astype(bf16), w_pct,
                 preferred_element_type=f32)                        # (Bt*2C, C)
    q2 = _gn(q2.reshape(Bt, G, 2 * gc, C),
             aff_pc_ref[0], aff_pc_ref[1], relu=True)               # (Bt,G,2gc,C)

    # ---- per-group dot-product attention (bmm), batch = Bt*G ----
    att = jnp.einsum("xcl,xlp->xcp",
                     t.reshape(Bt * G, gc, L).astype(bf16),
                     q2.reshape(Bt * G, 2 * gc, C).astype(bf16),
                     preferred_element_type=f32)                    # (Bt*G, gc, C)

    # ---- self.z: grouped 1x1 conv as one block-diagonal matmul per b ----
    w_z_b = jnp.broadcast_to(w_z[None], (Bt,) + w_z.shape)
    z = jnp.einsum("boc,bcp->bop", w_z_b,
                   att.reshape(Bt, C, C).astype(bf16),
                   preferred_element_type=f32)                      # (Bt, C, C)

    # ---- final GroupNorm(groups) + residual ----
    out = _gn(z.reshape(Bt, G, gc, C),
              aff_gn_ref[0].reshape(G, gc, 1),
              aff_gn_ref[1].reshape(G, gc, 1), relu=False)
    out_ref[...] = (out.reshape(Bt, C, L) + x).astype(out_ref.dtype)


# --------------------------------------------------------------------------
# Host-side parameter packing: bf16 weights, pre-transposed / block-diagonal,
# gamma/beta pre-shaped for direct broadcast inside the kernel.
# --------------------------------------------------------------------------
def pack_params(params, groups):
    C = params["w_t"].shape[0]
    gc = C // groups
    bf16 = jnp.bfloat16

    w_tg = jnp.concatenate([params["w_t"], params["w_g"]], axis=0).astype(bf16)  # (2C, C)
    w_pt = params["w_p"].T.astype(bf16)                                          # (L, C/2)
    w_pct = params["w_pc"].T.astype(bf16)                                        # (C/2, C)

    # block-diagonal weight for the grouped 1x1 conv self.z
    w_zbd = jnp.zeros((C, C), jnp.float32)
    for i in range(groups):
        w_zbd = w_zbd.at[i * gc:(i + 1) * gc, i * gc:(i + 1) * gc].set(params["w_z"][i])
    w_zbd = w_zbd.astype(bf16)

    col = lambda gm, bt: jnp.stack([gm, bt], axis=0)                          # (2, C, 1)
    row = lambda gm, bt: jnp.stack([gm.reshape(1, -1), bt.reshape(1, -1)], 0)  # (2, 1, n)
    aff_t = col(params["g_t"], params["b_t"])
    aff_g = col(params["g_g"], params["b_g"])
    aff_p = row(params["g_p"], params["b_p"])
    aff_pc = row(params["g_pc"], params["b_pc"])
    aff_gn = col(params["g_gn"], params["b_gn"])
    return w_tg, w_pt, w_pct, w_zbd, aff_t, aff_g, aff_p, aff_pc, aff_gn


# --------------------------------------------------------------------------
# Wrapper: grid / BlockSpecs
# --------------------------------------------------------------------------
def sa_block_def_forward(x, y, params, groups, *, batch_tile=2):
    B, C, L = x.shape
    assert C == L, "module's bmm / residual force planes == length"
    assert C % groups == 0 and L == 2 * (C // groups), \
        "module's bmm forces length == 2 * planes / groups (i.e. groups == 2)"
    assert B % batch_tile == 0
    assert params["w_t"].shape[0] == C

    packed = pack_params(params, groups)
    Bt = batch_tile

    kernel = functools.partial(sa_block_def_kernel, groups=groups)
    act_spec = pl.BlockSpec((Bt, C, L), lambda s: (s, 0, 0))
    full = lambda a: pl.BlockSpec(a.shape, lambda s: (0,) * a.ndim)

    return pl.pallas_call(
        kernel,
        out_shape=jax.ShapeDtypeStruct((B, C, L), jnp.float32),
        grid=(B // Bt,),
        in_specs=[act_spec, act_spec] + [full(a) for a in packed],
        out_specs=pl.BlockSpec((Bt, C, L), lambda s: (s, 0, 0)),
        compiler_params=pltpu.CompilerParams(
            dimension_semantics=("parallel",),
            vmem_limit_bytes=32 * 1024 * 1024,   # plenty; per-step use is a few MiB
        ),
    )(x, y, *packed)


# --------------------------------------------------------------------------
# Deterministic synthetic parameters (shapes from __init__)
# --------------------------------------------------------------------------
def init_params(key, inplanes, planes, groups, length):
    ks = jax.random.split(key, 16)
    w = lambda k, s: 0.2 * jax.random.normal(k, s, jnp.float32)
    gm = lambda k, n: 1.0 + 0.1 * jax.random.normal(k, (n, 1), jnp.float32)
    bt = lambda k, n: 0.1 * jax.random.normal(k, (n, 1), jnp.float32)
    return {
        "w_t": w(ks[0], (planes, inplanes)),
        "g_t": gm(ks[1], planes), "b_t": bt(ks[2], planes),
        "w_g": w(ks[3], (planes, inplanes)),
        "g_g": gm(ks[4], planes), "b_g": bt(ks[5], planes),
        # see TODO(synk) at top: actual in-channels of self.p is the length h
        "w_p": w(ks[6], (planes // 2, length)),
        "g_p": gm(ks[7], planes // 2), "b_p": bt(ks[8], planes // 2),
        "w_pc": w(ks[9], (planes, planes // 2)),
        "g_pc": gm(ks[10], planes), "b_pc": bt(ks[11], planes),
        "w_z": w(ks[12], (groups, inplanes // groups, planes // groups)),
        "g_gn": gm(ks[13], inplanes), "b_gn": bt(ks[14], inplanes),
    }


# --------------------------------------------------------------------------
# Pure-JAX reference (correctness check only; full-precision matmuls)
# --------------------------------------------------------------------------
def _gn_ref(x, gamma, beta, num_groups):
    B, C, L = x.shape
    xg = x.reshape(B, num_groups, -1)
    mu = xg.mean(-1, keepdims=True)
    var = ((xg - mu) ** 2).mean(-1, keepdims=True)
    xhat = ((xg - mu) / jnp.sqrt(var + EPS)).reshape(B, C, L)
    return xhat * gamma.reshape(1, C, 1) + beta.reshape(1, C, 1)


def reference(x, y, pr, groups):
    hp = jax.lax.Precision.HIGHEST
    conv = lambda w, v: jnp.einsum("oi,bil->bol", w, v, precision=hp)
    t = jax.nn.relu(_gn_ref(conv(pr["w_t"], y), pr["g_t"], pr["b_t"], 1))
    g = jax.nn.relu(_gn_ref(conv(pr["w_g"], y), pr["g_g"], pr["b_g"], 1))
    p = x
    planes = t.shape[1]
    _c = planes // groups
    outs = []
    for i in range(groups):
        t_i, p_i, g_i = (a[:, i * _c:(i + 1) * _c, :] for a in (t, p, g))
        qk = jnp.concatenate([p_i.transpose(0, 2, 1), g_i.transpose(0, 2, 1)], axis=2)
        qk = jax.nn.relu(_gn_ref(conv(pr["w_p"], qk), pr["g_p"], pr["b_p"], 1))
        qk = jax.nn.relu(_gn_ref(conv(pr["w_pc"], qk), pr["g_pc"], pr["b_pc"], 1))
        outs.append(jnp.einsum("bck,bpk->bcp", t_i, qk, precision=hp))
    xcat = jnp.concatenate(outs, axis=1)
    z = jnp.concatenate(
        [jnp.einsum("oi,bil->bol", pr["w_z"][i], xcat[:, i * _c:(i + 1) * _c, :],
                    precision=hp)
         for i in range(groups)], axis=1)
    return _gn_ref(z, pr["g_gn"], pr["b_gn"], groups) + x


# --------------------------------------------------------------------------
if __name__ == "__main__":
    inplanes = planes = 128   # forced equal to length by the module's own constraints
    groups = 2                # forced by length == 2 * planes / groups
    length = planes
    B = 16                    # 8 grid steps of 2 batch elements each

    key = jax.random.PRNGKey(0)
    kx, ky, kp = jax.random.split(key, 3)
    x = jax.random.normal(kx, (B, inplanes, length), jnp.float32)
    y = jax.random.normal(ky, (B, inplanes, length), jnp.float32)
    params = init_params(kp, inplanes, planes, groups, length)

    out = jax.block_until_ready(sa_block_def_forward(x, y, params, groups, batch_tile=2))
    assert out.shape == (B, inplanes, length)

    ref = jax.block_until_ready(reference(x, y, params, groups))
    abs_err = float(jnp.max(jnp.abs(out - ref)))
    rel_err = float(jnp.sqrt(jnp.sum((out - ref) ** 2) / jnp.sum(ref ** 2)))
    # bf16 MXU operands (f32 accumulation) vs a full-precision XLA reference:
    # expect ~1% relative error; a real bug shows as O(1) relative error.
    if rel_err > 5e-2 or abs_err > 0.5:
        raise AssertionError(
            f"Pallas kernel mismatch vs reference: rel={rel_err:.4f} max_abs={abs_err:.4f}")
    print("KERNEL_OK")
</pallas_src>

<mosaic_0001>
module attributes {stable_mosaic.version = 11 : i64} {
  func.func @sa_block_def_kernel(%arg0: i32, %arg1: memref<2x128x128xf32, #tpu.memory_space<vmem>>, %arg2: memref<2x128x128xf32, #tpu.memory_space<vmem>>, %arg3: memref<256x128xbf16, #tpu.memory_space<vmem>>, %arg4: memref<128x64xbf16, #tpu.memory_space<vmem>>, %arg5: memref<64x128xbf16, #tpu.memory_space<vmem>>, %arg6: memref<128x128xbf16, #tpu.memory_space<vmem>>, %arg7: memref<2x128x1xf32, #tpu.memory_space<vmem>>, %arg8: memref<2x128x1xf32, #tpu.memory_space<vmem>>, %arg9: memref<2x1x64xf32, #tpu.memory_space<vmem>>, %arg10: memref<2x1x128xf32, #tpu.memory_space<vmem>>, %arg11: memref<2x128x1xf32, #tpu.memory_space<vmem>>, %arg12: memref<2x128x128xf32, #tpu.memory_space<vmem>>) attributes {dimension_semantics = [#tpu.dimension_semantics<parallel>], iteration_bounds = array<i64: 8>, scalar_prefetch = 0 : i64, scratch_operands = 0 : i64, tpu.core_type = #tpu.core_type<tc>, window_params = [{transform_indices = @transform_0, window_bounds = array<i64: 2, 128, 128>}, {transform_indices = @transform_1, window_bounds = array<i64: 2, 128, 128>}, {pipeline_mode = #tpu.pipeline_mode<synchronous>, transform_indices = @transform_2, window_bounds = array<i64: 256, 128>}, {pipeline_mode = #tpu.pipeline_mode<synchronous>, transform_indices = @transform_3, window_bounds = array<i64: 128, 64>}, {pipeline_mode = #tpu.pipeline_mode<synchronous>, transform_indices = @transform_4, window_bounds = array<i64: 64, 128>}, {pipeline_mode = #tpu.pipeline_mode<synchronous>, transform_indices = @transform_5, window_bounds = array<i64: 128, 128>}, {pipeline_mode = #tpu.pipeline_mode<synchronous>, transform_indices = @transform_6, window_bounds = array<i64: 2, 128, 1>}, {pipeline_mode = #tpu.pipeline_mode<synchronous>, transform_indices = @transform_7, window_bounds = array<i64: 2, 128, 1>}, {pipeline_mode = #tpu.pipeline_mode<synchronous>, transform_indices = @transform_8, window_bounds = array<i64: 2, 1, 64>}, {pipeline_mode = #tpu.pipeline_mode<synchronous>, transform_indices = @transform_9, window_bounds = array<i64: 2, 1, 128>}, {pipeline_mode = #tpu.pipeline_mode<synchronous>, transform_indices = @transform_10, window_bounds = array<i64: 2, 128, 1>}, {transform_indices = @transform_11, window_bounds = array<i64: 2, 128, 128>}]} {
    %c0 = arith.constant 0 : index
    %c0_0 = arith.constant 0 : index
    %c0_1 = arith.constant 0 : index
    %0 = vector.load %arg1[%c0, %c0_0, %c0_1] : memref<2x128x128xf32, #tpu.memory_space<vmem>>, vector<2x128x128xf32>
    %c0_2 = arith.constant 0 : index
    %c0_3 = arith.constant 0 : index
    %c0_4 = arith.constant 0 : index
    %1 = vector.load %arg2[%c0_2, %c0_3, %c0_4] : memref<2x128x128xf32, #tpu.memory_space<vmem>>, vector<2x128x128xf32>
    %c0_5 = arith.constant 0 : index
    %c0_6 = arith.constant 0 : index
    %2 = vector.load %arg3[%c0_5, %c0_6] : memref<256x128xbf16, #tpu.memory_space<vmem>>, vector<256x128xbf16>
    %c0_7 = arith.constant 0 : index
    %c0_8 = arith.constant 0 : index
    %3 = vector.load %arg4[%c0_7, %c0_8] : memref<128x64xbf16, #tpu.memory_space<vmem>>, vector<128x64xbf16>
    %c0_9 = arith.constant 0 : index
    %c0_10 = arith.constant 0 : index
    %4 = vector.load %arg5[%c0_9, %c0_10] : memref<64x128xbf16, #tpu.memory_space<vmem>>, vector<64x128xbf16>
    %c0_11 = arith.constant 0 : index
    %c0_12 = arith.constant 0 : index
    %5 = vector.load %arg6[%c0_11, %c0_12] : memref<128x128xbf16, #tpu.memory_space<vmem>>, vector<128x128xbf16>
    %6 = vector.shape_cast %2 : vector<256x128xbf16> to vector<1x256x128xbf16>
    %7 = vector.shape_cast %6 : vector<1x256x128xbf16> to vector<1x256x128xbf16>
    %8 = vector.broadcast %7 : vector<1x256x128xbf16> to vector<2x256x128xbf16>
    %9 = arith.truncf %1 : vector<2x128x128xf32> to vector<2x128x128xbf16>
    "tpu.trace_start"() <{level = 10 : i32, message = "boc,bcl->bol"}> : () -> ()
    %cst = arith.constant dense<0.000000e+00> : vector<2x256x128xf32>
    %10 = tpu.matmul %8, %9, %cst {dimension_numbers = #tpu.dot_dimension_numbers<[2], [1], [1], [2], [0, 0, 0, 1, 1, 2], [0], [0]>} : vector<2x256x128xbf16>, vector<2x128x128xbf16>, vector<2x256x128xf32> -> vector<2x256x128xf32>
    "tpu.trace_stop"() : () -> ()
    %11 = vector.extract_strided_slice %10 {offsets = [0, 0, 0], sizes = [2, 128, 128], strides = [1, 1, 1]} : vector<2x256x128xf32> to vector<2x128x128xf32>
    %c0_13 = arith.constant 0 : index
    %c0_14 = arith.constant 0 : index
    %c0_15 = arith.constant 0 : index
    %12 = vector.load %arg7[%c0_13, %c0_14, %c0_15] : memref<2x128x1xf32, #tpu.memory_space<vmem>>, vector<1x128x1xf32>
    %13 = vector.shape_cast %12 : vector<1x128x1xf32> to vector<128x1xf32>
    %c1 = arith.constant 1 : index
    %c0_16 = arith.constant 0 : index
    %c0_17 = arith.constant 0 : index
    %14 = vector.load %arg7[%c1, %c0_16, %c0_17] : memref<2x128x1xf32, #tpu.memory_space<vmem>>, vector<1x128x1xf32>
    %15 = vector.shape_cast %14 : vector<1x128x1xf32> to vector<128x1xf32>
    %cst_18 = arith.constant dense<0.000000e+00> : vector<2x128xf32>
    %16 = vector.multi_reduction <add>, %11, %cst_18 [2] : vector<2x128x128xf32> to vector<2x128xf32>
    %17 = vector.shape_cast %16 : vector<2x128xf32> to vector<2x128x1xf32>
    %cst_19 = arith.constant dense<0.000000e+00> : vector<2x1xf32>
    %18 = vector.multi_reduction <add>, %17, %cst_19 [1] : vector<2x128x1xf32> to vector<2x1xf32>
    %19 = vector.shape_cast %18 : vector<2x1xf32> to vector<2x1x1xf32>
    %20 = arith.mulf %11, %11 : vector<2x128x128xf32>
    %cst_20 = arith.constant dense<0.000000e+00> : vector<2x128xf32>
    %21 = vector.multi_reduction <add>, %20, %cst_20 [2] : vector<2x128x128xf32> to vector<2x128xf32>
    %22 = vector.shape_cast %21 : vector<2x128xf32> to vector<2x128x1xf32>
    %cst_21 = arith.constant dense<0.000000e+00> : vector<2x1xf32>
    %23 = vector.multi_reduction <add>, %22, %cst_21 [1] : vector<2x128x1xf32> to vector<2x1xf32>
    %24 = vector.shape_cast %23 : vector<2x1xf32> to vector<2x1x1xf32>
    %cst_22 = arith.constant 6.10351563E-5 : f32
    %25 = vector.broadcast %cst_22 : f32 to vector<2x1x1xf32>
    %26 = arith.mulf %19, %25 : vector<2x1x1xf32>
    %cst_23 = arith.constant 6.10351563E-5 : f32
    %27 = vector.broadcast %cst_23 : f32 to vector<2x1x1xf32>
    %28 = arith.mulf %24, %27 : vector<2x1x1xf32>
    %29 = arith.mulf %26, %26 : vector<2x1x1xf32>
    %30 = arith.subf %28, %29 : vector<2x1x1xf32>
    %cst_24 = arith.constant 9.99999974E-6 : f32
    %31 = vector.broadcast %cst_24 : f32 to vector<2x1x1xf32>
    %32 = arith.addf %30, %31 : vector<2x1x1xf32>
    %33 = math.rsqrt %32 : vector<2x1x1xf32>
    %34 = vector.shape_cast %13 : vector<128x1xf32> to vector<1x128x1xf32>
    %35 = vector.broadcast %33 : vector<2x1x1xf32> to vector<2x128x1xf32>
    %36 = vector.broadcast %34 : vector<1x128x1xf32> to vector<2x128x1xf32>
    %37 = arith.mulf %35, %36 : vector<2x128x1xf32>
    %38 = vector.broadcast %26 : vector<2x1x1xf32> to vector<2x128x1xf32>
    %39 = arith.mulf %38, %37 : vector<2x128x1xf32>
    %40 = vector.shape_cast %15 : vector<128x1xf32> to vector<1x128x1xf32>
    %41 = vector.broadcast %40 : vector<1x128x1xf32> to vector<2x128x1xf32>
    %42 = arith.subf %41, %39 : vector<2x128x1xf32>
    %43 = vector.broadcast %37 : vector<2x128x1xf32> to vector<2x128x128xf32>
    %44 = arith.mulf %11, %43 : vector<2x128x128xf32>
    %45 = vector.broadcast %42 : vector<2x128x1xf32> to vector<2x128x128xf32>
    %46 = arith.addf %44, %45 : vector<2x128x128xf32>
    %cst_25 = arith.constant 0.000000e+00 : f32
    %47 = vector.broadcast %cst_25 : f32 to vector<2x128x128xf32>
    %48 = arith.maximumf %46, %47 : vector<2x128x128xf32>
    %49 = vector.extract_strided_slice %10 {offsets = [0, 128, 0], sizes = [2, 128, 128], strides = [1, 1, 1]} : vector<2x256x128xf32> to vector<2x128x128xf32>
    %c0_26 = arith.constant 0 : index
    %c0_27 = arith.constant 0 : index
    %c0_28 = arith.constant 0 : index
    %50 = vector.load %arg8[%c0_26, %c0_27, %c0_28] : memref<2x128x1xf32, #tpu.memory_space<vmem>>, vector<1x128x1xf32>
    %51 = vector.shape_cast %50 : vector<1x128x1xf32> to vector<128x1xf32>
    %c1_29 = arith.constant 1 : index
    %c0_30 = arith.constant 0 : index
    %c0_31 = arith.constant 0 : index
    %52 = vector.load %arg8[%c1_29, %c0_30, %c0_31] : memref<2x128x1xf32, #tpu.memory_space<vmem>>, vector<1x128x1xf32>
    %53 = vector.shape_cast %52 : vector<1x128x1xf32> to vector<128x1xf32>
    %cst_32 = arith.constant dense<0.000000e+00> : vector<2x128xf32>
    %54 = vector.multi_reduction <add>, %49, %cst_32 [2] : vector<2x128x128xf32> to vector<2x128xf32>
    %55 = vector.shape_cast %54 : vector<2x128xf32> to vector<2x128x1xf32>
    %cst_33 = arith.constant dense<0.000000e+00> : vector<2x1xf32>
    %56 = vector.multi_reduction <add>, %55, %cst_33 [1] : vector<2x128x1xf32> to vector<2x1xf32>
    %57 = vector.shape_cast %56 : vector<2x1xf32> to vector<2x1x1xf32>
    %58 = arith.mulf %49, %49 : vector<2x128x128xf32>
    %cst_34 = arith.constant dense<0.000000e+00> : vector<2x128xf32>
    %59 = vector.multi_reduction <add>, %58, %cst_34 [2] : vector<2x128x128xf32> to vector<2x128xf32>
    %60 = vector.shape_cast %59 : vector<2x128xf32> to vector<2x128x1xf32>
    %cst_35 = arith.constant dense<0.000000e+00> : vector<2x1xf32>
    %61 = vector.multi_reduction <add>, %60, %cst_35 [1] : vector<2x128x1xf32> to vector<2x1xf32>
    %62 = vector.shape_cast %61 : vector<2x1xf32> to vector<2x1x1xf32>
    %cst_36 = arith.constant 6.10351563E-5 : f32
    %63 = vector.broadcast %cst_36 : f32 to vector<2x1x1xf32>
    %64 = arith.mulf %57, %63 : vector<2x1x1xf32>
    %cst_37 = arith.constant 6.10351563E-5 : f32
    %65 = vector.broadcast %cst_37 : f32 to vector<2x1x1xf32>
    %66 = arith.mulf %62, %65 : vector<2x1x1xf32>
    %67 = arith.mulf %64, %64 : vector<2x1x1xf32>
    %68 = arith.subf %66, %67 : vector<2x1x1xf32>
    %cst_38 = arith.constant 9.99999974E-6 : f32
    %69 = vector.broadcast %cst_38 : f32 to vector<2x1x1xf32>
    %70 = arith.addf %68, %69 : vector<2x1x1xf32>
    %71 = math.rsqrt %70 : vector<2x1x1xf32>
    %72 = vector.shape_cast %51 : vector<128x1xf32> to vector<1x128x1xf32>
    %73 = vector.broadcast %71 : vector<2x1x1xf32> to vector<2x128x1xf32>
    %74 = vector.broadcast %72 : vector<1x128x1xf32> to vector<2x128x1xf32>
    %75 = arith.mulf %73, %74 : vector<2x128x1xf32>
    %76 = vector.broadcast %64 : vector<2x1x1xf32> to vector<2x128x1xf32>
    %77 = arith.mulf %76, %75 : vector<2x128x1xf32>
    %78 = vector.shape_cast %53 : vector<128x1xf32> to vector<1x128x1xf32>
    %79 = vector.broadcast %78 : vector<1x128x1xf32> to vector<2x128x1xf32>
    %80 = arith.subf %79, %77 : vector<2x128x1xf32>
    %81 = vector.broadcast %75 : vector<2x128x1xf32> to vector<2x128x128xf32>
    %82 = arith.mulf %49, %81 : vector<2x128x128xf32>
    %83 = vector.broadcast %80 : vector<2x128x1xf32> to vector<2x128x128xf32>
    %84 = arith.addf %82, %83 : vector<2x128x128xf32>
    %cst_39 = arith.constant 0.000000e+00 : f32
    %85 = vector.broadcast %cst_39 : f32 to vector<2x128x128xf32>
    %86 = arith.maximumf %84, %85 : vector<2x128x128xf32>
    %87 = vector.shape_cast %0 : vector<2x128x128xf32> to vector<256x128xf32>
    %88 = arith.truncf %87 : vector<256x128xf32> to vector<256x128xbf16>
    %cst_40 = arith.constant dense<0.000000e+00> : vector<256x64xf32>
    %89 = tpu.matmul %88, %3, %cst_40 {dimension_numbers = #tpu.dot_dimension_numbers<[1], [0], [0], [1], [0, 0, 1, 1], [], []>} : vector<256x128xbf16>, vector<128x64xbf16>, vector<256x64xf32> -> vector<256x64xf32>
    %90 = vector.shape_cast %86 : vector<2x128x128xf32> to vector<256x128xf32>
    %91 = arith.truncf %90 : vector<256x128xf32> to vector<256x128xbf16>
    %cst_41 = arith.constant dense<0.000000e+00> : vector<256x64xf32>
    %92 = tpu.matmul %91, %3, %cst_41 {dimension_numbers = #tpu.dot_dimension_numbers<[1], [0], [0], [1], [0, 0, 1, 1], [], []>} : vector<256x128xbf16>, vector<128x64xbf16>, vector<256x64xf32> -> vector<256x64xf32>
    %93 = vector.shape_cast %89 : vector<256x64xf32> to vector<2x2x64x64xf32>
    %94 = vector.shape_cast %92 : vector<256x64xf32> to vector<2x2x64x64xf32>
    %95 = tpu.concatenate %93, %94 in 2 : vector<2x2x64x64xf32>, vector<2x2x64x64xf32> -> vector<2x2x128x64xf32>
    %c0_42 = arith.constant 0 : index
    %c0_43 = arith.constant 0 : index
    %c0_44 = arith.constant 0 : index
    %96 = vector.load %arg9[%c0_42, %c0_43, %c0_44] : memref<2x1x64xf32, #tpu.memory_space<vmem>>, vector<1x1x64xf32>
    %97 = vector.shape_cast %96 : vector<1x1x64xf32> to vector<1x64xf32>
    %c1_45 = arith.constant 1 : index
    %c0_46 = arith.constant 0 : index
    %c0_47 = arith.constant 0 : index
    %98 = vector.load %arg9[%c1_45, %c0_46, %c0_47] : memref<2x1x64xf32, #tpu.memory_space<vmem>>, vector<1x1x64xf32>
    %99 = vector.shape_cast %98 : vector<1x1x64xf32> to vector<1x64xf32>
    %cst_48 = arith.constant dense<0.000000e+00> : vector<2x2x128xf32>
    %100 = vector.multi_reduction <add>, %95, %cst_48 [3] : vector<2x2x128x64xf32> to vector<2x2x128xf32>
    %101 = vector.shape_cast %100 : vector<2x2x128xf32> to vector<2x2x128x1xf32>
    %cst_49 = arith.constant dense<0.000000e+00> : vector<2x2x1xf32>
    %102 = vector.multi_reduction <add>, %101, %cst_49 [2] : vector<2x2x128x1xf32> to vector<2x2x1xf32>
    %103 = vector.shape_cast %102 : vector<2x2x1xf32> to vector<2x2x1x1xf32>
    %104 = arith.mulf %95, %95 : vector<2x2x128x64xf32>
    %cst_50 = arith.constant dense<0.000000e+00> : vector<2x2x128xf32>
    %105 = vector.multi_reduction <add>, %104, %cst_50 [3] : vector<2x2x128x64xf32> to vector<2x2x128xf32>
    %106 = vector.shape_cast %105 : vector<2x2x128xf32> to vector<2x2x128x1xf32>
    %cst_51 = arith.constant dense<0.000000e+00> : vector<2x2x1xf32>
    %107 = vector.multi_reduction <add>, %106, %cst_51 [2] : vector<2x2x128x1xf32> to vector<2x2x1xf32>
    %108 = vector.shape_cast %107 : vector<2x2x1xf32> to vector<2x2x1x1xf32>
    %cst_52 = arith.constant 1.22070313E-4 : f32
    %109 = vector.broadcast %cst_52 : f32 to vector<2x2x1x1xf32>
    %110 = arith.mulf %103, %109 : vector<2x2x1x1xf32>
    %cst_53 = arith.constant 1.22070313E-4 : f32
    %111 = vector.broadcast %cst_53 : f32 to vector<2x2x1x1xf32>
    %112 = arith.mulf %108, %111 : vector<2x2x1x1xf32>
    %113 = arith.mulf %110, %110 : vector<2x2x1x1xf32>
    %114 = arith.subf %112, %113 : vector<2x2x1x1xf32>
    %cst_54 = arith.constant 9.99999974E-6 : f32
    %115 = vector.broadcast %cst_54 : f32 to vector<2x2x1x1xf32>
    %116 = arith.addf %114, %115 : vector<2x2x1x1xf32>
    %117 = math.rsqrt %116 : vector<2x2x1x1xf32>
    %118 = vector.shape_cast %97 : vector<1x64xf32> to vector<1x1x1x64xf32>
    %119 = vector.broadcast %117 : vector<2x2x1x1xf32> to vector<2x2x1x64xf32>
    %120 = vector.broadcast %118 : vector<1x1x1x64xf32> to vector<2x2x1x64xf32>
    %121 = arith.mulf %119, %120 : vector<2x2x1x64xf32>
    %122 = vector.broadcast %110 : vector<2x2x1x1xf32> to vector<2x2x1x64xf32>
    %123 = arith.mulf %122, %121 : vector<2x2x1x64xf32>
    %124 = vector.shape_cast %99 : vector<1x64xf32> to vector<1x1x1x64xf32>
    %125 = vector.broadcast %124 : vector<1x1x1x64xf32> to vector<2x2x1x64xf32>
    %126 = arith.subf %125, %123 : vector<2x2x1x64xf32>
    %127 = vector.broadcast %121 : vector<2x2x1x64xf32> to vector<2x2x128x64xf32>
    %128 = arith.mulf %95, %127 : vector<2x2x128x64xf32>
    %129 = vector.broadcast %126 : vector<2x2x1x64xf32> to vector<2x2x128x64xf32>
    %130 = arith.addf %128, %129 : vector<2x2x128x64xf32>
    %cst_55 = arith.constant 0.000000e+00 : f32
    %131 = vector.broadcast %cst_55 : f32 to vector<2x2x128x64xf32>
    %132 = arith.maximumf %130, %131 : vector<2x2x128x64xf32>
    %133 = vector.shape_cast %132 : vector<2x2x128x64xf32> to vector<512x64xf32>
    %134 = arith.truncf %133 : vector<512x64xf32> to vector<512x64xbf16>
    %cst_56 = arith.constant dense<0.000000e+00> : vector<512x128xf32>
    %135 = tpu.matmul %134, %4, %cst_56 {dimension_numbers = #tpu.dot_dimension_numbers<[1], [0], [0], [1], [0, 0, 1, 1], [], []>} : vector<512x64xbf16>, vector<64x128xbf16>, vector<512x128xf32> -> vector<512x128xf32>
    %136 = vector.shape_cast %135 : vector<512x128xf32> to vector<2x2x128x128xf32>
    %c0_57 = arith.constant 0 : index
    %c0_58 = arith.constant 0 : index
    %c0_59 = arith.constant 0 : index
    %137 = vector.load %arg10[%c0_57, %c0_58, %c0_59] : memref<2x1x128xf32, #tpu.memory_space<vmem>>, vector<1x1x128xf32>
    %138 = vector.shape_cast %137 : vector<1x1x128xf32> to vector<1x128xf32>
    %c1_60 = arith.constant 1 : index
    %c0_61 = arith.constant 0 : index
    %c0_62 = arith.constant 0 : index
    %139 = vector.load %arg10[%c1_60, %c0_61, %c0_62] : memref<2x1x128xf32, #tpu.memory_space<vmem>>, vector<1x1x128xf32>
    %140 = vector.shape_cast %139 : vector<1x1x128xf32> to vector<1x128xf32>
    %cst_63 = arith.constant dense<0.000000e+00> : vector<2x2x128xf32>
    %141 = vector.multi_reduction <add>, %136, %cst_63 [3] : vector<2x2x128x128xf32> to vector<2x2x128xf32>
    %142 = vector.shape_cast %141 : vector<2x2x128xf32> to vector<2x2x128x1xf32>
    %cst_64 = arith.constant dense<0.000000e+00> : vector<2x2x1xf32>
    %143 = vector.multi_reduction <add>, %142, %cst_64 [2] : vector<2x2x128x1xf32> to vector<2x2x1xf32>
    %144 = vector.shape_cast %143 : vector<2x2x1xf32> to vector<2x2x1x1xf32>
    %145 = arith.mulf %136, %136 : vector<2x2x128x128xf32>
    %cst_65 = arith.constant dense<0.000000e+00> : vector<2x2x128xf32>
    %146 = vector.multi_reduction <add>, %145, %cst_65 [3] : vector<2x2x128x128xf32> to vector<2x2x128xf32>
    %147 = vector.shape_cast %146 : vector<2x2x128xf32> to vector<2x2x128x1xf32>
    %cst_66 = arith.constant dense<0.000000e+00> : vector<2x2x1xf32>
    %148 = vector.multi_reduction <add>, %147, %cst_66 [2] : vector<2x2x128x1xf32> to vector<2x2x1xf32>
    %149 = vector.shape_cast %148 : vector<2x2x1xf32> to vector<2x2x1x1xf32>
    %cst_67 = arith.constant 6.10351563E-5 : f32
    %150 = vector.broadcast %cst_67 : f32 to vector<2x2x1x1xf32>
    %151 = arith.mulf %144, %150 : vector<2x2x1x1xf32>
    %cst_68 = arith.constant 6.10351563E-5 : f32
    %152 = vector.broadcast %cst_68 : f32 to vector<2x2x1x1xf32>
    %153 = arith.mulf %149, %152 : vector<2x2x1x1xf32>
    %154 = arith.mulf %151, %151 : vector<2x2x1x1xf32>
    %155 = arith.subf %153, %154 : vector<2x2x1x1xf32>
    %cst_69 = arith.constant 9.99999974E-6 : f32
    %156 = vector.broadcast %cst_69 : f32 to vector<2x2x1x1xf32>
    %157 = arith.addf %155, %156 : vector<2x2x1x1xf32>
    %158 = math.rsqrt %157 : vector<2x2x1x1xf32>
    %159 = vector.shape_cast %138 : vector<1x128xf32> to vector<1x1x1x128xf32>
    %160 = vector.broadcast %158 : vector<2x2x1x1xf32> to vector<2x2x1x128xf32>
    %161 = vector.broadcast %159 : vector<1x1x1x128xf32> to vector<2x2x1x128xf32>
    %162 = arith.mulf %160, %161 : vector<2x2x1x128xf32>
    %163 = vector.broadcast %151 : vector<2x2x1x1xf32> to vector<2x2x1x128xf32>
    %164 = arith.mulf %163, %162 : vector<2x2x1x128xf32>
    %165 = vector.shape_cast %140 : vector<1x128xf32> to vector<1x1x1x128xf32>
    %166 = vector.broadcast %165 : vector<1x1x1x128xf32> to vector<2x2x1x128xf32>
    %167 = arith.subf %166, %164 : vector<2x2x1x128xf32>
    %168 = vector.broadcast %162 : vector<2x2x1x128xf32> to vector<2x2x128x128xf32>
    %169 = arith.mulf %136, %168 : vector<2x2x128x128xf32>
    %170 = vector.broadcast %167 : vector<2x2x1x128xf32> to vector<2x2x128x128xf32>
    %171 = arith.addf %169, %170 : vector<2x2x128x128xf32>
    %cst_70 = arith.constant 0.000000e+00 : f32
    %172 = vector.broadcast %cst_70 : f32 to vector<2x2x128x128xf32>
    %173 = arith.maximumf %171, %172 : vector<2x2x128x128xf32>
    %174 = vector.shape_cast %48 : vector<2x128x128xf32> to vector<4x64x128xf32>
    %175 = arith.truncf %174 : vector<4x64x128xf32> to vector<4x64x128xbf16>
    %176 = vector.shape_cast %173 : vector<2x2x128x128xf32> to vector<4x128x128xf32>
    %177 = arith.truncf %176 : vector<4x128x128xf32> to vector<4x128x128xbf16>
    "tpu.trace_start"() <{level = 10 : i32, message = "xcl,xlp->xcp"}> : () -> ()
    %cst_71 = arith.constant dense<0.000000e+00> : vector<4x64x128xf32>
    %178 = tpu.matmul %175, %177, %cst_71 {dimension_numbers = #tpu.dot_dimension_numbers<[2], [1], [1], [2], [0, 0, 0, 1, 1, 2], [0], [0]>} : vector<4x64x128xbf16>, vector<4x128x128xbf16>, vector<4x64x128xf32> -> vector<4x64x128xf32>
    "tpu.trace_stop"() : () -> ()
    %179 = vector.shape_cast %5 : vector<128x128xbf16> to vector<1x128x128xbf16>
    %180 = vector.shape_cast %179 : vector<1x128x128xbf16> to vector<1x128x128xbf16>
    %181 = vector.broadcast %180 : vector<1x128x128xbf16> to vector<2x128x128xbf16>
    %182 = vector.shape_cast %178 : vector<4x64x128xf32> to vector<2x128x128xf32>
    %183 = arith.truncf %182 : vector<2x128x128xf32> to vector<2x128x128xbf16>
    "tpu.trace_start"() <{level = 10 : i32, message = "boc,bcp->bop"}> : () -> ()
    %cst_72 = arith.constant dense<0.000000e+00> : vector<2x128x128xf32>
    %184 = tpu.matmul %181, %183, %cst_72 {dimension_numbers = #tpu.dot_dimension_numbers<[2], [1], [1], [2], [0, 0, 0, 1, 1, 2], [0], [0]>} : vector<2x128x128xbf16>, vector<2x128x128xbf16>, vector<2x128x128xf32> -> vector<2x128x128xf32>
    "tpu.trace_stop"() : () -> ()
    %185 = vector.shape_cast %184 : vector<2x128x128xf32> to vector<2x2x64x128xf32>
    %c0_73 = arith.constant 0 : index
    %c0_74 = arith.constant 0 : index
    %c0_75 = arith.constant 0 : index
    %186 = vector.load %arg11[%c0_73, %c0_74, %c0_75] : memref<2x128x1xf32, #tpu.memory_space<vmem>>, vector<1x128x1xf32>
    %187 = vector.shape_cast %186 : vector<1x128x1xf32> to vector<128x1xf32>
    %188 = vector.shape_cast %187 : vector<128x1xf32> to vector<2x64x1xf32>
    %c1_76 = arith.constant 1 : index
    %c0_77 = arith.constant 0 : index
    %c0_78 = arith.constant 0 : index
    %189 = vector.load %arg11[%c1_76, %c0_77, %c0_78] : memref<2x128x1xf32, #tpu.memory_space<vmem>>, vector<1x128x1xf32>
    %190 = vector.shape_cast %189 : vector<1x128x1xf32> to vector<128x1xf32>
    %191 = vector.shape_cast %190 : vector<128x1xf32> to vector<2x64x1xf32>
    %cst_79 = arith.constant dense<0.000000e+00> : vector<2x2x64xf32>
    %192 = vector.multi_reduction <add>, %185, %cst_79 [3] : vector<2x2x64x128xf32> to vector<2x2x64xf32>
    %193 = vector.shape_cast %192 : vector<2x2x64xf32> to vector<2x2x64x1xf32>
    %cst_80 = arith.constant dense<0.000000e+00> : vector<2x2x1xf32>
    %194 = vector.multi_reduction <add>, %193, %cst_80 [2] : vector<2x2x64x1xf32> to vector<2x2x1xf32>
    %195 = vector.shape_cast %194 : vector<2x2x1xf32> to vector<2x2x1x1xf32>
    %196 = arith.mulf %185, %185 : vector<2x2x64x128xf32>
    %cst_81 = arith.constant dense<0.000000e+00> : vector<2x2x64xf32>
    %197 = vector.multi_reduction <add>, %196, %cst_81 [3] : vector<2x2x64x128xf32> to vector<2x2x64xf32>
    %198 = vector.shape_cast %197 : vector<2x2x64xf32> to vector<2x2x64x1xf32>
    %cst_82 = arith.constant dense<0.000000e+00> : vector<2x2x1xf32>
    %199 = vector.multi_reduction <add>, %198, %cst_82 [2] : vector<2x2x64x1xf32> to vector<2x2x1xf32>
    %200 = vector.shape_cast %199 : vector<2x2x1xf32> to vector<2x2x1x1xf32>
    %cst_83 = arith.constant 1.22070313E-4 : f32
    %201 = vector.broadcast %cst_83 : f32 to vector<2x2x1x1xf32>
    %202 = arith.mulf %195, %201 : vector<2x2x1x1xf32>
    %cst_84 = arith.constant 1.22070313E-4 : f32
    %203 = vector.broadcast %cst_84 : f32 to vector<2x2x1x1xf32>
    %204 = arith.mulf %200, %203 : vector<2x2x1x1xf32>
    %205 = arith.mulf %202, %202 : vector<2x2x1x1xf32>
    %206 = arith.subf %204, %205 : vector<2x2x1x1xf32>
    %cst_85 = arith.constant 9.99999974E-6 : f32
    %207 = vector.broadcast %cst_85 : f32 to vector<2x2x1x1xf32>
    %208 = arith.addf %206, %207 : vector<2x2x1x1xf32>
    %209 = math.rsqrt %208 : vector<2x2x1x1xf32>
    %210 = vector.shape_cast %188 : vector<2x64x1xf32> to vector<1x2x64x1xf32>
    %211 = vector.broadcast %209 : vector<2x2x1x1xf32> to vector<2x2x64x1xf32>
    %212 = vector.broadcast %210 : vector<1x2x64x1xf32> to vector<2x2x64x1xf32>
    %213 = arith.mulf %211, %212 : vector<2x2x64x1xf32>
    %214 = vector.broadcast %202 : vector<2x2x1x1xf32> to vector<2x2x64x1xf32>
    %215 = arith.mulf %214, %213 : vector<2x2x64x1xf32>
    %216 = vector.shape_cast %191 : vector<2x64x1xf32> to vector<1x2x64x1xf32>
    %217 = vector.broadcast %216 : vector<1x2x64x1xf32> to vector<2x2x64x1xf32>
    %218 = arith.subf %217, %215 : vector<2x2x64x1xf32>
    %219 = vector.broadcast %213 : vector<2x2x64x1xf32> to vector<2x2x64x128xf32>
    %220 = arith.mulf %185, %219 : vector<2x2x64x128xf32>
    %221 = vector.broadcast %218 : vector<2x2x64x1xf32> to vector<2x2x64x128xf32>
    %222 = arith.addf %220, %221 : vector<2x2x64x128xf32>
    %223 = vector.shape_cast %222 : vector<2x2x64x128xf32> to vector<2x128x128xf32>
    %224 = arith.addf %223, %0 : vector<2x128x128xf32>
    %c0_86 = arith.constant 0 : index
    %c0_87 = arith.constant 0 : index
    %c0_88 = arith.constant 0 : index
    %225 = vector.load %arg12[%c0_86, %c0_87, %c0_88] : memref<2x128x128xf32, #tpu.memory_space<vmem>>, vector<2x128x128xf32>
    tpu.vector_store %arg12[%c0_86, %c0_87, %c0_88], %224 {strides = array<i32>} : memref<2x128x128xf32, #tpu.memory_space<vmem>>, vector<2x128x128xf32>,
    return
  }
  func.func @transform_0(%arg0: i32) -> (i32, i32, i32) {
    %c0_i32 = arith.constant 0 : i32
    %c0_i32_0 = arith.constant 0 : i32
    %c0_i32_1 = arith.constant 0 : i32
    return %arg0, %c0_i32, %c0_i32_0 : i32, i32, i32
  }
  func.func @transform_1(%arg0: i32) -> (i32, i32, i32) {
    %c0_i32 = arith.constant 0 : i32
    %c0_i32_0 = arith.constant 0 : i32
    %c0_i32_1 = arith.constant 0 : i32
    return %arg0, %c0_i32, %c0_i32_0 : i32, i32, i32
  }
  func.func @transform_2(%arg0: i32) -> (i32, i32) {
    %c0_i32 = arith.constant 0 : i32
    %c0_i32_0 = arith.constant 0 : i32
    %c0_i32_1 = arith.constant 0 : i32
    return %c0_i32, %c0_i32_0 : i32, i32
  }
  func.func @transform_3(%arg0: i32) -> (i32, i32) {
    %c0_i32 = arith.constant 0 : i32
    %c0_i32_0 = arith.constant 0 : i32
    %c0_i32_1 = arith.constant 0 : i32
    return %c0_i32, %c0_i32_0 : i32, i32
  }
  func.func @transform_4(%arg0: i32) -> (i32, i32) {
    %c0_i32 = arith.constant 0 : i32
    %c0_i32_0 = arith.constant 0 : i32
    %c0_i32_1 = arith.constant 0 : i32
    return %c0_i32, %c0_i32_0 : i32, i32
  }
  func.func @transform_5(%arg0: i32) -> (i32, i32) {
    %c0_i32 = arith.constant 0 : i32
    %c0_i32_0 = arith.constant 0 : i32
    %c0_i32_1 = arith.constant 0 : i32
    return %c0_i32, %c0_i32_0 : i32, i32
  }
  func.func @transform_6(%arg0: i32) -> (i32, i32, i32) {
    %c0_i32 = arith.constant 0 : i32
    %c0_i32_0 = arith.constant 0 : i32
    %c0_i32_1 = arith.constant 0 : i32
    %c0_i32_2 = arith.constant 0 : i32
    return %c0_i32, %c0_i32_0, %c0_i32_1 : i32, i32, i32
  }
  func.func @transform_7(%arg0: i32) -> (i32, i32, i32) {
    %c0_i32 = arith.constant 0 : i32
    %c0_i32_0 = arith.constant 0 : i32
    %c0_i32_1 = arith.constant 0 : i32
    %c0_i32_2 = arith.constant 0 : i32
    return %c0_i32, %c0_i32_0, %c0_i32_1 : i32, i32, i32
  }
  func.func @transform_8(%arg0: i32) -> (i32, i32, i32) {
    %c0_i32 = arith.constant 0 : i32
    %c0_i32_0 = arith.constant 0 : i32
    %c0_i32_1 = arith.constant 0 : i32
    %c0_i32_2 = arith.constant 0 : i32
    return %c0_i32, %c0_i32_0, %c0_i32_1 : i32, i32, i32
  }
  func.func @transform_9(%arg0: i32) -> (i32, i32, i32) {
    %c0_i32 = arith.constant 0 : i32
    %c0_i32_0 = arith.constant 0 : i32
    %c0_i32_1 = arith.constant 0 : i32
    %c0_i32_2 = arith.constant 0 : i32
    return %c0_i32, %c0_i32_0, %c0_i32_1 : i32, i32, i32
  }
  func.func @transform_10(%arg0: i32) -> (i32, i32, i32) {
    %c0_i32 = arith.constant 0 : i32
    %c0_i32_0 = arith.constant 0 : i32
    %c0_i32_1 = arith.constant 0 : i32
    %c0_i32_2 = arith.constant 0 : i32
    return %c0_i32, %c0_i32_0, %c0_i32_1 : i32, i32, i32
  }
  func.func @transform_11(%arg0: i32) -> (i32, i32, i32) {
    %c0_i32 = arith.constant 0 : i32
    %c0_i32_0 = arith.constant 0 : i32
    %c0_i32_1 = arith.constant 0 : i32
    return %arg0, %c0_i32, %c0_i32_0 : i32, i32, i32
  }
}

</mosaic_0001>

<llo_original>
// kernel: tpu_custom_call.1
$region0: #{tpu_custom_call.1}
  #allocation0 [shape = 'u32[]', space=smem, size = 0x4, offset = 0x4, fixed_abs, tag = 'smem constant byte address 0x4 - core index']
  #allocation1 [shape = 'u32[72,128]{1,0:T(1,128)}', space=vmem, size = 0x9000, scoped, tag = 'internal scratch']
  %s0 = inlined_call_operand.hbm [shape: f32[16,128,128], index: 0, kind: input, shape index: {}]
  %s1 = inlined_call_operand.hbm [shape: f32[16,128,128], index: 1, kind: input, shape index: {}]
  %s2 = inlined_call_operand.vmem [shape: bf16[256,128], index: 2, kind: input, shape index: {}]
  %s3 = inlined_call_operand.vmem [shape: bf16[128,64], index: 3, kind: input, shape index: {}]
  %s4 = inlined_call_operand.vmem [shape: bf16[64,128], index: 4, kind: input, shape index: {}]
  %s5 = inlined_call_operand.vmem [shape: bf16[128,128], index: 5, kind: input, shape index: {}]
  %s6 = inlined_call_operand.vmem [shape: f32[2,128,1], index: 6, kind: input, shape index: {}]
  %s7 = inlined_call_operand.vmem [shape: f32[2,128,1], index: 7, kind: input, shape index: {}]
  %s8 = inlined_call_operand.vmem [shape: f32[2,1,64], index: 8, kind: input, shape index: {}]
  %s9 = inlined_call_operand.vmem [shape: f32[2,1,128], index: 9, kind: input, shape index: {}]
  %s10 = inlined_call_operand.vmem [shape: f32[2,128,1], index: 10, kind: input, shape index: {}]
  %s11 = inlined_call_operand.hbm [shape: f32[16,128,128], index: 11, kind: output, shape index: {}]
  %s12 = sld [smem:[#allocation0]]
  $region85: #{tpu_custom_call.1} parent=0
    _
  %s14 = ssub.s32 1, %s12
  %s15 = scalar_select 0, %s14, %s12
  $region1: #{tpu_custom_call.1} parent=0
    #allocation2 [shape = 'u8[262144]{0}', space=vmem, size = 0x40000, scoped, tag = 'input window, operand 0']
    #allocation3 [shape = 's32[2]{0}', space=sflag, size = 0x8, scoped, tag = 'scoped memory for tpu_custom_call.1']
    #allocation4 [shape = 's32[2]{0}', space=sflag, size = 0x8, scoped, tag = 'scoped memory for tpu_custom_call.1']
    #allocation5 [shape = 'u8[262144]{0}', space=vmem, size = 0x40000, scoped, tag = 'input window, operand 1']
    #allocation6 [shape = 's32[2]{0}', space=sflag, size = 0x8, scoped, tag = 'scoped memory for tpu_custom_call.1']
    #allocation7 [shape = 'u8[262144]{0}', space=vmem, size = 0x40000, scoped, tag = 'output window, operand 0']
    %16 = vsyncpa [#allocation3], 0
    %s17 = scalar_lea.sflag [#allocation3], 1
    %18 = vsyncpa %s17, 0
    %19 = vsyncpa [#allocation6], 0
    %s20 = scalar_lea.sflag [#allocation6], 1
    %21 = vsyncpa %s20, 0
    %22 = vsyncpa [#allocation4], 0
    %s23 = scalar_lea.sflag [#allocation4], 1
    %24 = vsyncpa %s23, 0
    loop: start=0, step=1, limit=10
    $region2: #{tpu_custom_call.1} parent=1 // loop_pre_header
      _
    $region3: #{tpu_custom_call.1} parent=1 // loop_header
      %s26 = sphi 0, %s30
      %p27 = scmp.ge.s32.totalorder %s26, 10
      %s36 = sphi 0, %s38
      %s39 = sphi 0, %s36
      %s40 = sphi 0, %s39
      %s56 = sphi 0, %s40
      %s62 = sphi 0, %s64
      %s65 = sphi 0, %s62
      %s66 = sphi 0, %s65
      %s82 = sphi 0, %s66
      %s86 = sphi 0, %s86
      %s88 = sphi 0, %s86
      %s89 = sphi 0, %s88
      %s103 = sphi 0, %s89
      %s107 = sphi 0, %s107
      %s109 = sphi 0, %s107
      %s110 = sphi 0, %s109
      %s124 = sphi 0, %s110
      %s128 = sphi 0, %s128
      %s130 = sphi 0, %s128
      %s131 = sphi 0, %s130
      %s145 = sphi 0, %s131
      %s149 = sphi 0, %s149
      %s151 = sphi 0, %s149
      %s152 = sphi 0, %s151
      %s166 = sphi 0, %s152
      %s170 = sphi 0, %s170
      %s172 = sphi 0, %s170
      %s173 = sphi 0, %s172
      %s187 = sphi 0, %s173
      %s191 = sphi 0, %s191
      %s193 = sphi 0, %s191
      %s194 = sphi 0, %s193
      %s208 = sphi 0, %s194
      %s212 = sphi 0, %s212
      %s214 = sphi 0, %s212
      %s215 = sphi 0, %s214
      %s229 = sphi 0, %s215
      %s233 = sphi 0, %s233
      %s235 = sphi 0, %s233
      %s236 = sphi 0, %s235
      %s250 = sphi 0, %s236
      %s254 = sphi 0, %s254
      %s256 = sphi 0, %s254
      %s257 = sphi 0, %s256
      %s271 = sphi 0, %s257
      %s277 = sphi 0, %s279
      %s280 = sphi 0, %s277
      %s281 = sphi 0, %s280
      %s297 = sphi 0, %s281
    $region4: #{tpu_custom_call.1} parent=1 // loop_header_branch
      %29 = sbr.rel (%p27) target = $region8
    $region5: #{tpu_custom_call.1} parent=1 // loop_body
      %s31 = ssub.s32 %s26, 1
      %s32 = ssub.s32 %s26, 2
      %s33 = sadd.s32 %s26, 1
      %s34 = ssub.s32 %s26, %s33
      %p35 = scmp.eq.s32.totalorder %s34, 0
      %s37 = sadd.s32 %s36, 1
      %s38 = scalar_select %p35, %s36, %s37
      %p41 = pneg %p35
      %p42 = scmp.eq.s32.totalorder %s26, 7
      %p43 = por %p41, %p42
      %p44 = scmp.ne.s32.totalorder %s36, %s39
      %p45 = scmp.eq.s32.totalorder %s26, 0
      %p46 = por %p44, %p45
      %p47 = scmp.ne.s32.totalorder %s36, %s39
      %p48 = scmp.eq.s32.totalorder %s31, 7
      %p49 = por %p47, %p48
      %p50 = scmp.ne.s32.totalorder %s39, %s40
      %p51 = scmp.eq.s32.totalorder %s31, 0
      %p52 = por %p50, %p51
      %p53 = scmp.ne.s32.totalorder %s39, %s40
      %p54 = scmp.eq.s32.totalorder %s32, 7
      %p55 = por %p53, %p54
      %p57 = scmp.ne.s32.totalorder %s40, %s56
      %p58 = scmp.eq.s32.totalorder %s32, 0
      %p59 = por %p57, %p58
      %s60 = ssub.s32 %s26, %s33
      %p61 = scmp.eq.s32.totalorder %s60, 0
      %s63 = sadd.s32 %s62, 1
      %s64 = scalar_select %p61, %s62, %s63
      %p67 = pneg %p61
      %p68 = scmp.eq.s32.totalorder %s26, 7
      %p69 = por %p67, %p68
      %p70 = scmp.ne.s32.totalorder %s62, %s65
      %p71 = scmp.eq.s32.totalorder %s26, 0
      %p72 = por %p70, %p71
      %p73 = scmp.ne.s32.totalorder %s62, %s65
      %p74 = scmp.eq.s32.totalorder %s31, 7
      %p75 = por %p73, %p74
      %p76 = scmp.ne.s32.totalorder %s65, %s66
      %p77 = scmp.eq.s32.totalorder %s31, 0
      %p78 = por %p76, %p77
      %p79 = scmp.ne.s32.totalorder %s65, %s66
      %p80 = scmp.eq.s32.totalorder %s32, 7
      %p81 = por %p79, %p80
      %p83 = scmp.ne.s32.totalorder %s66, %s82
      %p84 = scmp.eq.s32.totalorder %s32, 0
      %p85 = por %p83, %p84
      %s87 = sadd.s32 %s86, 1
      %p90 = scmp.eq.s32.totalorder %s26, 7
      %p91 = scmp.ne.s32.totalorder %s86, %s88
      %p92 = scmp.eq.s32.totalorder %s26, 0
      %p93 = por %p91, %p92
      %p94 = scmp.ne.s32.totalorder %s86, %s88
      %p95 = scmp.eq.s32.totalorder %s31, 7
      %p96 = por %p94, %p95
      %p97 = scmp.ne.s32.totalorder %s88, %s89
      %p98 = scmp.eq.s32.totalorder %s31, 0
      %p99 = por %p97, %p98
      %p100 = scmp.ne.s32.totalorder %s88, %s89
      %p101 = scmp.eq.s32.totalorder %s32, 7
      %p102 = por %p100, %p101
      %p104 = scmp.ne.s32.totalorder %s89, %s103
      %p105 = scmp.eq.s32.totalorder %s32, 0
      %p106 = por %p104, %p105
      %s108 = sadd.s32 %s107, 1
      %p111 = scmp.eq.s32.totalorder %s26, 7
      %p112 = scmp.ne.s32.totalorder %s107, %s109
      %p113 = scmp.eq.s32.totalorder %s26, 0
      %p114 = por %p112, %p113
      %p115 = scmp.ne.s32.totalorder %s107, %s109
      %p116 = scmp.eq.s32.totalorder %s31, 7
      %p117 = por %p115, %p116
      %p118 = scmp.ne.s32.totalorder %s109, %s110
      %p119 = scmp.eq.s32.totalorder %s31, 0
      %p120 = por %p118, %p119
      %p121 = scmp.ne.s32.totalorder %s109, %s110
      %p122 = scmp.eq.s32.totalorder %s32, 7
      %p123 = por %p121, %p122
      %p125 = scmp.ne.s32.totalorder %s110, %s124
      %p126 = scmp.eq.s32.totalorder %s32, 0
      %p127 = por %p125, %p126
      %s129 = sadd.s32 %s128, 1
      %p132 = scmp.eq.s32.totalorder %s26, 7
      %p133 = scmp.ne.s32.totalorder %s128, %s130
      %p134 = scmp.eq.s32.totalorder %s26, 0
      %p135 = por %p133, %p134
      %p136 = scmp.ne.s32.totalorder %s128, %s130
      %p137 = scmp.eq.s32.totalorder %s31, 7
      %p138 = por %p136, %p137
      %p139 = scmp.ne.s32.totalorder %s130, %s131
      %p140 = scmp.eq.s32.totalorder %s31, 0
      %p141 = por %p139, %p140
      %p142 = scmp.ne.s32.totalorder %s130, %s131
      %p143 = scmp.eq.s32.totalorder %s32, 7
      %p144 = por %p142, %p143
      %p146 = scmp.ne.s32.totalorder %s131, %s145
      %p147 = scmp.eq.s32.totalorder %s32, 0
      %p148 = por %p146, %p147
      %s150 = sadd.s32 %s149, 1
      %p153 = scmp.eq.s32.totalorder %s26, 7
      %p154 = scmp.ne.s32.totalorder %s149, %s151
      %p155 = scmp.eq.s32.totalorder %s26, 0
      %p156 = por %p154, %p155
      %p157 = scmp.ne.s32.totalorder %s149, %s151
      %p158 = scmp.eq.s32.totalorder %s31, 7
      %p159 = por %p157, %p158
      %p160 = scmp.ne.s32.totalorder %s151, %s152
      %p161 = scmp.eq.s32.totalorder %s31, 0
      %p162 = por %p160, %p161
      %p163 = scmp.ne.s32.totalorder %s151, %s152
      %p164 = scmp.eq.s32.totalorder %s32, 7
      %p165 = por %p163, %p164
      %p167 = scmp.ne.s32.totalorder %s152, %s166
      %p168 = scmp.eq.s32.totalorder %s32, 0
      %p169 = por %p167, %p168
      %s171 = sadd.s32 %s170, 1
      %p174 = scmp.eq.s32.totalorder %s26, 7
      %p175 = scmp.ne.s32.totalorder %s170, %s172
      %p176 = scmp.eq.s32.totalorder %s26, 0
      %p177 = por %p175, %p176
      %p178 = scmp.ne.s32.totalorder %s170, %s172
      %p179 = scmp.eq.s32.totalorder %s31, 7
      %p180 = por %p178, %p179
      %p181 = scmp.ne.s32.totalorder %s172, %s173
      %p182 = scmp.eq.s32.totalorder %s31, 0
      %p183 = por %p181, %p182
      %p184 = scmp.ne.s32.totalorder %s172, %s173
      %p185 = scmp.eq.s32.totalorder %s32, 7
      %p186 = por %p184, %p185
      %p188 = scmp.ne.s32.totalorder %s173, %s187
      %p189 = scmp.eq.s32.totalorder %s32, 0
      %p190 = por %p188, %p189
      %s192 = sadd.s32 %s191, 1
      %p195 = scmp.eq.s32.totalorder %s26, 7
      %p196 = scmp.ne.s32.totalorder %s191, %s193
      %p197 = scmp.eq.s32.totalorder %s26, 0
      %p198 = por %p196, %p197
      %p199 = scmp.ne.s32.totalorder %s191, %s193
      %p200 = scmp.eq.s32.totalorder %s31, 7
      %p201 = por %p199, %p200
      %p202 = scmp.ne.s32.totalorder %s193, %s194
      %p203 = scmp.eq.s32.totalorder %s31, 0
      %p204 = por %p202, %p203
      %p205 = scmp.ne.s32.totalorder %s193, %s194
      %p206 = scmp.eq.s32.totalorder %s32, 7
      %p207 = por %p205, %p206
      %p209 = scmp.ne.s32.totalorder %s194, %s208
      %p210 = scmp.eq.s32.totalorder %s32, 0
      %p211 = por %p209, %p210
      %s213 = sadd.s32 %s212, 1
      %p216 = scmp.eq.s32.totalorder %s26, 7
      %p217 = scmp.ne.s32.totalorder %s212, %s214
      %p218 = scmp.eq.s32.totalorder %s26, 0
      %p219 = por %p217, %p218
      %p220 = scmp.ne.s32.totalorder %s212, %s214
      %p221 = scmp.eq.s32.totalorder %s31, 7
      %p222 = por %p220, %p221
      %p223 = scmp.ne.s32.totalorder %s214, %s215
      %p224 = scmp.eq.s32.totalorder %s31, 0
      %p225 = por %p223, %p224
      %p226 = scmp.ne.s32.totalorder %s214, %s215
      %p227 = scmp.eq.s32.totalorder %s32, 7
      %p228 = por %p226, %p227
      %p230 = scmp.ne.s32.totalorder %s215, %s229
      %p231 = scmp.eq.s32.totalorder %s32, 0
      %p232 = por %p230, %p231
      %s234 = sadd.s32 %s233, 1
      %p237 = scmp.eq.s32.totalorder %s26, 7
      %p238 = scmp.ne.s32.totalorder %s233, %s235
      %p239 = scmp.eq.s32.totalorder %s26, 0
      %p240 = por %p238, %p239
      %p241 = scmp.ne.s32.totalorder %s233, %s235
      %p242 = scmp.eq.s32.totalorder %s31, 7
      %p243 = por %p241, %p242
      %p244 = scmp.ne.s32.totalorder %s235, %s236
      %p245 = scmp.eq.s32.totalorder %s31, 0
      %p246 = por %p244, %p245
      %p247 = scmp.ne.s32.totalorder %s235, %s236
      %p248 = scmp.eq.s32.totalorder %s32, 7
      %p249 = por %p247, %p248
      %p251 = scmp.ne.s32.totalorder %s236, %s250
      %p252 = scmp.eq.s32.totalorder %s32, 0
      %p253 = por %p251, %p252
      %s255 = sadd.s32 %s254, 1
      %p258 = scmp.eq.s32.totalorder %s26, 7
      %p259 = scmp.ne.s32.totalorder %s254, %s256
      %p260 = scmp.eq.s32.totalorder %s26, 0
      %p261 = por %p259, %p260
      %p262 = scmp.ne.s32.totalorder %s254, %s256
      %p263 = scmp.eq.s32.totalorder %s31, 7
      %p264 = por %p262, %p263
      %p265 = scmp.ne.s32.totalorder %s256, %s257
      %p266 = scmp.eq.s32.totalorder %s31, 0
      %p267 = por %p265, %p266
      %p268 = scmp.ne.s32.totalorder %s256, %s257
      %p269 = scmp.eq.s32.totalorder %s32, 7
      %p270 = por %p268, %p269
      %p272 = scmp.ne.s32.totalorder %s257, %s271
      %p273 = scmp.eq.s32.totalorder %s32, 0
      %p274 = por %p272, %p273
      %s275 = ssub.s32 %s26, %s33
      %p276 = scmp.eq.s32.totalorder %s275, 0
      %s278 = sadd.s32 %s277, 1
      %s279 = scalar_select %p276, %s277, %s278
      %p282 = pneg %p276
      %p283 = scmp.eq.s32.totalorder %s26, 7
      %p284 = por %p282, %p283
      %p285 = scmp.ne.s32.totalorder %s277, %s280
      %p286 = scmp.eq.s32.totalorder %s26, 0
      %p287 = por %p285, %p286
      %p288 = scmp.ne.s32.totalorder %s277, %s280
      %p289 = scmp.eq.s32.totalorder %s31, 7
      %p290 = por %p288, %p289
      %p291 = scmp.ne.s32.totalorder %s280, %s281
      %p292 = scmp.eq.s32.totalorder %s31, 0
      %p293 = por %p291, %p292
      %p294 = scmp.ne.s32.totalorder %s280, %s281
      %p295 = scmp.eq.s32.totalorder %s32, 7
      %p296 = por %p294, %p295
      %p298 = scmp.ne.s32.totalorder %s281, %s297
      %p299 = scmp.eq.s32.totalorder %s32, 0
      %p300 = por %p298, %p299
      %p301 = scmp.le.s32.totalorder 1, %s26
      %p302 = scmp.lt.s32.totalorder %s26, 9
      %p303 = pnand %p301, %p302
      %p304 = pneg %p303
      // Predicated region
      $region9: #{tpu_custom_call.1} parent=5 // pred_check
        _
      $region10: #{tpu_custom_call.1} parent=5 // pred_check_branch
        %306 = sbr.rel (%p303) target = $region12
      $region11: #{tpu_custom_call.1} parent=5 // pred_region
        %s307 = ssub.s32 %s26, 1
        // Predicated region
        $region13: #{tpu_custom_call.1} parent=11 // pred_check
          %p308 = pneg %p99
        $region14: #{tpu_custom_call.1} parent=11 // pred_check_branch
          %310 = sbr.rel (%p308) target = $region16
        $region15: #{tpu_custom_call.1} parent=11 // pred_region
          _
        $region16: #{tpu_custom_call.1} parent=11 // pred_fallthru
          _
        // Predicated region
        $region17: #{tpu_custom_call.1} parent=11 // pred_check
          %p311 = pneg %p120
        $region18: #{tpu_custom_call.1} parent=11 // pred_check_branch
          %313 = sbr.rel (%p311) target = $region20
        $region19: #{tpu_custom_call.1} parent=11 // pred_region
          _
        $region20: #{tpu_custom_call.1} parent=11 // pred_fallthru
          _
        // Predicated region
        $region21: #{tpu_custom_call.1} parent=11 // pred_check
          %p314 = pneg %p141
        $region22: #{tpu_custom_call.1} parent=11 // pred_check_branch
          %316 = sbr.rel (%p314) target = $region24
        $region23: #{tpu_custom_call.1} parent=11 // pred_region
          _
        $region24: #{tpu_custom_call.1} parent=11 // pred_fallthru
          _
        // Predicated region
        $region25: #{tpu_custom_call.1} parent=11 // pred_check
          %p317 = pneg %p162
        $region26: #{tpu_custom_call.1} parent=11 // pred_check_branch
          %319 = sbr.rel (%p317) target = $region28
        $region27: #{tpu_custom_call.1} parent=11 // pred_region
          _
        $region28: #{tpu_custom_call.1} parent=11 // pred_fallthru
          _
        // Predicated region
        $region29: #{tpu_custom_call.1} parent=11 // pred_check
          %p320 = pneg %p183
        $region30: #{tpu_custom_call.1} parent=11 // pred_check_branch
          %322 = sbr.rel (%p320) target = $region32
        $region31: #{tpu_custom_call.1} parent=11 // pred_region
          _
        $region32: #{tpu_custom_call.1} parent=11 // pred_fallthru
          _
        // Predicated region
        $region33: #{tpu_custom_call.1} parent=11 // pred_check
          %p323 = pneg %p204
        $region34: #{tpu_custom_call.1} parent=11 // pred_check_branch
          %325 = sbr.rel (%p323) target = $region36
        $region35: #{tpu_custom_call.1} parent=11 // pred_region
          _
        $region36: #{tpu_custom_call.1} parent=11 // pred_fallthru
          _
        // Predicated region
        $region37: #{tpu_custom_call.1} parent=11 // pred_check
          %p326 = pneg %p225
        $region38: #{tpu_custom_call.1} parent=11 // pred_check_branch
          %328 = sbr.rel (%p326) target = $region40
        $region39: #{tpu_custom_call.1} parent=11 // pred_region
          _
        $region40: #{tpu_custom_call.1} parent=11 // pred_fallthru
          _
        // Predicated region
        $region41: #{tpu_custom_call.1} parent=11 // pred_check
          %p329 = pneg %p246
        $region42: #{tpu_custom_call.1} parent=11 // pred_check_branch
          %331 = sbr.rel (%p329) target = $region44
        $region43: #{tpu_custom_call.1} parent=11 // pred_region
          _
        $region44: #{tpu_custom_call.1} parent=11 // pred_fallthru
          _
        // Predicated region
        $region45: #{tpu_custom_call.1} parent=11 // pred_check
          %p332 = pneg %p267
        $region46: #{tpu_custom_call.1} parent=11 // pred_check_branch
          %334 = sbr.rel (%p332) target = $region48
        $region47: #{tpu_custom_call.1} parent=11 // pred_region
          _
        $region48: #{tpu_custom_call.1} parent=11 // pred_fallthru
          _
      $region12: #{tpu_custom_call.1} parent=5 // pred_fallthru
        _
      %p335 = scmp.lt.s32.totalorder %s26, 8
      // Predicated region
      $region49: #{tpu_custom_call.1} parent=5 // pred_check
        %p336 = pneg %p335
      $region50: #{tpu_custom_call.1} parent=5 // pred_check_branch
        %338 = sbr.rel (%p336) target = $region52
      $region51: #{tpu_custom_call.1} parent=5 // pred_region
        // Predicated region
        $region53: #{tpu_custom_call.1} parent=51 // pred_check
          %p339 = pneg %p46
        $region54: #{tpu_custom_call.1} parent=51 // pred_check_branch
          %341 = sbr.rel (%p339) target = $region56
        $region55: #{tpu_custom_call.1} parent=51 // pred_region
          %s342 = sand.u32 %s36, 1
          %s343 = scalar_lea.sflag [#allocation3], %s342
          %s344 = sand.u32 %s36, 1
          %s345 = smul.addr %s344, 256
          %s346 = scalar_lea.vmem [#allocation2], %s345
          %s347 = smul.u32 2, %s26
          %349 = vsyncadd %s343, 0
          %s350 = smul.addr %s347, 16
          %s351 = smul.addr %s350, 8
          %s352 = scalar_lea.hbm %s0, %s351
          %s353 = sshll.u32 %s352, 4
          %s354 = int_to_ptr.hbm [resolvable:$true] %s353
          %s355 = sshll.u32 %s346, 4
          %s356 = int_to_ptr.vmem [resolvable:$true] %s355
          %361 = dma.hbm_to_vmem [thread:$0]  %s354, 4096, %s356, %s343, 128, 128, 8
        $region56: #{tpu_custom_call.1} parent=51 // pred_fallthru
          _
        // Predicated region
        $region57: #{tpu_custom_call.1} parent=51 // pred_check
          %p362 = pneg %p72
        $region58: #{tpu_custom_call.1} parent=51 // pred_check_branch
          %364 = sbr.rel (%p362) target = $region60
        $region59: #{tpu_custom_call.1} parent=51 // pred_region
          %s365 = sand.u32 %s62, 1
          %s366 = scalar_lea.sflag [#allocation6], %s365
          %s367 = sand.u32 %s62, 1
          %s368 = smul.addr %s367, 256
          %s369 = scalar_lea.vmem [#allocation5], %s368
          %s370 = smul.u32 2, %s26
          %372 = vsyncadd %s366, 0
          %s373 = smul.addr %s370, 16
          %s374 = smul.addr %s373, 8
          %s375 = scalar_lea.hbm %s1, %s374
          %s376 = sshll.u32 %s375, 4
          %s377 = int_to_ptr.hbm [resolvable:$true] %s376
          %s378 = sshll.u32 %s369, 4
          %s379 = int_to_ptr.vmem [resolvable:$true] %s378
          %384 = dma.hbm_to_vmem [thread:$0]  %s377, 4096, %s379, %s366, 128, 128, 8
        $region60: #{tpu_custom_call.1} parent=51 // pred_fallthru
          _
      $region52: #{tpu_custom_call.1} parent=5 // pred_fallthru
        _
      %p385 = scmp.le.s32.totalorder 1, %s26
      %p386 = scmp.lt.s32.totalorder %s26, 9
      %p387 = pnand %p385, %p386
      %p388 = pneg %p387
      // Predicated region
      $region61: #{tpu_custom_call.1} parent=5 // pred_check
        _
      $region62: #{tpu_custom_call.1} parent=5 // pred_check_branch
        %390 = sbr.rel (%p387) target = $region64
      $region63: #{tpu_custom_call.1} parent=5 // pred_region
        %s391 = ssub.s32 %s26, 1
        %s392 = sand.u32 %s39, 1
        %s393 = scalar_lea.sflag [#allocation3], %s392
        %s394 = sand.u32 %s39, 1
        %s395 = smul.addr %s394, 256
        %s396 = scalar_lea.vmem [#allocation2], %s395
        // Predicated region
        $region65: #{tpu_custom_call.1} parent=63 // pred_check
          %p397 = pneg %p52
        $region66: #{tpu_custom_call.1} parent=63 // pred_check_branch
          %399 = sbr.rel (%p397) target = $region68
        $region67: #{tpu_custom_call.1} parent=63 // pred_region
          %401 = dma.done %s393, 4096
        $region68: #{tpu_custom_call.1} parent=63 // pred_fallthru
          _
        %s402 = sand.u32 %s65, 1
        %s403 = scalar_lea.sflag [#allocation6], %s402
        %s404 = sand.u32 %s65, 1
        %s405 = smul.addr %s404, 256
        %s406 = scalar_lea.vmem [#allocation5], %s405
        // Predicated region
        $region69: #{tpu_custom_call.1} parent=63 // pred_check
          %p407 = pneg %p78
        $region70: #{tpu_custom_call.1} parent=63 // pred_check_branch
          %409 = sbr.rel (%p407) target = $region72
        $region71: #{tpu_custom_call.1} parent=63 // pred_region
          %411 = dma.done %s403, 4096
        $region72: #{tpu_custom_call.1} parent=63 // pred_fallthru
          _
        %s412 = sand.u32 %s39, 1
        %s413 = scalar_lea.sflag [#allocation3], %s412
        %s414 = sand.u32 %s39, 1
        %s415 = smul.addr %s414, 256
        %s416 = scalar_lea.vmem [#allocation2], %s415
        %p417 = pneg %p52
        %p418 = pneg %p49
        %s419 = sand.u32 %s65, 1
        %s420 = scalar_lea.sflag [#allocation6], %s419
        %s421 = sand.u32 %s65, 1
        %s422 = smul.addr %s421, 256
        %s423 = scalar_lea.vmem [#allocation5], %s422
        %p424 = pneg %p78
        %p425 = pneg %p75
        %p426 = pneg %p99
        %p427 = pneg %p96
        %p428 = pneg %p120
        %p429 = pneg %p117
        %p430 = pneg %p141
        %p431 = pneg %p138
        %p432 = pneg %p162
        %p433 = pneg %p159
        %p434 = pneg %p183
        %p435 = pneg %p180
        %p436 = pneg %p204
        %p437 = pneg %p201
        %p438 = pneg %p225
        %p439 = pneg %p222
        %p440 = pneg %p246
        %p441 = pneg %p243
        %p442 = pneg %p267
        %p443 = pneg %p264
        %p444 = pneg %p293
        %p445 = pneg %p290
        %s446 = sand.u32 %s280, 1
        %s447 = scalar_lea.sflag [#allocation4], %s446
        %s448 = sand.u32 %s280, 1
        %s449 = smul.addr %s448, 256
        %s450 = scalar_lea.vmem [#allocation7], %s449
        %s451 = smul.u32 2, %s31
        %s452 = smul.u32 2, %s31
        %s453 = smul.u32 2, %s31
        %v455 = vld [vmem:[%s396] sm:$0xff]
        %v456 = vld [vmem:[%s396 + $0x8] sm:$0xff]
        %v457 = vld [vmem:[%s396 + $0x10] sm:$0xff]
        %v458 = vld [vmem:[%s396 + $0x18] sm:$0xff]
        %v459 = vld [vmem:[%s396 + $0x20] sm:$0xff]
        %v460 = vld [vmem:[%s396 + $0x28] sm:$0xff]
        %v461 = vld [vmem:[%s396 + $0x30] sm:$0xff]
        %v462 = vld [vmem:[%s396 + $0x38] sm:$0xff]
        %v463 = vld [vmem:[%s396 + $0x40] sm:$0xff]
        %v464 = vld [vmem:[%s396 + $0x48] sm:$0xff]
        %v465 = vld [vmem:[%s396 + $0x50] sm:$0xff]
        %v466 = vld [vmem:[%s396 + $0x58] sm:$0xff]
        %v467 = vld [vmem:[%s396 + $0x60] sm:$0xff]
        %v468 = vld [vmem:[%s396 + $0x68] sm:$0xff]
        %v469 = vld [vmem:[%s396 + $0x70] sm:$0xff]
        %v470 = vld [vmem:[%s396 + $0x78] sm:$0xff]
        %v471 = vld [vmem:[%s396 + $0x80] sm:$0xff]
        %v472 = vld [vmem:[%s396 + $0x88] sm:$0xff]
        %v473 = vld [vmem:[%s396 + $0x90] sm:$0xff]
        %v474 = vld [vmem:[%s396 + $0x98] sm:$0xff]
        %v475 = vld [vmem:[%s396 + $0xa0] sm:$0xff]
        %v476 = vld [vmem:[%s396 + $0xa8] sm:$0xff]
        %v477 = vld [vmem:[%s396 + $0xb0] sm:$0xff]
        %v478 = vld [vmem:[%s396 + $0xb8] sm:$0xff]
        %v479 = vld [vmem:[%s396 + $0xc0] sm:$0xff]
        %v480 = vld [vmem:[%s396 + $0xc8] sm:$0xff]
        %v481 = vld [vmem:[%s396 + $0xd0] sm:$0xff]
        %v482 = vld [vmem:[%s396 + $0xd8] sm:$0xff]
        %v483 = vld [vmem:[%s396 + $0xe0] sm:$0xff]
        %v484 = vld [vmem:[%s396 + $0xe8] sm:$0xff]
        %v485 = vld [vmem:[%s396 + $0xf0] sm:$0xff]
        %v486 = vld [vmem:[%s396 + $0xf8] sm:$0xff]
        %v487 = vld [vmem:[%s406] sm:$0xff]
        %v488 = vld [vmem:[%s406 + $0x8] sm:$0xff]
        %v489 = vld [vmem:[%s406 + $0x10] sm:$0xff]
        %v490 = vld [vmem:[%s406 + $0x18] sm:$0xff]
        %v491 = vld [vmem:[%s406 + $0x20] sm:$0xff]
        %v492 = vld [vmem:[%s406 + $0x28] sm:$0xff]
        %v493 = vld [vmem:[%s406 + $0x30] sm:$0xff]
        %v494 = vld [vmem:[%s406 + $0x38] sm:$0xff]
        %v495 = vld [vmem:[%s406 + $0x40] sm:$0xff]
        %v496 = vld [vmem:[%s406 + $0x48] sm:$0xff]
        %v497 = vld [vmem:[%s406 + $0x50] sm:$0xff]
        %v498 = vld [vmem:[%s406 + $0x58] sm:$0xff]
        %v499 = vld [vmem:[%s406 + $0x60] sm:$0xff]
        %v500 = vld [vmem:[%s406 + $0x68] sm:$0xff]
        %v501 = vld [vmem:[%s406 + $0x70] sm:$0xff]
        %v502 = vld [vmem:[%s406 + $0x78] sm:$0xff]
        %v503 = vld [vmem:[%s406 + $0x80] sm:$0xff]
        %v504 = vld [vmem:[%s406 + $0x88] sm:$0xff]
        %v505 = vld [vmem:[%s406 + $0x90] sm:$0xff]
        %v506 = vld [vmem:[%s406 + $0x98] sm:$0xff]
        %v507 = vld [vmem:[%s406 + $0xa0] sm:$0xff]
        %v508 = vld [vmem:[%s406 + $0xa8] sm:$0xff]
        %v509 = vld [vmem:[%s406 + $0xb0] sm:$0xff]
        %v510 = vld [vmem:[%s406 + $0xb8] sm:$0xff]
        %v511 = vld [vmem:[%s406 + $0xc0] sm:$0xff]
        %v512 = vld [vmem:[%s406 + $0xc8] sm:$0xff]
        %v513 = vld [vmem:[%s406 + $0xd0] sm:$0xff]
        %v514 = vld [vmem:[%s406 + $0xd8] sm:$0xff]
        %v515 = vld [vmem:[%s406 + $0xe0] sm:$0xff]
        %v516 = vld [vmem:[%s406 + $0xe8] sm:$0xff]
        %v517 = vld [vmem:[%s406 + $0xf0] sm:$0xff]
        %v518 = vld [vmem:[%s406 + $0xf8] sm:$0xff]
        %v519 = vld [vmem:[%s2] sm:$0xf]
        %v520 = vld [vmem:[%s2 + $0x4] sm:$0xf]
        %v521 = vld [vmem:[%s2 + $0x8] sm:$0xf]
        %v522 = vld [vmem:[%s2 + $0xc] sm:$0xf]
        %v523 = vld [vmem:[%s2 + $0x10] sm:$0xf]
        %v524 = vld [vmem:[%s2 + $0x14] sm:$0xf]
        %v525 = vld [vmem:[%s2 + $0x18] sm:$0xf]
        %v526 = vld [vmem:[%s2 + $0x1c] sm:$0xf]
        %v527 = vld [vmem:[%s2 + $0x20] sm:$0xf]
        %v528 = vld [vmem:[%s2 + $0x24] sm:$0xf]
        %v529 = vld [vmem:[%s2 + $0x28] sm:$0xf]
        %v530 = vld [vmem:[%s2 + $0x2c] sm:$0xf]
        %v531 = vld [vmem:[%s2 + $0x30] sm:$0xf]
        %v532 = vld [vmem:[%s2 + $0x34] sm:$0xf]
        %v533 = vld [vmem:[%s2 + $0x38] sm:$0xf]
        %v534 = vld [vmem:[%s2 + $0x3c] sm:$0xf]
        %v535 = vld [vmem:[%s2 + $0x40] sm:$0xf]
        %v536 = vld [vmem:[%s2 + $0x44] sm:$0xf]
        %v537 = vld [vmem:[%s2 + $0x48] sm:$0xf]
        %v538 = vld [vmem:[%s2 + $0x4c] sm:$0xf]
        %v539 = vld [vmem:[%s2 + $0x50] sm:$0xf]
        %v540 = vld [vmem:[%s2 + $0x54] sm:$0xf]
        %v541 = vld [vmem:[%s2 + $0x58] sm:$0xf]
        %v542 = vld [vmem:[%s2 + $0x5c] sm:$0xf]
        %v543 = vld [vmem:[%s2 + $0x60] sm:$0xf]
        %v544 = vld [vmem:[%s2 + $0x64] sm:$0xf]
        %v545 = vld [vmem:[%s2 + $0x68] sm:$0xf]
        %v546 = vld [vmem:[%s2 + $0x6c] sm:$0xf]
        %v547 = vld [vmem:[%s2 + $0x70] sm:$0xf]
        %v548 = vld [vmem:[%s2 + $0x74] sm:$0xf]
        %v549 = vld [vmem:[%s2 + $0x78] sm:$0xf]
        %v550 = vld [vmem:[%s2 + $0x7c] sm:$0xf]
        %v551 = vld [vmem:[%s3] sm:$0xf]
        %v552 = vld [vmem:[%s3 + $0x4] sm:$0xf]
        %v553 = vld [vmem:[%s3 + $0x8] sm:$0xf]
        %v554 = vld [vmem:[%s3 + $0xc] sm:$0xf]
        %v555 = vld [vmem:[%s3 + $0x10] sm:$0xf]
        %v556 = vld [vmem:[%s3 + $0x14] sm:$0xf]
        %v557 = vld [vmem:[%s3 + $0x18] sm:$0xf]
        %v558 = vld [vmem:[%s3 + $0x1c] sm:$0xf]
        %v559 = vld [vmem:[%s3 + $0x20] sm:$0xf]
        %v560 = vld [vmem:[%s3 + $0x24] sm:$0xf]
        %v561 = vld [vmem:[%s3 + $0x28] sm:$0xf]
        %v562 = vld [vmem:[%s3 + $0x2c] sm:$0xf]
        %v563 = vld [vmem:[%s3 + $0x30] sm:$0xf]
        %v564 = vld [vmem:[%s3 + $0x34] sm:$0xf]
        %v565 = vld [vmem:[%s3 + $0x38] sm:$0xf]
        %v566 = vld [vmem:[%s3 + $0x3c] sm:$0xf]
        %v567 = vld [vmem:[%s4] sm:$0xf]
        %v568 = vld [vmem:[%s4 + $0x4] sm:$0xf]
        %v569 = vld [vmem:[%s4 + $0x8] sm:$0xf]
        %v570 = vld [vmem:[%s4 + $0xc] sm:$0xf]
        %v571 = vld [vmem:[%s4 + $0x10] sm:$0xf]
        %v572 = vld [vmem:[%s4 + $0x14] sm:$0xf]
        %v573 = vld [vmem:[%s4 + $0x18] sm:$0xf]
        %v574 = vld [vmem:[%s4 + $0x1c] sm:$0xf]
        %v575 = vld [vmem:[%s5] sm:$0xf]
        %v576 = vld [vmem:[%s5 + $0x4] sm:$0xf]
        %v577 = vld [vmem:[%s5 + $0x8] sm:$0xf]
        %v578 = vld [vmem:[%s5 + $0xc] sm:$0xf]
        %v579 = vld [vmem:[%s5 + $0x10] sm:$0xf]
        %v580 = vld [vmem:[%s5 + $0x14] sm:$0xf]
        %v581 = vld [vmem:[%s5 + $0x18] sm:$0xf]
        %v582 = vld [vmem:[%s5 + $0x1c] sm:$0xf]
        %v583 = vld [vmem:[%s5 + $0x20] sm:$0xf]
        %v584 = vld [vmem:[%s5 + $0x24] sm:$0xf]
        %v585 = vld [vmem:[%s5 + $0x28] sm:$0xf]
        %v586 = vld [vmem:[%s5 + $0x2c] sm:$0xf]
        %v587 = vld [vmem:[%s5 + $0x30] sm:$0xf]
        %v588 = vld [vmem:[%s5 + $0x34] sm:$0xf]
        %v589 = vld [vmem:[%s5 + $0x38] sm:$0xf]
        %v590 = vld [vmem:[%s5 + $0x3c] sm:$0xf]
        %v591 = vpack.c.bf16 %v487, %v487
        %v592 = vpack.c.bf16 %v488, %v488
        %v593 = vpack.c.bf16 %v489, %v489
        %v594 = vpack.c.bf16 %v490, %v490
        %v595 = vpack.c.bf16 %v491, %v491
        %v596 = vpack.c.bf16 %v492, %v492
        %v597 = vpack.c.bf16 %v493, %v493
        %v598 = vpack.c.bf16 %v494, %v494
        %v599 = vpack.c.bf16 %v495, %v495
        %v600 = vpack.c.bf16 %v496, %v496
        %v601 = vpack.c.bf16 %v497, %v497
        %v602 = vpack.c.bf16 %v498, %v498
        %v603 = vpack.c.bf16 %v499, %v499
        %v604 = vpack.c.bf16 %v500, %v500
        %v605 = vpack.c.bf16 %v501, %v501
        %v606 = vpack.c.bf16 %v502, %v502
        %v607 = vpack.c.bf16 %v503, %v503
        %v608 = vpack.c.bf16 %v504, %v504
        %v609 = vpack.c.bf16 %v505, %v505
        %v610 = vpack.c.bf16 %v506, %v506
        %v611 = vpack.c.bf16 %v507, %v507
        %v612 = vpack.c.bf16 %v508, %v508
        %v613 = vpack.c.bf16 %v509, %v509
        %v614 = vpack.c.bf16 %v510, %v510
        %v615 = vpack.c.bf16 %v511, %v511
        %v616 = vpack.c.bf16 %v512, %v512
        %v617 = vpack.c.bf16 %v513, %v513
        %v618 = vpack.c.bf16 %v514, %v514
        %v619 = vpack.c.bf16 %v515, %v515
        %v620 = vpack.c.bf16 %v516, %v516
        %v621 = vpack.c.bf16 %v517, %v517
        %v622 = vpack.c.bf16 %v518, %v518
        %v655 = vunpack.c.l.b16 %v519
        %v656 = vunpack.c.l.b16 %v520
        %v657 = vunpack.c.l.b16 %v521
        %v658 = vunpack.c.l.b16 %v522
        %v659 = vunpack.c.l.b16 %v523
        %v660 = vunpack.c.l.b16 %v524
        %v661 = vunpack.c.l.b16 %v525
        %v662 = vunpack.c.l.b16 %v526
        %v663 = vunpack.c.l.b16 %v527
        %v664 = vunpack.c.l.b16 %v528
        %v665 = vunpack.c.l.b16 %v529
        %v666 = vunpack.c.l.b16 %v530
        %v667 = vunpack.c.l.b16 %v531
        %v668 = vunpack.c.l.b16 %v532
        %v669 = vunpack.c.l.b16 %v533
        %v670 = vunpack.c.l.b16 %v534
        %v671 = vunpack.c.l.b16 %v535
        %v672 = vunpack.c.l.b16 %v536
        %v673 = vunpack.c.l.b16 %v537
        %v674 = vunpack.c.l.b16 %v538
        %v675 = vunpack.c.l.b16 %v539
        %v676 = vunpack.c.l.b16 %v540
        %v677 = vunpack.c.l.b16 %v541
        %v678 = vunpack.c.l.b16 %v542
        %v679 = vunpack.c.l.b16 %v543
        %v680 = vunpack.c.l.b16 %v544
        %v681 = vunpack.c.l.b16 %v545
        %v682 = vunpack.c.l.b16 %v546
        %v683 = vunpack.c.l.b16 %v547
        %v684 = vunpack.c.l.b16 %v548
        %v685 = vunpack.c.l.b16 %v549
        %v686 = vunpack.c.l.b16 %v550
        %v687 = vpack.c.b16 %v656, %v655
        %v688 = vpack.c.b16 %v658, %v657
        %v689 = vpack.c.b16 %v660, %v659
        %v690 = vpack.c.b16 %v662, %v661
        %v691 = vpack.c.b16 %v664, %v663
        %v692 = vpack.c.b16 %v666, %v665
        %v693 = vpack.c.b16 %v668, %v667
        %v694 = vpack.c.b16 %v670, %v669
        %v695 = vpack.c.b16 %v672, %v671
        %v696 = vpack.c.b16 %v674, %v673
        %v697 = vpack.c.b16 %v676, %v675
        %v698 = vpack.c.b16 %v678, %v677
        %v699 = vpack.c.b16 %v680, %v679
        %v700 = vpack.c.b16 %v682, %v681
        %v701 = vpack.c.b16 %v684, %v683
        %v702 = vpack.c.b16 %v686, %v685
        %v735 = vunpack.c.l.b16 %v591
        %v736 = vunpack.c.l.b16 %v592
        %v737 = vunpack.c.l.b16 %v593
        %v738 = vunpack.c.l.b16 %v594
        %v739 = vunpack.c.l.b16 %v595
        %v740 = vunpack.c.l.b16 %v596
        %v741 = vunpack.c.l.b16 %v597
        %v742 = vunpack.c.l.b16 %v598
        %v743 = vunpack.c.l.b16 %v599
        %v744 = vunpack.c.l.b16 %v600
        %v745 = vunpack.c.l.b16 %v601
        %v746 = vunpack.c.l.b16 %v602
        %v747 = vunpack.c.l.b16 %v603
        %v748 = vunpack.c.l.b16 %v604
        %v749 = vunpack.c.l.b16 %v605
        %v750 = vunpack.c.l.b16 %v606
        %v751 = vpack.c.b16 %v736, %v735
        %v752 = vpack.c.b16 %v738, %v737
        %v753 = vpack.c.b16 %v740, %v739
        %v754 = vpack.c.b16 %v742, %v741
        %v755 = vpack.c.b16 %v744, %v743
        %v756 = vpack.c.b16 %v746, %v745
        %v757 = vpack.c.b16 %v748, %v747
        %v758 = vpack.c.b16 %v750, %v749
        %767 = vmatpush.bf16.msra.mxu0 %v758
        %768 = vmatpush.bf16.msra.mxu0 %v757
        %769 = vmatpush.bf16.msra.mxu0 %v756
        %770 = vmatpush.bf16.msra.mxu0 %v755
        %771 = vmatpush.bf16.msra.mxu0 %v754
        %772 = vmatpush.bf16.msra.mxu0 %v753
        %773 = vmatpush.bf16.msra.mxu0 %v752
        %774 = vmatpush.bf16.msra.mxu0 %v751
        %775 = vmatmul.bf16.gmra.mxu0 %v687
        %v776 = vpop.f32.mrf.mxu0
        %v777 = vadd.f32 0.0, %v776
        %v778 = vpop.f32.mrf.mxu0
        %v779 = vadd.f32 0.0, %v778
        %780 = vmatmul.bf16.gmra.mxu0 %v688
        %v781 = vpop.f32.mrf.mxu0
        %v782 = vadd.f32 0.0, %v781
        %v783 = vpop.f32.mrf.mxu0
        %v784 = vadd.f32 0.0, %v783
        %785 = vmatmul.bf16.gmra.mxu0 %v689
        %v786 = vpop.f32.mrf.mxu0
        %v787 = vadd.f32 0.0, %v786
        %v788 = vpop.f32.mrf.mxu0
        %v789 = vadd.f32 0.0, %v788
        %790 = vmatmul.bf16.gmra.mxu0 %v690
        %v791 = vpop.f32.mrf.mxu0
        %v792 = vadd.f32 0.0, %v791
        %v793 = vpop.f32.mrf.mxu0
        %v794 = vadd.f32 0.0, %v793
        %795 = vmatmul.bf16.gmra.mxu0 %v691
        %v796 = vpop.f32.mrf.mxu0
        %v797 = vadd.f32 0.0, %v796
        %v798 = vpop.f32.mrf.mxu0
        %v799 = vadd.f32 0.0, %v798
        %800 = vmatmul.bf16.gmra.mxu0 %v692
        %v801 = vpop.f32.mrf.mxu0
        %v802 = vadd.f32 0.0, %v801
        %v803 = vpop.f32.mrf.mxu0
        %v804 = vadd.f32 0.0, %v803
        %805 = vmatmul.bf16.gmra.mxu0 %v693
        %v806 = vpop.f32.mrf.mxu0
        %v807 = vadd.f32 0.0, %v806
        %v808 = vpop.f32.mrf.mxu0
        %v809 = vadd.f32 0.0, %v808
        %810 = vmatmul.bf16.gmra.mxu0 %v694
        %v811 = vpop.f32.mrf.mxu0
        %v812 = vadd.f32 0.0, %v811
        %v813 = vpop.f32.mrf.mxu0
        %v814 = vadd.f32 0.0, %v813
        %815 = vmatmul.bf16.gmra.mxu0 %v695
        %v816 = vpop.f32.mrf.mxu0
        %v817 = vadd.f32 0.0, %v816
        %v818 = vpop.f32.mrf.mxu0
        %v819 = vadd.f32 0.0, %v818
        %820 = vmatmul.bf16.gmra.mxu0 %v696
        %v821 = vpop.f32.mrf.mxu0
        %v822 = vadd.f32 0.0, %v821
        %v823 = vpop.f32.mrf.mxu0
        %v824 = vadd.f32 0.0, %v823
        %825 = vmatmul.bf16.gmra.mxu0 %v697
        %v826 = vpop.f32.mrf.mxu0
        %v827 = vadd.f32 0.0, %v826
        %v828 = vpop.f32.mrf.mxu0
        %v829 = vadd.f32 0.0, %v828
        %830 = vmatmul.bf16.gmra.mxu0 %v698
        %v831 = vpop.f32.mrf.mxu0
        %v832 = vadd.f32 0.0, %v831
        %v833 = vpop.f32.mrf.mxu0
        %v834 = vadd.f32 0.0, %v833
        %835 = vmatmul.bf16.gmra.mxu0 %v699
        %v836 = vpop.f32.mrf.mxu0
        %v837 = vadd.f32 0.0, %v836
        %v838 = vpop.f32.mrf.mxu0
        %v839 = vadd.f32 0.0, %v838
        %840 = vmatmul.bf16.gmra.mxu0 %v700
        %v841 = vpop.f32.mrf.mxu0
        %v842 = vadd.f32 0.0, %v841
        %v843 = vpop.f32.mrf.mxu0
        %v844 = vadd.f32 0.0, %v843
        %845 = vmatmul.bf16.gmra.mxu0 %v701
        %v846 = vpop.f32.mrf.mxu0
        %v847 = vadd.f32 0.0, %v846
        %v848 = vpop.f32.mrf.mxu0
        %v849 = vadd.f32 0.0, %v848
        %850 = vmatmul.bf16.gmra.mxu0 %v702
        %v851 = vpop.f32.mrf.mxu0
        %v852 = vadd.f32 0.0, %v851
        %v853 = vpop.f32.mrf.mxu0
        %v854 = vadd.f32 0.0, %v853
        %855 = vdwg.mxu0
        %v872 = vunpack.c.l.b16 %v607
        %v873 = vunpack.c.l.b16 %v608
        %v874 = vunpack.c.l.b16 %v609
        %v875 = vunpack.c.l.b16 %v610
        %v876 = vunpack.c.l.b16 %v611
        %v877 = vunpack.c.l.b16 %v612
        %v878 = vunpack.c.l.b16 %v613
        %v879 = vunpack.c.l.b16 %v614
        %v880 = vunpack.c.l.b16 %v615
        %v881 = vunpack.c.l.b16 %v616
        %v882 = vunpack.c.l.b16 %v617
        %v883 = vunpack.c.l.b16 %v618
        %v884 = vunpack.c.l.b16 %v619
        %v885 = vunpack.c.l.b16 %v620
        %v886 = vunpack.c.l.b16 %v621
        %v887 = vunpack.c.l.b16 %v622
        %v888 = vpack.c.b16 %v873, %v872
        %v889 = vpack.c.b16 %v875, %v874
        %v890 = vpack.c.b16 %v877, %v876
        %v891 = vpack.c.b16 %v879, %v878
        %v892 = vpack.c.b16 %v881, %v880
        %v893 = vpack.c.b16 %v883, %v882
        %v894 = vpack.c.b16 %v885, %v884
        %v895 = vpack.c.b16 %v887, %v886
        %904 = vmatpush.bf16.msra.mxu0 %v895
        %905 = vmatpush.bf16.msra.mxu0 %v894
        %906 = vmatpush.bf16.msra.mxu0 %v893
        %907 = vmatpush.bf16.msra.mxu0 %v892
        %908 = vmatpush.bf16.msra.mxu0 %v891
        %909 = vmatpush.bf16.msra.mxu0 %v890
        %910 = vmatpush.bf16.msra.mxu0 %v889
        %911 = vmatpush.bf16.msra.mxu0 %v888
        %912 = vmatmul.bf16.gmra.mxu0 %v687
        %v913 = vpop.f32.mrf.mxu0
        %v914 = vadd.f32 0.0, %v913
        %v915 = vpop.f32.mrf.mxu0
        %v916 = vadd.f32 0.0, %v915
        %917 = vmatmul.bf16.gmra.mxu0 %v688
        %v918 = vpop.f32.mrf.mxu0
        %v919 = vadd.f32 0.0, %v918
        %v920 = vpop.f32.mrf.mxu0
        %v921 = vadd.f32 0.0, %v920
        %922 = vmatmul.bf16.gmra.mxu0 %v689
        %v923 = vpop.f32.mrf.mxu0
        %v924 = vadd.f32 0.0, %v923
        %v925 = vpop.f32.mrf.mxu0
        %v926 = vadd.f32 0.0, %v925
        %927 = vmatmul.bf16.gmra.mxu0 %v690
        %v928 = vpop.f32.mrf.mxu0
        %v929 = vadd.f32 0.0, %v928
        %v930 = vpop.f32.mrf.mxu0
        %v931 = vadd.f32 0.0, %v930
        %932 = vmatmul.bf16.gmra.mxu0 %v691
        %v933 = vpop.f32.mrf.mxu0
        %v934 = vadd.f32 0.0, %v933
        %v935 = vpop.f32.mrf.mxu0
        %v936 = vadd.f32 0.0, %v935
        %937 = vmatmul.bf16.gmra.mxu0 %v692
        %v938 = vpop.f32.mrf.mxu0
        %v939 = vadd.f32 0.0, %v938
        %v940 = vpop.f32.mrf.mxu0
        %v941 = vadd.f32 0.0, %v940
        %942 = vmatmul.bf16.gmra.mxu0 %v693
        %v943 = vpop.f32.mrf.mxu0
        %v944 = vadd.f32 0.0, %v943
        %v945 = vpop.f32.mrf.mxu0
        %v946 = vadd.f32 0.0, %v945
        %947 = vmatmul.bf16.gmra.mxu0 %v694
        %v948 = vpop.f32.mrf.mxu0
        %v949 = vadd.f32 0.0, %v948
        %v950 = vpop.f32.mrf.mxu0
        %v951 = vadd.f32 0.0, %v950
        %952 = vmatmul.bf16.gmra.mxu0 %v695
        %v953 = vpop.f32.mrf.mxu0
        %v954 = vadd.f32 0.0, %v953
        %v955 = vpop.f32.mrf.mxu0
        %v956 = vadd.f32 0.0, %v955
        %957 = vmatmul.bf16.gmra.mxu0 %v696
        %v958 = vpop.f32.mrf.mxu0
        %v959 = vadd.f32 0.0, %v958
        %v960 = vpop.f32.mrf.mxu0
        %v961 = vadd.f32 0.0, %v960
        %962 = vmatmul.bf16.gmra.mxu0 %v697
        %v963 = vpop.f32.mrf.mxu0
        %v964 = vadd.f32 0.0, %v963
        %v965 = vpop.f32.mrf.mxu0
        %v966 = vadd.f32 0.0, %v965
        %967 = vmatmul.bf16.gmra.mxu0 %v698
        %v968 = vpop.f32.mrf.mxu0
        %v969 = vadd.f32 0.0, %v968
        %v970 = vpop.f32.mrf.mxu0
        %v971 = vadd.f32 0.0, %v970
        %972 = vmatmul.bf16.gmra.mxu0 %v699
        %v973 = vpop.f32.mrf.mxu0
        %v974 = vadd.f32 0.0, %v973
        %v975 = vpop.f32.mrf.mxu0
        %v976 = vadd.f32 0.0, %v975
        %977 = vmatmul.bf16.gmra.mxu0 %v700
        %v978 = vpop.f32.mrf.mxu0
        %v979 = vadd.f32 0.0, %v978
        %v980 = vpop.f32.mrf.mxu0
        %v981 = vadd.f32 0.0, %v980
        %982 = vmatmul.bf16.gmra.mxu0 %v701
        %v983 = vpop.f32.mrf.mxu0
        %v984 = vadd.f32 0.0, %v983
        %v985 = vpop.f32.mrf.mxu0
        %v986 = vadd.f32 0.0, %v985
        %987 = vmatmul.bf16.gmra.mxu0 %v702
        %v988 = vpop.f32.mrf.mxu0
        %v989 = vadd.f32 0.0, %v988
        %v990 = vpop.f32.mrf.mxu0
        %v991 = vadd.f32 0.0, %v990
        %992 = vdwg.mxu0
        %v993 = vld [vmem:[%s6] sm:$0xff]
        %v994 = vld [vmem:[%s6 + $0x8] sm:$0xff]
        %v995 = vld [vmem:[%s6 + $0x10] sm:$0xff]
        %v996 = vld [vmem:[%s6 + $0x18] sm:$0xff]
        %v997 = vld [vmem:[%s6 + $0x20] sm:$0xff]
        %v998 = vld [vmem:[%s6 + $0x28] sm:$0xff]
        %v999 = vld [vmem:[%s6 + $0x30] sm:$0xff]
        %v1000 = vld [vmem:[%s6 + $0x38] sm:$0xff]
        %v1001 = vld [vmem:[%s6 + $0x40] sm:$0xff]
        %v1002 = vld [vmem:[%s6 + $0x48] sm:$0xff]
        %v1003 = vld [vmem:[%s6 + $0x50] sm:$0xff]
        %v1004 = vld [vmem:[%s6 + $0x58] sm:$0xff]
        %v1005 = vld [vmem:[%s6 + $0x60] sm:$0xff]
        %v1006 = vld [vmem:[%s6 + $0x68] sm:$0xff]
        %v1007 = vld [vmem:[%s6 + $0x70] sm:$0xff]
        %v1008 = vld [vmem:[%s6 + $0x78] sm:$0xff]
        %s1009 = scalar_lea.vmem %s6, 128
        %v1010 = vld [vmem:[%s1009] sm:$0xff]
        %v1011 = vld [vmem:[%s1009 + $0x8] sm:$0xff]
        %v1012 = vld [vmem:[%s1009 + $0x10] sm:$0xff]
        %v1013 = vld [vmem:[%s1009 + $0x18] sm:$0xff]
        %v1014 = vld [vmem:[%s1009 + $0x20] sm:$0xff]
        %v1015 = vld [vmem:[%s1009 + $0x28] sm:$0xff]
        %v1016 = vld [vmem:[%s1009 + $0x30] sm:$0xff]
        %v1017 = vld [vmem:[%s1009 + $0x38] sm:$0xff]
        %v1018 = vld [vmem:[%s1009 + $0x40] sm:$0xff]
        %v1019 = vld [vmem:[%s1009 + $0x48] sm:$0xff]
        %v1020 = vld [vmem:[%s1009 + $0x50] sm:$0xff]
        %v1021 = vld [vmem:[%s1009 + $0x58] sm:$0xff]
        %v1022 = vld [vmem:[%s1009 + $0x60] sm:$0xff]
        %v1023 = vld [vmem:[%s1009 + $0x68] sm:$0xff]
        %v1024 = vld [vmem:[%s1009 + $0x70] sm:$0xff]
        %v1025 = vld [vmem:[%s1009 + $0x78] sm:$0xff]
        %1026 = vadd.xlane.f32.xlu0 %v777
        %v1027 = vpop.xlane.xlu0 %1026
        %1028 = vadd.xlane.f32.xlu0 %v779
        %v1029 = vpop.xlane.xlu0 %1028
        %1030 = vadd.xlane.f32.xlu0 %v782
        %v1031 = vpop.xlane.xlu0 %1030
        %1032 = vadd.xlane.f32.xlu0 %v784
        %v1033 = vpop.xlane.xlu0 %1032
        %1034 = vadd.xlane.f32.xlu0 %v787
        %v1035 = vpop.xlane.xlu0 %1034
        %1036 = vadd.xlane.f32.xlu0 %v789
        %v1037 = vpop.xlane.xlu0 %1036
        %1038 = vadd.xlane.f32.xlu0 %v792
        %v1039 = vpop.xlane.xlu0 %1038
        %1040 = vadd.xlane.f32.xlu0 %v794
        %v1041 = vpop.xlane.xlu0 %1040
        %1042 = vadd.xlane.f32.xlu0 %v797
        %v1043 = vpop.xlane.xlu0 %1042
        %1044 = vadd.xlane.f32.xlu0 %v799
        %v1045 = vpop.xlane.xlu0 %1044
        %1046 = vadd.xlane.f32.xlu0 %v802
        %v1047 = vpop.xlane.xlu0 %1046
        %1048 = vadd.xlane.f32.xlu0 %v804
        %v1049 = vpop.xlane.xlu0 %1048
        %1050 = vadd.xlane.f32.xlu0 %v807
        %v1051 = vpop.xlane.xlu0 %1050
        %1052 = vadd.xlane.f32.xlu0 %v809
        %v1053 = vpop.xlane.xlu0 %1052
        %1054 = vadd.xlane.f32.xlu0 %v812
        %v1055 = vpop.xlane.xlu0 %1054
        %1056 = vadd.xlane.f32.xlu0 %v814
        %v1057 = vpop.xlane.xlu0 %1056
        %1058 = vadd.xlane.f32.xlu0 %v914
        %v1059 = vpop.xlane.xlu0 %1058
        %1060 = vadd.xlane.f32.xlu0 %v916
        %v1061 = vpop.xlane.xlu0 %1060
        %1062 = vadd.xlane.f32.xlu0 %v919
        %v1063 = vpop.xlane.xlu0 %1062
        %1064 = vadd.xlane.f32.xlu0 %v921
        %v1065 = vpop.xlane.xlu0 %1064
        %1066 = vadd.xlane.f32.xlu0 %v924
        %v1067 = vpop.xlane.xlu0 %1066
        %1068 = vadd.xlane.f32.xlu0 %v926
        %v1069 = vpop.xlane.xlu0 %1068
        %1070 = vadd.xlane.f32.xlu0 %v929
        %v1071 = vpop.xlane.xlu0 %1070
        %1072 = vadd.xlane.f32.xlu0 %v931
        %v1073 = vpop.xlane.xlu0 %1072
        %1074 = vadd.xlane.f32.xlu0 %v934
        %v1075 = vpop.xlane.xlu0 %1074
        %1076 = vadd.xlane.f32.xlu0 %v936
        %v1077 = vpop.xlane.xlu0 %1076
        %1078 = vadd.xlane.f32.xlu0 %v939
        %v1079 = vpop.xlane.xlu0 %1078
        %1080 = vadd.xlane.f32.xlu0 %v941
        %v1081 = vpop.xlane.xlu0 %1080
        %1082 = vadd.xlane.f32.xlu0 %v944
        %v1083 = vpop.xlane.xlu0 %1082
        %1084 = vadd.xlane.f32.xlu0 %v946
        %v1085 = vpop.xlane.xlu0 %1084
        %1086 = vadd.xlane.f32.xlu0 %v949
        %v1087 = vpop.xlane.xlu0 %1086
        %1088 = vadd.xlane.f32.xlu0 %v951
        %v1089 = vpop.xlane.xlu0 %1088
        %v1090 = vadd.f32 %v1027, %v1029
        %v1091 = vadd.f32 %v1090, %v1031
        %v1092 = vadd.f32 %v1091, %v1033
        %v1093 = vadd.f32 %v1092, %v1035
        %v1094 = vadd.f32 %v1093, %v1037
        %v1095 = vadd.f32 %v1094, %v1039
        %v1096 = vadd.f32 %v1095, %v1041
        %v1097 = vadd.f32 %v1096, %v1043
        %v1098 = vadd.f32 %v1097, %v1045
        %v1099 = vadd.f32 %v1098, %v1047
        %v1100 = vadd.f32 %v1099, %v1049
        %v1101 = vadd.f32 %v1100, %v1051
        %v1102 = vadd.f32 %v1101, %v1053
        %v1103 = vadd.f32 %v1102, %v1055
        %v1104 = vadd.f32 %v1103, %v1057
        %v1105 = vrot.slane %v1104, 4
        %v1106 = vadd.f32 %v1104, %v1105
        %v1107 = vrot.slane %v1106, 2
        %v1108 = vadd.f32 %v1106, %v1107
        %v1109 = vrot.slane %v1108, 1
        %v1110 = vadd.f32 %v1108, %v1109
        %v1111 = vadd.f32 %v1059, %v1061
        %v1112 = vadd.f32 %v1111, %v1063
        %v1113 = vadd.f32 %v1112, %v1065
        %v1114 = vadd.f32 %v1113, %v1067
        %v1115 = vadd.f32 %v1114, %v1069
        %v1116 = vadd.f32 %v1115, %v1071
        %v1117 = vadd.f32 %v1116, %v1073
        %v1118 = vadd.f32 %v1117, %v1075
        %v1119 = vadd.f32 %v1118, %v1077
        %v1120 = vadd.f32 %v1119, %v1079
        %v1121 = vadd.f32 %v1120, %v1081
        %v1122 = vadd.f32 %v1121, %v1083
        %v1123 = vadd.f32 %v1122, %v1085
        %v1124 = vadd.f32 %v1123, %v1087
        %v1125 = vadd.f32 %v1124, %v1089
        %v1126 = vrot.slane %v1125, 4
        %v1127 = vadd.f32 %v1125, %v1126
        %v1128 = vrot.slane %v1127, 2
        %v1129 = vadd.f32 %v1127, %v1128
        %v1130 = vrot.slane %v1129, 1
        %v1131 = vadd.f32 %v1129, %v1130
        %v1132 = vmul.f32 %v777, %v777
        %v1133 = vmul.f32 %v779, %v779
        %v1134 = vmul.f32 %v782, %v782
        %v1135 = vmul.f32 %v784, %v784
        %v1136 = vmul.f32 %v787, %v787
        %v1137 = vmul.f32 %v789, %v789
        %v1138 = vmul.f32 %v792, %v792
        %v1139 = vmul.f32 %v794, %v794
        %v1140 = vmul.f32 %v797, %v797
        %v1141 = vmul.f32 %v799, %v799
        %v1142 = vmul.f32 %v802, %v802
        %v1143 = vmul.f32 %v804, %v804
        %v1144 = vmul.f32 %v807, %v807
        %v1145 = vmul.f32 %v809, %v809
        %v1146 = vmul.f32 %v812, %v812
        %v1147 = vmul.f32 %v814, %v814
        %v1148 = vmul.f32 %v914, %v914
        %v1149 = vmul.f32 %v916, %v916
        %v1150 = vmul.f32 %v919, %v919
        %v1151 = vmul.f32 %v921, %v921
        %v1152 = vmul.f32 %v924, %v924
        %v1153 = vmul.f32 %v926, %v926
        %v1154 = vmul.f32 %v929, %v929
        %v1155 = vmul.f32 %v931, %v931
        %v1156 = vmul.f32 %v934, %v934
        %v1157 = vmul.f32 %v936, %v936
        %v1158 = vmul.f32 %v939, %v939
        %v1159 = vmul.f32 %v941, %v941
        %v1160 = vmul.f32 %v944, %v944
        %v1161 = vmul.f32 %v946, %v946
        %v1162 = vmul.f32 %v949, %v949
        %v1163 = vmul.f32 %v951, %v951
        %1164 = vadd.xlane.f32.xlu0 %v1132
        %v1165 = vpop.xlane.xlu0 %1164
        %1166 = vadd.xlane.f32.xlu0 %v1133
        %v1167 = vpop.xlane.xlu0 %1166
        %1168 = vadd.xlane.f32.xlu0 %v1134
        %v1169 = vpop.xlane.xlu0 %1168
        %1170 = vadd.xlane.f32.xlu0 %v1135
        %v1171 = vpop.xlane.xlu0 %1170
        %1172 = vadd.xlane.f32.xlu0 %v1136
        %v1173 = vpop.xlane.xlu0 %1172
        %1174 = vadd.xlane.f32.xlu0 %v1137
        %v1175 = vpop.xlane.xlu0 %1174
        %1176 = vadd.xlane.f32.xlu0 %v1138
        %v1177 = vpop.xlane.xlu0 %1176
        %1178 = vadd.xlane.f32.xlu0 %v1139
        %v1179 = vpop.xlane.xlu0 %1178
        %1180 = vadd.xlane.f32.xlu0 %v1140
        %v1181 = vpop.xlane.xlu0 %1180
        %1182 = vadd.xlane.f32.xlu0 %v1141
        %v1183 = vpop.xlane.xlu0 %1182
        %1184 = vadd.xlane.f32.xlu0 %v1142
        %v1185 = vpop.xlane.xlu0 %1184
        %1186 = vadd.xlane.f32.xlu0 %v1143
        %v1187 = vpop.xlane.xlu0 %1186
        %1188 = vadd.xlane.f32.xlu0 %v1144
        %v1189 = vpop.xlane.xlu0 %1188
        %1190 = vadd.xlane.f32.xlu0 %v1145
        %v1191 = vpop.xlane.xlu0 %1190
        %1192 = vadd.xlane.f32.xlu0 %v1146
        %v1193 = vpop.xlane.xlu0 %1192
        %1194 = vadd.xlane.f32.xlu0 %v1147
        %v1195 = vpop.xlane.xlu0 %1194
        %1196 = vadd.xlane.f32.xlu0 %v1148
        %v1197 = vpop.xlane.xlu0 %1196
        %1198 = vadd.xlane.f32.xlu0 %v1149
        %v1199 = vpop.xlane.xlu0 %1198
        %1200 = vadd.xlane.f32.xlu0 %v1150
        %v1201 = vpop.xlane.xlu0 %1200
        %1202 = vadd.xlane.f32.xlu0 %v1151
        %v1203 = vpop.xlane.xlu0 %1202
        %1204 = vadd.xlane.f32.xlu0 %v1152
        %v1205 = vpop.xlane.xlu0 %1204
        %1206 = vadd.xlane.f32.xlu0 %v1153
        %v1207 = vpop.xlane.xlu0 %1206
        %1208 = vadd.xlane.f32.xlu0 %v1154
        %v1209 = vpop.xlane.xlu0 %1208
        %1210 = vadd.xlane.f32.xlu0 %v1155
        %v1211 = vpop.xlane.xlu0 %1210
        %1212 = vadd.xlane.f32.xlu0 %v1156
        %v1213 = vpop.xlane.xlu0 %1212
        %1214 = vadd.xlane.f32.xlu0 %v1157
        %v1215 = vpop.xlane.xlu0 %1214
        %1216 = vadd.xlane.f32.xlu0 %v1158
        %v1217 = vpop.xlane.xlu0 %1216
        %1218 = vadd.xlane.f32.xlu0 %v1159
        %v1219 = vpop.xlane.xlu0 %1218
        %1220 = vadd.xlane.f32.xlu0 %v1160
        %v1221 = vpop.xlane.xlu0 %1220
        %1222 = vadd.xlane.f32.xlu0 %v1161
        %v1223 = vpop.xlane.xlu0 %1222
        %1224 = vadd.xlane.f32.xlu0 %v1162
        %v1225 = vpop.xlane.xlu0 %1224
        %1226 = vadd.xlane.f32.xlu0 %v1163
        %v1227 = vpop.xlane.xlu0 %1226
        %v1228 = vadd.f32 %v1165, %v1167
        %v1229 = vadd.f32 %v1228, %v1169
        %v1230 = vadd.f32 %v1229, %v1171
        %v1231 = vadd.f32 %v1230, %v1173
        %v1232 = vadd.f32 %v1231, %v1175
        %v1233 = vadd.f32 %v1232, %v1177
        %v1234 = vadd.f32 %v1233, %v1179
        %v1235 = vadd.f32 %v1234, %v1181
        %v1236 = vadd.f32 %v1235, %v1183
        %v1237 = vadd.f32 %v1236, %v1185
        %v1238 = vadd.f32 %v1237, %v1187
        %v1239 = vadd.f32 %v1238, %v1189
        %v1240 = vadd.f32 %v1239, %v1191
        %v1241 = vadd.f32 %v1240, %v1193
        %v1242 = vadd.f32 %v1241, %v1195
        %v1243 = vrot.slane %v1242, 4
        %v1244 = vadd.f32 %v1242, %v1243
        %v1245 = vrot.slane %v1244, 2
        %v1246 = vadd.f32 %v1244, %v1245
        %v1247 = vrot.slane %v1246, 1
        %v1248 = vadd.f32 %v1246, %v1247
        %v1249 = vadd.f32 %v1197, %v1199
        %v1250 = vadd.f32 %v1249, %v1201
        %v1251 = vadd.f32 %v1250, %v1203
        %v1252 = vadd.f32 %v1251, %v1205
        %v1253 = vadd.f32 %v1252, %v1207
        %v1254 = vadd.f32 %v1253, %v1209
        %v1255 = vadd.f32 %v1254, %v1211
        %v1256 = vadd.f32 %v1255, %v1213
        %v1257 = vadd.f32 %v1256, %v1215
        %v1258 = vadd.f32 %v1257, %v1217
        %v1259 = vadd.f32 %v1258, %v1219
        %v1260 = vadd.f32 %v1259, %v1221
        %v1261 = vadd.f32 %v1260, %v1223
        %v1262 = vadd.f32 %v1261, %v1225
        %v1263 = vadd.f32 %v1262, %v1227
        %v1264 = vrot.slane %v1263, 4
        %v1265 = vadd.f32 %v1263, %v1264
        %v1266 = vrot.slane %v1265, 2
        %v1267 = vadd.f32 %v1265, %v1266
        %v1268 = vrot.slane %v1267, 1
        %v1269 = vadd.f32 %v1267, %v1268
        %v1270 = vmul.f32 %v1110, 6.1035156e-05
        %v1271 = vmul.f32 %v1131, 6.1035156e-05
        %v1272 = vmul.f32 %v1248, 6.1035156e-05
        %v1273 = vmul.f32 %v1269, 6.1035156e-05
        %v1274 = vmul.f32 %v1270, %v1270
        %v1275 = vmul.f32 %v1271, %v1271
        %v1276 = vsub.f32 %v1272, %v1274
        %v1277 = vsub.f32 %v1273, %v1275
        %v1278 = vadd.f32 %v1276, 1e-05
        %v1279 = vadd.f32 %v1277, 1e-05
        %v1280 = vrsqrt.pop %v1278
        %v1281 = vmul.f32 %v1280, %v1278
        %v1282 = vmul.f32 %v1281, %v1280
        %v1283 = vmul.f32 0.5, %v1282
        %v1284 = vsub.f32 1.5, %v1283
        %v1285 = vmul.f32 %v1280, %v1284
        %vm1286 = vweird.f32 %v1278
        %vm1287 = vweird.f32 %v1280
        %vm1288 = vmor %vm1286, %vm1287
        %v1289 = vsel %vm1288, %v1280, %v1285
        %v1290 = vrsqrt.pop %v1279
        %v1291 = vmul.f32 %v1290, %v1279
        %v1292 = vmul.f32 %v1291, %v1290
        %v1293 = vmul.f32 0.5, %v1292
        %v1294 = vsub.f32 1.5, %v1293
        %v1295 = vmul.f32 %v1290, %v1294
        %vm1296 = vweird.f32 %v1279
        %vm1297 = vweird.f32 %v1290
        %vm1298 = vmor %vm1296, %vm1297
        %v1299 = vsel %vm1298, %v1290, %v1295
        %v1300 = vmul.f32 %v1289, %v993
        %v1301 = vmul.f32 %v1289, %v994
        %v1302 = vmul.f32 %v1289, %v995
        %v1303 = vmul.f32 %v1289, %v996
        %v1304 = vmul.f32 %v1289, %v997
        %v1305 = vmul.f32 %v1289, %v998
        %v1306 = vmul.f32 %v1289, %v999
        %v1307 = vmul.f32 %v1289, %v1000
        %v1308 = vmul.f32 %v1289, %v1001
        %v1309 = vmul.f32 %v1289, %v1002
        %v1310 = vmul.f32 %v1289, %v1003
        %v1311 = vmul.f32 %v1289, %v1004
        %v1312 = vmul.f32 %v1289, %v1005
        %v1313 = vmul.f32 %v1289, %v1006
        %v1314 = vmul.f32 %v1289, %v1007
        %v1315 = vmul.f32 %v1289, %v1008
        %v1316 = vmul.f32 %v1299, %v993
        %v1317 = vmul.f32 %v1299, %v994
        %v1318 = vmul.f32 %v1299, %v995
        %v1319 = vmul.f32 %v1299, %v996
        %v1320 = vmul.f32 %v1299, %v997
        %v1321 = vmul.f32 %v1299, %v998
        %v1322 = vmul.f32 %v1299, %v999
        %v1323 = vmul.f32 %v1299, %v1000
        %v1324 = vmul.f32 %v1299, %v1001
        %v1325 = vmul.f32 %v1299, %v1002
        %v1326 = vmul.f32 %v1299, %v1003
        %v1327 = vmul.f32 %v1299, %v1004
        %v1328 = vmul.f32 %v1299, %v1005
        %v1329 = vmul.f32 %v1299, %v1006
        %v1330 = vmul.f32 %v1299, %v1007
        %v1331 = vmul.f32 %v1299, %v1008
        %v1332 = vmul.f32 %v1270, %v1300
        %v1333 = vmul.f32 %v1270, %v1301
        %v1334 = vmul.f32 %v1270, %v1302
        %v1335 = vmul.f32 %v1270, %v1303
        %v1336 = vmul.f32 %v1270, %v1304
        %v1337 = vmul.f32 %v1270, %v1305
        %v1338 = vmul.f32 %v1270, %v1306
        %v1339 = vmul.f32 %v1270, %v1307
        %v1340 = vmul.f32 %v1270, %v1308
        %v1341 = vmul.f32 %v1270, %v1309
        %v1342 = vmul.f32 %v1270, %v1310
        %v1343 = vmul.f32 %v1270, %v1311
        %v1344 = vmul.f32 %v1270, %v1312
        %v1345 = vmul.f32 %v1270, %v1313
        %v1346 = vmul.f32 %v1270, %v1314
        %v1347 = vmul.f32 %v1270, %v1315
        %v1348 = vmul.f32 %v1271, %v1316
        %v1349 = vmul.f32 %v1271, %v1317
        %v1350 = vmul.f32 %v1271, %v1318
        %v1351 = vmul.f32 %v1271, %v1319
        %v1352 = vmul.f32 %v1271, %v1320
        %v1353 = vmul.f32 %v1271, %v1321
        %v1354 = vmul.f32 %v1271, %v1322
        %v1355 = vmul.f32 %v1271, %v1323
        %v1356 = vmul.f32 %v1271, %v1324
        %v1357 = vmul.f32 %v1271, %v1325
        %v1358 = vmul.f32 %v1271, %v1326
        %v1359 = vmul.f32 %v1271, %v1327
        %v1360 = vmul.f32 %v1271, %v1328
        %v1361 = vmul.f32 %v1271, %v1329
        %v1362 = vmul.f32 %v1271, %v1330
        %v1363 = vmul.f32 %v1271, %v1331
        %v1364 = vsub.f32 %v1010, %v1332
        %v1365 = vsub.f32 %v1011, %v1333
        %v1366 = vsub.f32 %v1012, %v1334
        %v1367 = vsub.f32 %v1013, %v1335
        %v1368 = vsub.f32 %v1014, %v1336
        %v1369 = vsub.f32 %v1015, %v1337
        %v1370 = vsub.f32 %v1016, %v1338
        %v1371 = vsub.f32 %v1017, %v1339
        %v1372 = vsub.f32 %v1018, %v1340
        %v1373 = vsub.f32 %v1019, %v1341
        %v1374 = vsub.f32 %v1020, %v1342
        %v1375 = vsub.f32 %v1021, %v1343
        %v1376 = vsub.f32 %v1022, %v1344
        %v1377 = vsub.f32 %v1023, %v1345
        %v1378 = vsub.f32 %v1024, %v1346
        %v1379 = vsub.f32 %v1025, %v1347
        %v1380 = vsub.f32 %v1010, %v1348
        %v1381 = vsub.f32 %v1011, %v1349
        %v1382 = vsub.f32 %v1012, %v1350
        %v1383 = vsub.f32 %v1013, %v1351
        %v1384 = vsub.f32 %v1014, %v1352
        %v1385 = vsub.f32 %v1015, %v1353
        %v1386 = vsub.f32 %v1016, %v1354
        %v1387 = vsub.f32 %v1017, %v1355
        %v1388 = vsub.f32 %v1018, %v1356
        %v1389 = vsub.f32 %v1019, %v1357
        %v1390 = vsub.f32 %v1020, %v1358
        %v1391 = vsub.f32 %v1021, %v1359
        %v1392 = vsub.f32 %v1022, %v1360
        %v1393 = vsub.f32 %v1023, %v1361
        %v1394 = vsub.f32 %v1024, %v1362
        %v1395 = vsub.f32 %v1025, %v1363
        %1397 = vset.pattern.permute.xlu0 0
        %1398 = vperm.xlu0 %1397, %v1300
        %v1399 = vpop.permute.xlu0 %1398
        %1402 = vset.pattern.permute.xlu0 0
        %1403 = vperm.xlu0 %1402, %v1301
        %v1404 = vpop.permute.xlu0 %1403
        %1407 = vset.pattern.permute.xlu0 0
        %1408 = vperm.xlu0 %1407, %v1302
        %v1409 = vpop.permute.xlu0 %1408
        %1412 = vset.pattern.permute.xlu0 0
        %1413 = vperm.xlu0 %1412, %v1303
        %v1414 = vpop.permute.xlu0 %1413
        %1417 = vset.pattern.permute.xlu0 0
        %1418 = vperm.xlu0 %1417, %v1304
        %v1419 = vpop.permute.xlu0 %1418
        %1422 = vset.pattern.permute.xlu0 0
        %1423 = vperm.xlu0 %1422, %v1305
        %v1424 = vpop.permute.xlu0 %1423
        %1427 = vset.pattern.permute.xlu0 0
        %1428 = vperm.xlu0 %1427, %v1306
        %v1429 = vpop.permute.xlu0 %1428
        %1432 = vset.pattern.permute.xlu0 0
        %1433 = vperm.xlu0 %1432, %v1307
        %v1434 = vpop.permute.xlu0 %1433
        %1437 = vset.pattern.permute.xlu0 0
        %1438 = vperm.xlu0 %1437, %v1308
        %v1439 = vpop.permute.xlu0 %1438
        %1442 = vset.pattern.permute.xlu0 0
        %1443 = vperm.xlu0 %1442, %v1309
        %v1444 = vpop.permute.xlu0 %1443
        %1447 = vset.pattern.permute.xlu0 0
        %1448 = vperm.xlu0 %1447, %v1310
        %v1449 = vpop.permute.xlu0 %1448
        %1452 = vset.pattern.permute.xlu0 0
        %1453 = vperm.xlu0 %1452, %v1311
        %v1454 = vpop.permute.xlu0 %1453
        %1457 = vset.pattern.permute.xlu0 0
        %1458 = vperm.xlu0 %1457, %v1312
        %v1459 = vpop.permute.xlu0 %1458
        %1462 = vset.pattern.permute.xlu0 0
        %1463 = vperm.xlu0 %1462, %v1313
        %v1464 = vpop.permute.xlu0 %1463
        %1467 = vset.pattern.permute.xlu0 0
        %1468 = vperm.xlu0 %1467, %v1314
        %v1469 = vpop.permute.xlu0 %1468
        %1472 = vset.pattern.permute.xlu0 0
        %1473 = vperm.xlu0 %1472, %v1315
        %v1474 = vpop.permute.xlu0 %1473
        %1477 = vset.pattern.permute.xlu0 0
        %1478 = vperm.xlu0 %1477, %v1316
        %v1479 = vpop.permute.xlu0 %1478
        %1482 = vset.pattern.permute.xlu0 0
        %1483 = vperm.xlu0 %1482, %v1317
        %v1484 = vpop.permute.xlu0 %1483
        %1487 = vset.pattern.permute.xlu0 0
        %1488 = vperm.xlu0 %1487, %v1318
        %v1489 = vpop.permute.xlu0 %1488
        %1492 = vset.pattern.permute.xlu0 0
        %1493 = vperm.xlu0 %1492, %v1319
        %v1494 = vpop.permute.xlu0 %1493
        %1497 = vset.pattern.permute.xlu0 0
        %1498 = vperm.xlu0 %1497, %v1320
        %v1499 = vpop.permute.xlu0 %1498
        %1502 = vset.pattern.permute.xlu0 0
        %1503 = vperm.xlu0 %1502, %v1321
        %v1504 = vpop.permute.xlu0 %1503
        %1507 = vset.pattern.permute.xlu0 0
        %1508 = vperm.xlu0 %1507, %v1322
        %v1509 = vpop.permute.xlu0 %1508
        %1512 = vset.pattern.permute.xlu0 0
        %1513 = vperm.xlu0 %1512, %v1323
        %v1514 = vpop.permute.xlu0 %1513
        %1517 = vset.pattern.permute.xlu0 0
        %1518 = vperm.xlu0 %1517, %v1324
        %v1519 = vpop.permute.xlu0 %1518
        %1522 = vset.pattern.permute.xlu0 0
        %1523 = vperm.xlu0 %1522, %v1325
        %v1524 = vpop.permute.xlu0 %1523
        %1527 = vset.pattern.permute.xlu0 0
        %1528 = vperm.xlu0 %1527, %v1326
        %v1529 = vpop.permute.xlu0 %1528
        %1532 = vset.pattern.permute.xlu0 0
        %1533 = vperm.xlu0 %1532, %v1327
        %v1534 = vpop.permute.xlu0 %1533
        %1537 = vset.pattern.permute.xlu0 0
        %1538 = vperm.xlu0 %1537, %v1328
        %v1539 = vpop.permute.xlu0 %1538
        %1542 = vset.pattern.permute.xlu0 0
        %1543 = vperm.xlu0 %1542, %v1329
        %v1544 = vpop.permute.xlu0 %1543
        %1547 = vset.pattern.permute.xlu0 0
        %1548 = vperm.xlu0 %1547, %v1330
        %v1549 = vpop.permute.xlu0 %1548
        %1552 = vset.pattern.permute.xlu0 0
        %1553 = vperm.xlu0 %1552, %v1331
        %v1554 = vpop.permute.xlu0 %1553
        %v1556 = vmul.f32 %v777, %v1399
        %v1557 = vmul.f32 %v779, %v1404
        %v1558 = vmul.f32 %v782, %v1409
        %v1559 = vmul.f32 %v784, %v1414
        %v1560 = vmul.f32 %v787, %v1419
        %v1561 = vmul.f32 %v789, %v1424
        %v1562 = vmul.f32 %v792, %v1429
        %v1563 = vmul.f32 %v794, %v1434
        %v1564 = vmul.f32 %v797, %v1439
        %v1565 = vmul.f32 %v799, %v1444
        %v1566 = vmul.f32 %v802, %v1449
        %v1567 = vmul.f32 %v804, %v1454
        %v1568 = vmul.f32 %v807, %v1459
        %v1569 = vmul.f32 %v809, %v1464
        %v1570 = vmul.f32 %v812, %v1469
        %v1571 = vmul.f32 %v814, %v1474
        %v1572 = vmul.f32 %v914, %v1479
        %v1573 = vmul.f32 %v916, %v1484
        %v1574 = vmul.f32 %v919, %v1489
        %v1575 = vmul.f32 %v921, %v1494
        %v1576 = vmul.f32 %v924, %v1499
        %v1577 = vmul.f32 %v926, %v1504
        %v1578 = vmul.f32 %v929, %v1509
        %v1579 = vmul.f32 %v931, %v1514
        %v1580 = vmul.f32 %v934, %v1519
        %v1581 = vmul.f32 %v936, %v1524
        %v1582 = vmul.f32 %v939, %v1529
        %v1583 = vmul.f32 %v941, %v1534
        %v1584 = vmul.f32 %v944, %v1539
        %v1585 = vmul.f32 %v946, %v1544
        %v1586 = vmul.f32 %v949, %v1549
        %v1587 = vmul.f32 %v951, %v1554
        %1589 = vset.pattern.permute.xlu0 0
        %1590 = vperm.xlu0 %1589, %v1364
        %v1591 = vpop.permute.xlu0 %1590
        %1594 = vset.pattern.permute.xlu0 0
        %1595 = vperm.xlu0 %1594, %v1365
        %v1596 = vpop.permute.xlu0 %1595
        %1599 = vset.pattern.permute.xlu0 0
        %1600 = vperm.xlu0 %1599, %v1366
        %v1601 = vpop.permute.xlu0 %1600
        %1604 = vset.pattern.permute.xlu0 0
        %1605 = vperm.xlu0 %1604, %v1367
        %v1606 = vpop.permute.xlu0 %1605
        %1609 = vset.pattern.permute.xlu0 0
        %1610 = vperm.xlu0 %1609, %v1368
        %v1611 = vpop.permute.xlu0 %1610
        %1614 = vset.pattern.permute.xlu0 0
        %1615 = vperm.xlu0 %1614, %v1369
        %v1616 = vpop.permute.xlu0 %1615
        %1619 = vset.pattern.permute.xlu0 0
        %1620 = vperm.xlu0 %1619, %v1370
        %v1621 = vpop.permute.xlu0 %1620
        %1624 = vset.pattern.permute.xlu0 0
        %1625 = vperm.xlu0 %1624, %v1371
        %v1626 = vpop.permute.xlu0 %1625
        %1629 = vset.pattern.permute.xlu0 0
        %1630 = vperm.xlu0 %1629, %v1372
        %v1631 = vpop.permute.xlu0 %1630
        %1634 = vset.pattern.permute.xlu0 0
        %1635 = vperm.xlu0 %1634, %v1373
        %v1636 = vpop.permute.xlu0 %1635
        %1639 = vset.pattern.permute.xlu0 0
        %1640 = vperm.xlu0 %1639, %v1374
        %v1641 = vpop.permute.xlu0 %1640
        %1644 = vset.pattern.permute.xlu0 0
        %1645 = vperm.xlu0 %1644, %v1375
        %v1646 = vpop.permute.xlu0 %1645
        %1649 = vset.pattern.permute.xlu0 0
        %1650 = vperm.xlu0 %1649, %v1376
        %v1651 = vpop.permute.xlu0 %1650
        %1654 = vset.pattern.permute.xlu0 0
        %1655 = vperm.xlu0 %1654, %v1377
        %v1656 = vpop.permute.xlu0 %1655
        %1659 = vset.pattern.permute.xlu0 0
        %1660 = vperm.xlu0 %1659, %v1378
        %v1661 = vpop.permute.xlu0 %1660
        %1664 = vset.pattern.permute.xlu0 0
        %1665 = vperm.xlu0 %1664, %v1379
        %v1666 = vpop.permute.xlu0 %1665
        %1669 = vset.pattern.permute.xlu0 0
        %1670 = vperm.xlu0 %1669, %v1380
        %v1671 = vpop.permute.xlu0 %1670
        %1674 = vset.pattern.permute.xlu0 0
        %1675 = vperm.xlu0 %1674, %v1381
        %v1676 = vpop.permute.xlu0 %1675
        %1679 = vset.pattern.permute.xlu0 0
        %1680 = vperm.xlu0 %1679, %v1382
        %v1681 = vpop.permute.xlu0 %1680
        %1684 = vset.pattern.permute.xlu0 0
        %1685 = vperm.xlu0 %1684, %v1383
        %v1686 = vpop.permute.xlu0 %1685
        %1689 = vset.pattern.permute.xlu0 0
        %1690 = vperm.xlu0 %1689, %v1384
        %v1691 = vpop.permute.xlu0 %1690
        %1694 = vset.pattern.permute.xlu0 0
        %1695 = vperm.xlu0 %1694, %v1385
        %v1696 = vpop.permute.xlu0 %1695
        %1699 = vset.pattern.permute.xlu0 0
        %1700 = vperm.xlu0 %1699, %v1386
        %v1701 = vpop.permute.xlu0 %1700
        %1704 = vset.pattern.permute.xlu0 0
        %1705 = vperm.xlu0 %1704, %v1387
        %v1706 = vpop.permute.xlu0 %1705
        %1709 = vset.pattern.permute.xlu0 0
        %1710 = vperm.xlu0 %1709, %v1388
        %v1711 = vpop.permute.xlu0 %1710
        %1714 = vset.pattern.permute.xlu0 0
        %1715 = vperm.xlu0 %1714, %v1389
        %v1716 = vpop.permute.xlu0 %1715
        %1719 = vset.pattern.permute.xlu0 0
        %1720 = vperm.xlu0 %1719, %v1390
        %v1721 = vpop.permute.xlu0 %1720
        %1724 = vset.pattern.permute.xlu0 0
        %1725 = vperm.xlu0 %1724, %v1391
        %v1726 = vpop.permute.xlu0 %1725
        %1729 = vset.pattern.permute.xlu0 0
        %1730 = vperm.xlu0 %1729, %v1392
        %v1731 = vpop.permute.xlu0 %1730
        %1734 = vset.pattern.permute.xlu0 0
        %1735 = vperm.xlu0 %1734, %v1393
        %v1736 = vpop.permute.xlu0 %1735
        %1739 = vset.pattern.permute.xlu0 0
        %1740 = vperm.xlu0 %1739, %v1394
        %v1741 = vpop.permute.xlu0 %1740
        %1744 = vset.pattern.permute.xlu0 0
        %1745 = vperm.xlu0 %1744, %v1395
        %v1746 = vpop.permute.xlu0 %1745
        %v1748 = vadd.f32 %v1556, %v1591
        %v1749 = vadd.f32 %v1557, %v1596
        %v1750 = vadd.f32 %v1558, %v1601
        %v1751 = vadd.f32 %v1559, %v1606
        %v1752 = vadd.f32 %v1560, %v1611
        %v1753 = vadd.f32 %v1561, %v1616
        %v1754 = vadd.f32 %v1562, %v1621
        %v1755 = vadd.f32 %v1563, %v1626
        %v1756 = vadd.f32 %v1564, %v1631
        %v1757 = vadd.f32 %v1565, %v1636
        %v1758 = vadd.f32 %v1566, %v1641
        %v1759 = vadd.f32 %v1567, %v1646
        %v1760 = vadd.f32 %v1568, %v1651
        %v1761 = vadd.f32 %v1569, %v1656
        %v1762 = vadd.f32 %v1570, %v1661
        %v1763 = vadd.f32 %v1571, %v1666
        %v1764 = vadd.f32 %v1572, %v1671
        %v1765 = vadd.f32 %v1573, %v1676
        %v1766 = vadd.f32 %v1574, %v1681
        %v1767 = vadd.f32 %v1575, %v1686
        %v1768 = vadd.f32 %v1576, %v1691
        %v1769 = vadd.f32 %v1577, %v1696
        %v1770 = vadd.f32 %v1578, %v1701
        %v1771 = vadd.f32 %v1579, %v1706
        %v1772 = vadd.f32 %v1580, %v1711
        %v1773 = vadd.f32 %v1581, %v1716
        %v1774 = vadd.f32 %v1582, %v1721
        %v1775 = vadd.f32 %v1583, %v1726
        %v1776 = vadd.f32 %v1584, %v1731
        %v1777 = vadd.f32 %v1585, %v1736
        %v1778 = vadd.f32 %v1586, %v1741
        %v1779 = vadd.f32 %v1587, %v1746
        %v1780 = vmax.f32 %v1748, 0.0
        %v1781 = vmax.f32 %v1749, 0.0
        %v1782 = vmax.f32 %v1750, 0.0
        %v1783 = vmax.f32 %v1751, 0.0
        %v1784 = vmax.f32 %v1752, 0.0
        %v1785 = vmax.f32 %v1753, 0.0
        %v1786 = vmax.f32 %v1754, 0.0
        %v1787 = vmax.f32 %v1755, 0.0
        %v1788 = vmax.f32 %v1756, 0.0
        %v1789 = vmax.f32 %v1757, 0.0
        %v1790 = vmax.f32 %v1758, 0.0
        %v1791 = vmax.f32 %v1759, 0.0
        %v1792 = vmax.f32 %v1760, 0.0
        %v1793 = vmax.f32 %v1761, 0.0
        %v1794 = vmax.f32 %v1762, 0.0
        %v1795 = vmax.f32 %v1763, 0.0
        %v1796 = vmax.f32 %v1764, 0.0
        %v1797 = vmax.f32 %v1765, 0.0
        %v1798 = vmax.f32 %v1766, 0.0
        %v1799 = vmax.f32 %v1767, 0.0
        %v1800 = vmax.f32 %v1768, 0.0
        %v1801 = vmax.f32 %v1769, 0.0
        %v1802 = vmax.f32 %v1770, 0.0
        %v1803 = vmax.f32 %v1771, 0.0
        %v1804 = vmax.f32 %v1772, 0.0
        %v1805 = vmax.f32 %v1773, 0.0
        %v1806 = vmax.f32 %v1774, 0.0
        %v1807 = vmax.f32 %v1775, 0.0
        %v1808 = vmax.f32 %v1776, 0.0
        %v1809 = vmax.f32 %v1777, 0.0
        %v1810 = vmax.f32 %v1778, 0.0
        %v1811 = vmax.f32 %v1779, 0.0
        %v1812 = vld [vmem:[%s7] sm:$0xff]
        %v1813 = vld [vmem:[%s7 + $0x8] sm:$0xff]
        %v1814 = vld [vmem:[%s7 + $0x10] sm:$0xff]
        %v1815 = vld [vmem:[%s7 + $0x18] sm:$0xff]
        %v1816 = vld [vmem:[%s7 + $0x20] sm:$0xff]
        %v1817 = vld [vmem:[%s7 + $0x28] sm:$0xff]
        %v1818 = vld [vmem:[%s7 + $0x30] sm:$0xff]
        %v1819 = vld [vmem:[%s7 + $0x38] sm:$0xff]
        %v1820 = vld [vmem:[%s7 + $0x40] sm:$0xff]
        %v1821 = vld [vmem:[%s7 + $0x48] sm:$0xff]
        %v1822 = vld [vmem:[%s7 + $0x50] sm:$0xff]
        %v1823 = vld [vmem:[%s7 + $0x58] sm:$0xff]
        %v1824 = vld [vmem:[%s7 + $0x60] sm:$0xff]
        %v1825 = vld [vmem:[%s7 + $0x68] sm:$0xff]
        %v1826 = vld [vmem:[%s7 + $0x70] sm:$0xff]
        %v1827 = vld [vmem:[%s7 + $0x78] sm:$0xff]
        %s1828 = scalar_lea.vmem %s7, 128
        %v1829 = vld [vmem:[%s1828] sm:$0xff]
        %v1830 = vld [vmem:[%s1828 + $0x8] sm:$0xff]
        %v1831 = vld [vmem:[%s1828 + $0x10] sm:$0xff]
        %v1832 = vld [vmem:[%s1828 + $0x18] sm:$0xff]
        %v1833 = vld [vmem:[%s1828 + $0x20] sm:$0xff]
        %v1834 = vld [vmem:[%s1828 + $0x28] sm:$0xff]
        %v1835 = vld [vmem:[%s1828 + $0x30] sm:$0xff]
        %v1836 = vld [vmem:[%s1828 + $0x38] sm:$0xff]
        %v1837 = vld [vmem:[%s1828 + $0x40] sm:$0xff]
        %v1838 = vld [vmem:[%s1828 + $0x48] sm:$0xff]
        %v1839 = vld [vmem:[%s1828 + $0x50] sm:$0xff]
        %v1840 = vld [vmem:[%s1828 + $0x58] sm:$0xff]
        %v1841 = vld [vmem:[%s1828 + $0x60] sm:$0xff]
        %v1842 = vld [vmem:[%s1828 + $0x68] sm:$0xff]
        %v1843 = vld [vmem:[%s1828 + $0x70] sm:$0xff]
        %v1844 = vld [vmem:[%s1828 + $0x78] sm:$0xff]
        %1845 = vadd.xlane.f32.xlu0 %v817
        %v1846 = vpop.xlane.xlu0 %1845
        %1847 = vadd.xlane.f32.xlu0 %v819
        %v1848 = vpop.xlane.xlu0 %1847
        %1849 = vadd.xlane.f32.xlu0 %v822
        %v1850 = vpop.xlane.xlu0 %1849
        %1851 = vadd.xlane.f32.xlu0 %v824
        %v1852 = vpop.xlane.xlu0 %1851
        %1853 = vadd.xlane.f32.xlu0 %v827
        %v1854 = vpop.xlane.xlu0 %1853
        %1855 = vadd.xlane.f32.xlu0 %v829
        %v1856 = vpop.xlane.xlu0 %1855
        %1857 = vadd.xlane.f32.xlu0 %v832
        %v1858 = vpop.xlane.xlu0 %1857
        %1859 = vadd.xlane.f32.xlu0 %v834
        %v1860 = vpop.xlane.xlu0 %1859
        %1861 = vadd.xlane.f32.xlu0 %v837
        %v1862 = vpop.xlane.xlu0 %1861
        %1863 = vadd.xlane.f32.xlu0 %v839
        %v1864 = vpop.xlane.xlu0 %1863
        %1865 = vadd.xlane.f32.xlu0 %v842
        %v1866 = vpop.xlane.xlu0 %1865
        %1867 = vadd.xlane.f32.xlu0 %v844
        %v1868 = vpop.xlane.xlu0 %1867
        %1869 = vadd.xlane.f32.xlu0 %v847
        %v1870 = vpop.xlane.xlu0 %1869
        %1871 = vadd.xlane.f32.xlu0 %v849
        %v1872 = vpop.xlane.xlu0 %1871
        %1873 = vadd.xlane.f32.xlu0 %v852
        %v1874 = vpop.xlane.xlu0 %1873
        %1875 = vadd.xlane.f32.xlu0 %v854
        %v1876 = vpop.xlane.xlu0 %1875
        %1877 = vadd.xlane.f32.xlu0 %v954
        %v1878 = vpop.xlane.xlu0 %1877
        %1879 = vadd.xlane.f32.xlu0 %v956
        %v1880 = vpop.xlane.xlu0 %1879
        %1881 = vadd.xlane.f32.xlu0 %v959
        %v1882 = vpop.xlane.xlu0 %1881
        %1883 = vadd.xlane.f32.xlu0 %v961
        %v1884 = vpop.xlane.xlu0 %1883
        %1885 = vadd.xlane.f32.xlu0 %v964
        %v1886 = vpop.xlane.xlu0 %1885
        %1887 = vadd.xlane.f32.xlu0 %v966
        %v1888 = vpop.xlane.xlu0 %1887
        %1889 = vadd.xlane.f32.xlu0 %v969
        %v1890 = vpop.xlane.xlu0 %1889
        %1891 = vadd.xlane.f32.xlu0 %v971
        %v1892 = vpop.xlane.xlu0 %1891
        %1893 = vadd.xlane.f32.xlu0 %v974
        %v1894 = vpop.xlane.xlu0 %1893
        %1895 = vadd.xlane.f32.xlu0 %v976
        %v1896 = vpop.xlane.xlu0 %1895
        %1897 = vadd.xlane.f32.xlu0 %v979
        %v1898 = vpop.xlane.xlu0 %1897
        %1899 = vadd.xlane.f32.xlu0 %v981
        %v1900 = vpop.xlane.xlu0 %1899
        %1901 = vadd.xlane.f32.xlu0 %v984
        %v1902 = vpop.xlane.xlu0 %1901
        %1903 = vadd.xlane.f32.xlu0 %v986
        %v1904 = vpop.xlane.xlu0 %1903
        %1905 = vadd.xlane.f32.xlu0 %v989
        %v1906 = vpop.xlane.xlu0 %1905
        %1907 = vadd.xlane.f32.xlu0 %v991
        %v1908 = vpop.xlane.xlu0 %1907
        %v1909 = vadd.f32 %v1846, %v1848
        %v1910 = vadd.f32 %v1909, %v1850
        %v1911 = vadd.f32 %v1910, %v1852
        %v1912 = vadd.f32 %v1911, %v1854
        %v1913 = vadd.f32 %v1912, %v1856
        %v1914 = vadd.f32 %v1913, %v1858
        %v1915 = vadd.f32 %v1914, %v1860
        %v1916 = vadd.f32 %v1915, %v1862
        %v1917 = vadd.f32 %v1916, %v1864
        %v1918 = vadd.f32 %v1917, %v1866
        %v1919 = vadd.f32 %v1918, %v1868
        %v1920 = vadd.f32 %v1919, %v1870
        %v1921 = vadd.f32 %v1920, %v1872
        %v1922 = vadd.f32 %v1921, %v1874
        %v1923 = vadd.f32 %v1922, %v1876
        %v1924 = vrot.slane %v1923, 4
        %v1925 = vadd.f32 %v1923, %v1924
        %v1926 = vrot.slane %v1925, 2
        %v1927 = vadd.f32 %v1925, %v1926
        %v1928 = vrot.slane %v1927, 1
        %v1929 = vadd.f32 %v1927, %v1928
        %v1930 = vadd.f32 %v1878, %v1880
        %v1931 = vadd.f32 %v1930, %v1882
        %v1932 = vadd.f32 %v1931, %v1884
        %v1933 = vadd.f32 %v1932, %v1886
        %v1934 = vadd.f32 %v1933, %v1888
        %v1935 = vadd.f32 %v1934, %v1890
        %v1936 = vadd.f32 %v1935, %v1892
        %v1937 = vadd.f32 %v1936, %v1894
        %v1938 = vadd.f32 %v1937, %v1896
        %v1939 = vadd.f32 %v1938, %v1898
        %v1940 = vadd.f32 %v1939, %v1900
        %v1941 = vadd.f32 %v1940, %v1902
        %v1942 = vadd.f32 %v1941, %v1904
        %v1943 = vadd.f32 %v1942, %v1906
        %v1944 = vadd.f32 %v1943, %v1908
        %v1945 = vrot.slane %v1944, 4
        %v1946 = vadd.f32 %v1944, %v1945
        %v1947 = vrot.slane %v1946, 2
        %v1948 = vadd.f32 %v1946, %v1947
        %v1949 = vrot.slane %v1948, 1
        %v1950 = vadd.f32 %v1948, %v1949
        %v1951 = vmul.f32 %v817, %v817
        %v1952 = vmul.f32 %v819, %v819
        %v1953 = vmul.f32 %v822, %v822
        %v1954 = vmul.f32 %v824, %v824
        %v1955 = vmul.f32 %v827, %v827
        %v1956 = vmul.f32 %v829, %v829
        %v1957 = vmul.f32 %v832, %v832
        %v1958 = vmul.f32 %v834, %v834
        %v1959 = vmul.f32 %v837, %v837
        %v1960 = vmul.f32 %v839, %v839
        %v1961 = vmul.f32 %v842, %v842
        %v1962 = vmul.f32 %v844, %v844
        %v1963 = vmul.f32 %v847, %v847
        %v1964 = vmul.f32 %v849, %v849
        %v1965 = vmul.f32 %v852, %v852
        %v1966 = vmul.f32 %v854, %v854
        %v1967 = vmul.f32 %v954, %v954
        %v1968 = vmul.f32 %v956, %v956
        %v1969 = vmul.f32 %v959, %v959
        %v1970 = vmul.f32 %v961, %v961
        %v1971 = vmul.f32 %v964, %v964
        %v1972 = vmul.f32 %v966, %v966
        %v1973 = vmul.f32 %v969, %v969
        %v1974 = vmul.f32 %v971, %v971
        %v1975 = vmul.f32 %v974, %v974
        %v1976 = vmul.f32 %v976, %v976
        %v1977 = vmul.f32 %v979, %v979
        %v1978 = vmul.f32 %v981, %v981
        %v1979 = vmul.f32 %v984, %v984
        %v1980 = vmul.f32 %v986, %v986
        %v1981 = vmul.f32 %v989, %v989
        %v1982 = vmul.f32 %v991, %v991
        %1983 = vadd.xlane.f32.xlu0 %v1951
        %v1984 = vpop.xlane.xlu0 %1983
        %1985 = vadd.xlane.f32.xlu0 %v1952
        %v1986 = vpop.xlane.xlu0 %1985
        %1987 = vadd.xlane.f32.xlu0 %v1953
        %v1988 = vpop.xlane.xlu0 %1987
        %1989 = vadd.xlane.f32.xlu0 %v1954
        %v1990 = vpop.xlane.xlu0 %1989
        %1991 = vadd.xlane.f32.xlu0 %v1955
        %v1992 = vpop.xlane.xlu0 %1991
        %1993 = vadd.xlane.f32.xlu0 %v1956
        %v1994 = vpop.xlane.xlu0 %1993
        %1995 = vadd.xlane.f32.xlu0 %v1957
        %v1996 = vpop.xlane.xlu0 %1995
        %1997 = vadd.xlane.f32.xlu0 %v1958
        %v1998 = vpop.xlane.xlu0 %1997
        %1999 = vadd.xlane.f32.xlu0 %v1959
        %v2000 = vpop.xlane.xlu0 %1999
        %2001 = vadd.xlane.f32.xlu0 %v1960
        %v2002 = vpop.xlane.xlu0 %2001
        %2003 = vadd.xlane.f32.xlu0 %v1961
        %v2004 = vpop.xlane.xlu0 %2003
        %2005 = vadd.xlane.f32.xlu0 %v1962
        %v2006 = vpop.xlane.xlu0 %2005
        %2007 = vadd.xlane.f32.xlu0 %v1963
        %v2008 = vpop.xlane.xlu0 %2007
        %2009 = vadd.xlane.f32.xlu0 %v1964
        %v2010 = vpop.xlane.xlu0 %2009
        %2011 = vadd.xlane.f32.xlu0 %v1965
        %v2012 = vpop.xlane.xlu0 %2011
        %2013 = vadd.xlane.f32.xlu0 %v1966
        %v2014 = vpop.xlane.xlu0 %2013
        %2015 = vadd.xlane.f32.xlu0 %v1967
        %v2016 = vpop.xlane.xlu0 %2015
        %2017 = vadd.xlane.f32.xlu0 %v1968
        %v2018 = vpop.xlane.xlu0 %2017
        %2019 = vadd.xlane.f32.xlu0 %v1969
        %v2020 = vpop.xlane.xlu0 %2019
        %2021 = vadd.xlane.f32.xlu0 %v1970
        %v2022 = vpop.xlane.xlu0 %2021
        %2023 = vadd.xlane.f32.xlu0 %v1971
        %v2024 = vpop.xlane.xlu0 %2023
        %2025 = vadd.xlane.f32.xlu0 %v1972
        %v2026 = vpop.xlane.xlu0 %2025
        %2027 = vadd.xlane.f32.xlu0 %v1973
        %v2028 = vpop.xlane.xlu0 %2027
        %2029 = vadd.xlane.f32.xlu0 %v1974
        %v2030 = vpop.xlane.xlu0 %2029
        %2031 = vadd.xlane.f32.xlu0 %v1975
        %v2032 = vpop.xlane.xlu0 %2031
        %2033 = vadd.xlane.f32.xlu0 %v1976
        %v2034 = vpop.xlane.xlu0 %2033
        %2035 = vadd.xlane.f32.xlu0 %v1977
        %v2036 = vpop.xlane.xlu0 %2035
        %2037 = vadd.xlane.f32.xlu0 %v1978
        %v2038 = vpop.xlane.xlu0 %2037
        %2039 = vadd.xlane.f32.xlu0 %v1979
        %v2040 = vpop.xlane.xlu0 %2039
        %2041 = vadd.xlane.f32.xlu0 %v1980
        %v2042 = vpop.xlane.xlu0 %2041
        %2043 = vadd.xlane.f32.xlu0 %v1981
        %v2044 = vpop.xlane.xlu0 %2043
        %2045 = vadd.xlane.f32.xlu0 %v1982
        %v2046 = vpop.xlane.xlu0 %2045
        %v2047 = vadd.f32 %v1984, %v1986
        %v2048 = vadd.f32 %v2047, %v1988
        %v2049 = vadd.f32 %v2048, %v1990
        %v2050 = vadd.f32 %v2049, %v1992
        %v2051 = vadd.f32 %v2050, %v1994
        %v2052 = vadd.f32 %v2051, %v1996
        %v2053 = vadd.f32 %v2052, %v1998
        %v2054 = vadd.f32 %v2053, %v2000
        %v2055 = vadd.f32 %v2054, %v2002
        %v2056 = vadd.f32 %v2055, %v2004
        %v2057 = vadd.f32 %v2056, %v2006
        %v2058 = vadd.f32 %v2057, %v2008
        %v2059 = vadd.f32 %v2058, %v2010
        %v2060 = vadd.f32 %v2059, %v2012
        %v2061 = vadd.f32 %v2060, %v2014
        %v2062 = vrot.slane %v2061, 4
        %v2063 = vadd.f32 %v2061, %v2062
        %v2064 = vrot.slane %v2063, 2
        %v2065 = vadd.f32 %v2063, %v2064
        %v2066 = vrot.slane %v2065, 1
        %v2067 = vadd.f32 %v2065, %v2066
        %v2068 = vadd.f32 %v2016, %v2018
        %v2069 = vadd.f32 %v2068, %v2020
        %v2070 = vadd.f32 %v2069, %v2022
        %v2071 = vadd.f32 %v2070, %v2024
        %v2072 = vadd.f32 %v2071, %v2026
        %v2073 = vadd.f32 %v2072, %v2028
        %v2074 = vadd.f32 %v2073, %v2030
        %v2075 = vadd.f32 %v2074, %v2032
        %v2076 = vadd.f32 %v2075, %v2034
        %v2077 = vadd.f32 %v2076, %v2036
        %v2078 = vadd.f32 %v2077, %v2038
        %v2079 = vadd.f32 %v2078, %v2040
        %v2080 = vadd.f32 %v2079, %v2042
        %v2081 = vadd.f32 %v2080, %v2044
        %v2082 = vadd.f32 %v2081, %v2046
        %v2083 = vrot.slane %v2082, 4
        %v2084 = vadd.f32 %v2082, %v2083
        %v2085 = vrot.slane %v2084, 2
        %v2086 = vadd.f32 %v2084, %v2085
        %v2087 = vrot.slane %v2086, 1
        %v2088 = vadd.f32 %v2086, %v2087
        %v2089 = vmul.f32 %v1929, 6.1035156e-05
        %v2090 = vmul.f32 %v1950, 6.1035156e-05
        %v2091 = vmul.f32 %v2067, 6.1035156e-05
        %v2092 = vmul.f32 %v2088, 6.1035156e-05
        %v2093 = vmul.f32 %v2089, %v2089
        %v2094 = vmul.f32 %v2090, %v2090
        %v2095 = vsub.f32 %v2091, %v2093
        %v2096 = vsub.f32 %v2092, %v2094
        %v2097 = vadd.f32 %v2095, 1e-05
        %v2098 = vadd.f32 %v2096, 1e-05
        %v2099 = vrsqrt.pop %v2097
        %v2100 = vmul.f32 %v2099, %v2097
        %v2101 = vmul.f32 %v2100, %v2099
        %v2102 = vmul.f32 0.5, %v2101
        %v2103 = vsub.f32 1.5, %v2102
        %v2104 = vmul.f32 %v2099, %v2103
        %vm2105 = vweird.f32 %v2097
        %vm2106 = vweird.f32 %v2099
        %vm2107 = vmor %vm2105, %vm2106
        %v2108 = vsel %vm2107, %v2099, %v2104
        %v2109 = vrsqrt.pop %v2098
        %v2110 = vmul.f32 %v2109, %v2098
        %v2111 = vmul.f32 %v2110, %v2109
        %v2112 = vmul.f32 0.5, %v2111
        %v2113 = vsub.f32 1.5, %v2112
        %v2114 = vmul.f32 %v2109, %v2113
        %vm2115 = vweird.f32 %v2098
        %vm2116 = vweird.f32 %v2109
        %vm2117 = vmor %vm2115, %vm2116
        %v2118 = vsel %vm2117, %v2109, %v2114
        %v2119 = vmul.f32 %v2108, %v1812
        %v2120 = vmul.f32 %v2108, %v1813
        %v2121 = vmul.f32 %v2108, %v1814
        %v2122 = vmul.f32 %v2108, %v1815
        %v2123 = vmul.f32 %v2108, %v1816
        %v2124 = vmul.f32 %v2108, %v1817
        %v2125 = vmul.f32 %v2108, %v1818
        %v2126 = vmul.f32 %v2108, %v1819
        %v2127 = vmul.f32 %v2108, %v1820
        %v2128 = vmul.f32 %v2108, %v1821
        %v2129 = vmul.f32 %v2108, %v1822
        %v2130 = vmul.f32 %v2108, %v1823
        %v2131 = vmul.f32 %v2108, %v1824
        %v2132 = vmul.f32 %v2108, %v1825
        %v2133 = vmul.f32 %v2108, %v1826
        %v2134 = vmul.f32 %v2108, %v1827
        %v2135 = vmul.f32 %v2118, %v1812
        %v2136 = vmul.f32 %v2118, %v1813
        %v2137 = vmul.f32 %v2118, %v1814
        %v2138 = vmul.f32 %v2118, %v1815
        %v2139 = vmul.f32 %v2118, %v1816
        %v2140 = vmul.f32 %v2118, %v1817
        %v2141 = vmul.f32 %v2118, %v1818
        %v2142 = vmul.f32 %v2118, %v1819
        %v2143 = vmul.f32 %v2118, %v1820
        %v2144 = vmul.f32 %v2118, %v1821
        %v2145 = vmul.f32 %v2118, %v1822
        %v2146 = vmul.f32 %v2118, %v1823
        %v2147 = vmul.f32 %v2118, %v1824
        %v2148 = vmul.f32 %v2118, %v1825
        %v2149 = vmul.f32 %v2118, %v1826
        %v2150 = vmul.f32 %v2118, %v1827
        %v2151 = vmul.f32 %v2089, %v2119
        %v2152 = vmul.f32 %v2089, %v2120
        %v2153 = vmul.f32 %v2089, %v2121
        %v2154 = vmul.f32 %v2089, %v2122
        %v2155 = vmul.f32 %v2089, %v2123
        %v2156 = vmul.f32 %v2089, %v2124
        %v2157 = vmul.f32 %v2089, %v2125
        %v2158 = vmul.f32 %v2089, %v2126
        %v2159 = vmul.f32 %v2089, %v2127
        %v2160 = vmul.f32 %v2089, %v2128
        %v2161 = vmul.f32 %v2089, %v2129
        %v2162 = vmul.f32 %v2089, %v2130
        %v2163 = vmul.f32 %v2089, %v2131
        %v2164 = vmul.f32 %v2089, %v2132
        %v2165 = vmul.f32 %v2089, %v2133
        %v2166 = vmul.f32 %v2089, %v2134
        %v2167 = vmul.f32 %v2090, %v2135
        %v2168 = vmul.f32 %v2090, %v2136
        %v2169 = vmul.f32 %v2090, %v2137
        %v2170 = vmul.f32 %v2090, %v2138
        %v2171 = vmul.f32 %v2090, %v2139
        %v2172 = vmul.f32 %v2090, %v2140
        %v2173 = vmul.f32 %v2090, %v2141
        %v2174 = vmul.f32 %v2090, %v2142
        %v2175 = vmul.f32 %v2090, %v2143
        %v2176 = vmul.f32 %v2090, %v2144
        %v2177 = vmul.f32 %v2090, %v2145
        %v2178 = vmul.f32 %v2090, %v2146
        %v2179 = vmul.f32 %v2090, %v2147
        %v2180 = vmul.f32 %v2090, %v2148
        %v2181 = vmul.f32 %v2090, %v2149
        %v2182 = vmul.f32 %v2090, %v2150
        %v2183 = vsub.f32 %v1829, %v2151
        %v2184 = vsub.f32 %v1830, %v2152
        %v2185 = vsub.f32 %v1831, %v2153
        %v2186 = vsub.f32 %v1832, %v2154
        %v2187 = vsub.f32 %v1833, %v2155
        %v2188 = vsub.f32 %v1834, %v2156
        %v2189 = vsub.f32 %v1835, %v2157
        %v2190 = vsub.f32 %v1836, %v2158
        %v2191 = vsub.f32 %v1837, %v2159
        %v2192 = vsub.f32 %v1838, %v2160
        %v2193 = vsub.f32 %v1839, %v2161
        %v2194 = vsub.f32 %v1840, %v2162
        %v2195 = vsub.f32 %v1841, %v2163
        %v2196 = vsub.f32 %v1842, %v2164
        %v2197 = vsub.f32 %v1843, %v2165
        %v2198 = vsub.f32 %v1844, %v2166
        %v2199 = vsub.f32 %v1829, %v2167
        %v2200 = vsub.f32 %v1830, %v2168
        %v2201 = vsub.f32 %v1831, %v2169
        %v2202 = vsub.f32 %v1832, %v2170
        %v2203 = vsub.f32 %v1833, %v2171
        %v2204 = vsub.f32 %v1834, %v2172
        %v2205 = vsub.f32 %v1835, %v2173
        %v2206 = vsub.f32 %v1836, %v2174
        %v2207 = vsub.f32 %v1837, %v2175
        %v2208 = vsub.f32 %v1838, %v2176
        %v2209 = vsub.f32 %v1839, %v2177
        %v2210 = vsub.f32 %v1840, %v2178
        %v2211 = vsub.f32 %v1841, %v2179
        %v2212 = vsub.f32 %v1842, %v2180
        %v2213 = vsub.f32 %v1843, %v2181
        %v2214 = vsub.f32 %v1844, %v2182
        %2216 = vset.pattern.permute.xlu0 0
        %2217 = vperm.xlu0 %2216, %v2119
        %v2218 = vpop.permute.xlu0 %2217
        %2221 = vset.pattern.permute.xlu0 0
        %2222 = vperm.xlu0 %2221, %v2120
        %v2223 = vpop.permute.xlu0 %2222
        %2226 = vset.pattern.permute.xlu0 0
        %2227 = vperm.xlu0 %2226, %v2121
        %v2228 = vpop.permute.xlu0 %2227
        %2231 = vset.pattern.permute.xlu0 0
        %2232 = vperm.xlu0 %2231, %v2122
        %v2233 = vpop.permute.xlu0 %2232
        %2236 = vset.pattern.permute.xlu0 0
        %2237 = vperm.xlu0 %2236, %v2123
        %v2238 = vpop.permute.xlu0 %2237
        %2241 = vset.pattern.permute.xlu0 0
        %2242 = vperm.xlu0 %2241, %v2124
        %v2243 = vpop.permute.xlu0 %2242
        %2246 = vset.pattern.permute.xlu0 0
        %2247 = vperm.xlu0 %2246, %v2125
        %v2248 = vpop.permute.xlu0 %2247
        %2251 = vset.pattern.permute.xlu0 0
        %2252 = vperm.xlu0 %2251, %v2126
        %v2253 = vpop.permute.xlu0 %2252
        %2256 = vset.pattern.permute.xlu0 0
        %2257 = vperm.xlu0 %2256, %v2127
        %v2258 = vpop.permute.xlu0 %2257
        %2261 = vset.pattern.permute.xlu0 0
        %2262 = vperm.xlu0 %2261, %v2128
        %v2263 = vpop.permute.xlu0 %2262
        %2266 = vset.pattern.permute.xlu0 0
        %2267 = vperm.xlu0 %2266, %v2129
        %v2268 = vpop.permute.xlu0 %2267
        %2271 = vset.pattern.permute.xlu0 0
        %2272 = vperm.xlu0 %2271, %v2130
        %v2273 = vpop.permute.xlu0 %2272
        %2276 = vset.pattern.permute.xlu0 0
        %2277 = vperm.xlu0 %2276, %v2131
        %v2278 = vpop.permute.xlu0 %2277
        %2281 = vset.pattern.permute.xlu0 0
        %2282 = vperm.xlu0 %2281, %v2132
        %v2283 = vpop.permute.xlu0 %2282
        %2286 = vset.pattern.permute.xlu0 0
        %2287 = vperm.xlu0 %2286, %v2133
        %v2288 = vpop.permute.xlu0 %2287
        %2291 = vset.pattern.permute.xlu0 0
        %2292 = vperm.xlu0 %2291, %v2134
        %v2293 = vpop.permute.xlu0 %2292
        %2296 = vset.pattern.permute.xlu0 0
        %2297 = vperm.xlu0 %2296, %v2135
        %v2298 = vpop.permute.xlu0 %2297
        %2301 = vset.pattern.permute.xlu0 0
        %2302 = vperm.xlu0 %2301, %v2136
        %v2303 = vpop.permute.xlu0 %2302
        %2306 = vset.pattern.permute.xlu0 0
        %2307 = vperm.xlu0 %2306, %v2137
        %v2308 = vpop.permute.xlu0 %2307
        %2311 = vset.pattern.permute.xlu0 0
        %2312 = vperm.xlu0 %2311, %v2138
        %v2313 = vpop.permute.xlu0 %2312
        %2316 = vset.pattern.permute.xlu0 0
        %2317 = vperm.xlu0 %2316, %v2139
        %v2318 = vpop.permute.xlu0 %2317
        %2321 = vset.pattern.permute.xlu0 0
        %2322 = vperm.xlu0 %2321, %v2140
        %v2323 = vpop.permute.xlu0 %2322
        %2326 = vset.pattern.permute.xlu0 0
        %2327 = vperm.xlu0 %2326, %v2141
        %v2328 = vpop.permute.xlu0 %2327
        %2331 = vset.pattern.permute.xlu0 0
        %2332 = vperm.xlu0 %2331, %v2142
        %v2333 = vpop.permute.xlu0 %2332
        %2336 = vset.pattern.permute.xlu0 0
        %2337 = vperm.xlu0 %2336, %v2143
        %v2338 = vpop.permute.xlu0 %2337
        %2341 = vset.pattern.permute.xlu0 0
        %2342 = vperm.xlu0 %2341, %v2144
        %v2343 = vpop.permute.xlu0 %2342
        %2346 = vset.pattern.permute.xlu0 0
        %2347 = vperm.xlu0 %2346, %v2145
        %v2348 = vpop.permute.xlu0 %2347
        %2351 = vset.pattern.permute.xlu0 0
        %2352 = vperm.xlu0 %2351, %v2146
        %v2353 = vpop.permute.xlu0 %2352
        %2356 = vset.pattern.permute.xlu0 0
        %2357 = vperm.xlu0 %2356, %v2147
        %v2358 = vpop.permute.xlu0 %2357
        %2361 = vset.pattern.permute.xlu0 0
        %2362 = vperm.xlu0 %2361, %v2148
        %v2363 = vpop.permute.xlu0 %2362
        %2366 = vset.pattern.permute.xlu0 0
        %2367 = vperm.xlu0 %2366, %v2149
        %v2368 = vpop.permute.xlu0 %2367
        %2371 = vset.pattern.permute.xlu0 0
        %2372 = vperm.xlu0 %2371, %v2150
        %v2373 = vpop.permute.xlu0 %2372
        %v2375 = vmul.f32 %v817, %v2218
        %v2376 = vmul.f32 %v819, %v2223
        %v2377 = vmul.f32 %v822, %v2228
        %v2378 = vmul.f32 %v824, %v2233
        %v2379 = vmul.f32 %v827, %v2238
        %v2380 = vmul.f32 %v829, %v2243
        %v2381 = vmul.f32 %v832, %v2248
        %v2382 = vmul.f32 %v834, %v2253
        %v2383 = vmul.f32 %v837, %v2258
        %v2384 = vmul.f32 %v839, %v2263
        %v2385 = vmul.f32 %v842, %v2268
        %v2386 = vmul.f32 %v844, %v2273
        %v2387 = vmul.f32 %v847, %v2278
        %v2388 = vmul.f32 %v849, %v2283
        %v2389 = vmul.f32 %v852, %v2288
        %v2390 = vmul.f32 %v854, %v2293
        %v2391 = vmul.f32 %v954, %v2298
        %v2392 = vmul.f32 %v956, %v2303
        %v2393 = vmul.f32 %v959, %v2308
        %v2394 = vmul.f32 %v961, %v2313
        %v2395 = vmul.f32 %v964, %v2318
        %v2396 = vmul.f32 %v966, %v2323
        %v2397 = vmul.f32 %v969, %v2328
        %v2398 = vmul.f32 %v971, %v2333
        %v2399 = vmul.f32 %v974, %v2338
        %v2400 = vmul.f32 %v976, %v2343
        %v2401 = vmul.f32 %v979, %v2348
        %v2402 = vmul.f32 %v981, %v2353
        %v2403 = vmul.f32 %v984, %v2358
        %v2404 = vmul.f32 %v986, %v2363
        %v2405 = vmul.f32 %v989, %v2368
        %v2406 = vmul.f32 %v991, %v2373
        %2408 = vset.pattern.permute.xlu0 0
        %2409 = vperm.xlu0 %2408, %v2183
        %v2410 = vpop.permute.xlu0 %2409
        %2413 = vset.pattern.permute.xlu0 0
        %2414 = vperm.xlu0 %2413, %v2184
        %v2415 = vpop.permute.xlu0 %2414
        %2418 = vset.pattern.permute.xlu0 0
        %2419 = vperm.xlu0 %2418, %v2185
        %v2420 = vpop.permute.xlu0 %2419
        %2423 = vset.pattern.permute.xlu0 0
        %2424 = vperm.xlu0 %2423, %v2186
        %v2425 = vpop.permute.xlu0 %2424
        %2428 = vset.pattern.permute.xlu0 0
        %2429 = vperm.xlu0 %2428, %v2187
        %v2430 = vpop.permute.xlu0 %2429
        %2433 = vset.pattern.permute.xlu0 0
        %2434 = vperm.xlu0 %2433, %v2188
        %v2435 = vpop.permute.xlu0 %2434
        %2438 = vset.pattern.permute.xlu0 0
        %2439 = vperm.xlu0 %2438, %v2189
        %v2440 = vpop.permute.xlu0 %2439
        %2443 = vset.pattern.permute.xlu0 0
        %2444 = vperm.xlu0 %2443, %v2190
        %v2445 = vpop.permute.xlu0 %2444
        %2448 = vset.pattern.permute.xlu0 0
        %2449 = vperm.xlu0 %2448, %v2191
        %v2450 = vpop.permute.xlu0 %2449
        %2453 = vset.pattern.permute.xlu0 0
        %2454 = vperm.xlu0 %2453, %v2192
        %v2455 = vpop.permute.xlu0 %2454
        %2458 = vset.pattern.permute.xlu0 0
        %2459 = vperm.xlu0 %2458, %v2193
        %v2460 = vpop.permute.xlu0 %2459
        %2463 = vset.pattern.permute.xlu0 0
        %2464 = vperm.xlu0 %2463, %v2194
        %v2465 = vpop.permute.xlu0 %2464
        %2468 = vset.pattern.permute.xlu0 0
        %2469 = vperm.xlu0 %2468, %v2195
        %v2470 = vpop.permute.xlu0 %2469
        %2473 = vset.pattern.permute.xlu0 0
        %2474 = vperm.xlu0 %2473, %v2196
        %v2475 = vpop.permute.xlu0 %2474
        %2478 = vset.pattern.permute.xlu0 0
        %2479 = vperm.xlu0 %2478, %v2197
        %v2480 = vpop.permute.xlu0 %2479
        %2483 = vset.pattern.permute.xlu0 0
        %2484 = vperm.xlu0 %2483, %v2198
        %v2485 = vpop.permute.xlu0 %2484
        %2488 = vset.pattern.permute.xlu0 0
        %2489 = vperm.xlu0 %2488, %v2199
        %v2490 = vpop.permute.xlu0 %2489
        %2493 = vset.pattern.permute.xlu0 0
        %2494 = vperm.xlu0 %2493, %v2200
        %v2495 = vpop.permute.xlu0 %2494
        %2498 = vset.pattern.permute.xlu0 0
        %2499 = vperm.xlu0 %2498, %v2201
        %v2500 = vpop.permute.xlu0 %2499
        %2503 = vset.pattern.permute.xlu0 0
        %2504 = vperm.xlu0 %2503, %v2202
        %v2505 = vpop.permute.xlu0 %2504
        %2508 = vset.pattern.permute.xlu0 0
        %2509 = vperm.xlu0 %2508, %v2203
        %v2510 = vpop.permute.xlu0 %2509
        %2513 = vset.pattern.permute.xlu0 0
        %2514 = vperm.xlu0 %2513, %v2204
        %v2515 = vpop.permute.xlu0 %2514
        %2518 = vset.pattern.permute.xlu0 0
        %2519 = vperm.xlu0 %2518, %v2205
        %v2520 = vpop.permute.xlu0 %2519
        %2523 = vset.pattern.permute.xlu0 0
        %2524 = vperm.xlu0 %2523, %v2206
        %v2525 = vpop.permute.xlu0 %2524
        %2528 = vset.pattern.permute.xlu0 0
        %2529 = vperm.xlu0 %2528, %v2207
        %v2530 = vpop.permute.xlu0 %2529
        %2533 = vset.pattern.permute.xlu0 0
        %2534 = vperm.xlu0 %2533, %v2208
        %v2535 = vpop.permute.xlu0 %2534
        %2538 = vset.pattern.permute.xlu0 0
        %2539 = vperm.xlu0 %2538, %v2209
        %v2540 = vpop.permute.xlu0 %2539
        %2543 = vset.pattern.permute.xlu0 0
        %2544 = vperm.xlu0 %2543, %v2210
        %v2545 = vpop.permute.xlu0 %2544
        %2548 = vset.pattern.permute.xlu0 0
        %2549 = vperm.xlu0 %2548, %v2211
        %v2550 = vpop.permute.xlu0 %2549
        %2553 = vset.pattern.permute.xlu0 0
        %2554 = vperm.xlu0 %2553, %v2212
        %v2555 = vpop.permute.xlu0 %2554
        %2558 = vset.pattern.permute.xlu0 0
        %2559 = vperm.xlu0 %2558, %v2213
        %v2560 = vpop.permute.xlu0 %2559
        %2563 = vset.pattern.permute.xlu0 0
        %2564 = vperm.xlu0 %2563, %v2214
        %v2565 = vpop.permute.xlu0 %2564
        %v2567 = vadd.f32 %v2375, %v2410
        %v2568 = vadd.f32 %v2376, %v2415
        %v2569 = vadd.f32 %v2377, %v2420
        %v2570 = vadd.f32 %v2378, %v2425
        %v2571 = vadd.f32 %v2379, %v2430
        %v2572 = vadd.f32 %v2380, %v2435
        %v2573 = vadd.f32 %v2381, %v2440
        %v2574 = vadd.f32 %v2382, %v2445
        %v2575 = vadd.f32 %v2383, %v2450
        %v2576 = vadd.f32 %v2384, %v2455
        %v2577 = vadd.f32 %v2385, %v2460
        %v2578 = vadd.f32 %v2386, %v2465
        %v2579 = vadd.f32 %v2387, %v2470
        %v2580 = vadd.f32 %v2388, %v2475
        %v2581 = vadd.f32 %v2389, %v2480
        %v2582 = vadd.f32 %v2390, %v2485
        %v2583 = vadd.f32 %v2391, %v2490
        %v2584 = vadd.f32 %v2392, %v2495
        %v2585 = vadd.f32 %v2393, %v2500
        %v2586 = vadd.f32 %v2394, %v2505
        %v2587 = vadd.f32 %v2395, %v2510
        %v2588 = vadd.f32 %v2396, %v2515
        %v2589 = vadd.f32 %v2397, %v2520
        %v2590 = vadd.f32 %v2398, %v2525
        %v2591 = vadd.f32 %v2399, %v2530
        %v2592 = vadd.f32 %v2400, %v2535
        %v2593 = vadd.f32 %v2401, %v2540
        %v2594 = vadd.f32 %v2402, %v2545
        %v2595 = vadd.f32 %v2403, %v2550
        %v2596 = vadd.f32 %v2404, %v2555
        %v2597 = vadd.f32 %v2405, %v2560
        %v2598 = vadd.f32 %v2406, %v2565
        %v2599 = vmax.f32 %v2567, 0.0
        %v2600 = vmax.f32 %v2568, 0.0
        %v2601 = vmax.f32 %v2569, 0.0
        %v2602 = vmax.f32 %v2570, 0.0
        %v2603 = vmax.f32 %v2571, 0.0
        %v2604 = vmax.f32 %v2572, 0.0
        %v2605 = vmax.f32 %v2573, 0.0
        %v2606 = vmax.f32 %v2574, 0.0
        %v2607 = vmax.f32 %v2575, 0.0
        %v2608 = vmax.f32 %v2576, 0.0
        %v2609 = vmax.f32 %v2577, 0.0
        %v2610 = vmax.f32 %v2578, 0.0
        %v2611 = vmax.f32 %v2579, 0.0
        %v2612 = vmax.f32 %v2580, 0.0
        %v2613 = vmax.f32 %v2581, 0.0
        %v2614 = vmax.f32 %v2582, 0.0
        %v2615 = vmax.f32 %v2583, 0.0
        %v2616 = vmax.f32 %v2584, 0.0
        %v2617 = vmax.f32 %v2585, 0.0
        %v2618 = vmax.f32 %v2586, 0.0
        %v2619 = vmax.f32 %v2587, 0.0
        %v2620 = vmax.f32 %v2588, 0.0
        %v2621 = vmax.f32 %v2589, 0.0
        %v2622 = vmax.f32 %v2590, 0.0
        %v2623 = vmax.f32 %v2591, 0.0
        %v2624 = vmax.f32 %v2592, 0.0
        %v2625 = vmax.f32 %v2593, 0.0
        %v2626 = vmax.f32 %v2594, 0.0
        %v2627 = vmax.f32 %v2595, 0.0
        %v2628 = vmax.f32 %v2596, 0.0
        %v2629 = vmax.f32 %v2597, 0.0
        %v2630 = vmax.f32 %v2598, 0.0
        %v2631 = vpack.c.bf16 %v456, %v455
        %v2632 = vpack.c.bf16 %v458, %v457
        %v2633 = vpack.c.bf16 %v460, %v459
        %v2634 = vpack.c.bf16 %v462, %v461
        %v2635 = vpack.c.bf16 %v464, %v463
        %v2636 = vpack.c.bf16 %v466, %v465
        %v2637 = vpack.c.bf16 %v468, %v467
        %v2638 = vpack.c.bf16 %v470, %v469
        %v2639 = vpack.c.bf16 %v472, %v471
        %v2640 = vpack.c.bf16 %v474, %v473
        %v2641 = vpack.c.bf16 %v476, %v475
        %v2642 = vpack.c.bf16 %v478, %v477
        %v2643 = vpack.c.bf16 %v480, %v479
        %v2644 = vpack.c.bf16 %v482, %v481
        %v2645 = vpack.c.bf16 %v484, %v483
        %v2646 = vpack.c.bf16 %v486, %v485
        %v2663 = vunpack.c.l.b16 %v551
        %v2664 = vunpack.c.l.b16 %v552
        %v2665 = vunpack.c.l.b16 %v553
        %v2666 = vunpack.c.l.b16 %v554
        %v2667 = vunpack.c.l.b16 %v555
        %v2668 = vunpack.c.l.b16 %v556
        %v2669 = vunpack.c.l.b16 %v557
        %v2670 = vunpack.c.l.b16 %v558
        %v2671 = vunpack.c.l.b16 %v559
        %v2672 = vunpack.c.l.b16 %v560
        %v2673 = vunpack.c.l.b16 %v561
        %v2674 = vunpack.c.l.b16 %v562
        %v2675 = vunpack.c.l.b16 %v563
        %v2676 = vunpack.c.l.b16 %v564
        %v2677 = vunpack.c.l.b16 %v565
        %v2678 = vunpack.c.l.b16 %v566
        %v2679 = vpack.c.b16 %v2664, %v2663
        %v2680 = vpack.c.b16 %v2666, %v2665
        %v2681 = vpack.c.b16 %v2668, %v2667
        %v2682 = vpack.c.b16 %v2670, %v2669
        %v2683 = vpack.c.b16 %v2672, %v2671
        %v2684 = vpack.c.b16 %v2674, %v2673
        %v2685 = vpack.c.b16 %v2676, %v2675
        %v2686 = vpack.c.b16 %v2678, %v2677
        %2695 = vmatpush.bf16.msra.mxu0 %v2686
        %2696 = vmatpush.bf16.msra.mxu0 %v2685
        %2697 = vmatpush.bf16.msra.mxu0 %v2684
        %2698 = vmatpush.bf16.msra.mxu0 %v2683
        %2699 = vmatpush.bf16.msra.mxu0 %v2682
        %2700 = vmatpush.bf16.msra.mxu0 %v2681
        %2701 = vmatpush.bf16.msra.mxu0 %v2680
        %2702 = vmatpush.bf16.msra.mxu0 %v2679
        %2703 = vmatmul.bf16.gmra.mxu0 %v2631
        %v2704 = vpop.f32.mrf.mxu0
        %v2705 = vadd.f32 0.0, %v2704
        %v2706 = vpop.f32.mrf.mxu0
        %v2707 = vadd.f32 0.0, %v2706
        %2708 = vmatmul.bf16.gmra.mxu0 %v2632
        %v2709 = vpop.f32.mrf.mxu0
        %v2710 = vadd.f32 0.0, %v2709
        %v2711 = vpop.f32.mrf.mxu0
        %v2712 = vadd.f32 0.0, %v2711
        %2713 = vmatmul.bf16.gmra.mxu0 %v2633
        %v2714 = vpop.f32.mrf.mxu0
        %v2715 = vadd.f32 0.0, %v2714
        %v2716 = vpop.f32.mrf.mxu0
        %v2717 = vadd.f32 0.0, %v2716
        %2718 = vmatmul.bf16.gmra.mxu0 %v2634
        %v2719 = vpop.f32.mrf.mxu0
        %v2720 = vadd.f32 0.0, %v2719
        %v2721 = vpop.f32.mrf.mxu0
        %v2722 = vadd.f32 0.0, %v2721
        %2723 = vmatmul.bf16.gmra.mxu0 %v2635
        %v2724 = vpop.f32.mrf.mxu0
        %v2725 = vadd.f32 0.0, %v2724
        %v2726 = vpop.f32.mrf.mxu0
        %v2727 = vadd.f32 0.0, %v2726
        %2728 = vmatmul.bf16.gmra.mxu0 %v2636
        %v2729 = vpop.f32.mrf.mxu0
        %v2730 = vadd.f32 0.0, %v2729
        %v2731 = vpop.f32.mrf.mxu0
        %v2732 = vadd.f32 0.0, %v2731
        %2733 = vmatmul.bf16.gmra.mxu0 %v2637
        %v2734 = vpop.f32.mrf.mxu0
        %v2735 = vadd.f32 0.0, %v2734
        %v2736 = vpop.f32.mrf.mxu0
        %v2737 = vadd.f32 0.0, %v2736
        %2738 = vmatmul.bf16.gmra.mxu0 %v2638
        %v2739 = vpop.f32.mrf.mxu0
        %v2740 = vadd.f32 0.0, %v2739
        %v2741 = vpop.f32.mrf.mxu0
        %v2742 = vadd.f32 0.0, %v2741
        %2743 = vmatmul.bf16.gmra.mxu0 %v2639
        %v2744 = vpop.f32.mrf.mxu0
        %v2745 = vadd.f32 0.0, %v2744
        %v2746 = vpop.f32.mrf.mxu0
        %v2747 = vadd.f32 0.0, %v2746
        %2748 = vmatmul.bf16.gmra.mxu0 %v2640
        %v2749 = vpop.f32.mrf.mxu0
        %v2750 = vadd.f32 0.0, %v2749
        %v2751 = vpop.f32.mrf.mxu0
        %v2752 = vadd.f32 0.0, %v2751
        %2753 = vmatmul.bf16.gmra.mxu0 %v2641
        %v2754 = vpop.f32.mrf.mxu0
        %v2755 = vadd.f32 0.0, %v2754
        %v2756 = vpop.f32.mrf.mxu0
        %v2757 = vadd.f32 0.0, %v2756
        %2758 = vmatmul.bf16.gmra.mxu0 %v2642
        %v2759 = vpop.f32.mrf.mxu0
        %v2760 = vadd.f32 0.0, %v2759
        %v2761 = vpop.f32.mrf.mxu0
        %v2762 = vadd.f32 0.0, %v2761
        %2763 = vmatmul.bf16.gmra.mxu0 %v2643
        %v2764 = vpop.f32.mrf.mxu0
        %v2765 = vadd.f32 0.0, %v2764
        %v2766 = vpop.f32.mrf.mxu0
        %v2767 = vadd.f32 0.0, %v2766
        %2768 = vmatmul.bf16.gmra.mxu0 %v2644
        %v2769 = vpop.f32.mrf.mxu0
        %v2770 = vadd.f32 0.0, %v2769
        %v2771 = vpop.f32.mrf.mxu0
        %v2772 = vadd.f32 0.0, %v2771
        %2773 = vmatmul.bf16.gmra.mxu0 %v2645
        %v2774 = vpop.f32.mrf.mxu0
        %v2775 = vadd.f32 0.0, %v2774
        %v2776 = vpop.f32.mrf.mxu0
        %v2777 = vadd.f32 0.0, %v2776
        %2778 = vmatmul.bf16.gmra.mxu0 %v2646
        %v2779 = vpop.f32.mrf.mxu0
        %v2780 = vadd.f32 0.0, %v2779
        %v2781 = vpop.f32.mrf.mxu0
        %v2782 = vadd.f32 0.0, %v2781
        %2783 = vdwg.mxu0
        %v2784 = vpack.c.bf16 %v2600, %v2599
        %v2785 = vpack.c.bf16 %v2602, %v2601
        %v2786 = vpack.c.bf16 %v2604, %v2603
        %v2787 = vpack.c.bf16 %v2606, %v2605
        %v2788 = vpack.c.bf16 %v2608, %v2607
        %v2789 = vpack.c.bf16 %v2610, %v2609
        %v2790 = vpack.c.bf16 %v2612, %v2611
        %v2791 = vpack.c.bf16 %v2614, %v2613
        %v2792 = vpack.c.bf16 %v2616, %v2615
        %v2793 = vpack.c.bf16 %v2618, %v2617
        %v2794 = vpack.c.bf16 %v2620, %v2619
        %v2795 = vpack.c.bf16 %v2622, %v2621
        %v2796 = vpack.c.bf16 %v2624, %v2623
        %v2797 = vpack.c.bf16 %v2626, %v2625
        %v2798 = vpack.c.bf16 %v2628, %v2627
        %v2799 = vpack.c.bf16 %v2630, %v2629
        %2800 = vmatpush.bf16.msra.mxu0 %v2686
        %2801 = vmatpush.bf16.msra.mxu0 %v2685
        %2802 = vmatpush.bf16.msra.mxu0 %v2684
        %2803 = vmatpush.bf16.msra.mxu0 %v2683
        %2804 = vmatpush.bf16.msra.mxu0 %v2682
        %2805 = vmatpush.bf16.msra.mxu0 %v2681
        %2806 = vmatpush.bf16.msra.mxu0 %v2680
        %2807 = vmatpush.bf16.msra.mxu0 %v2679
        %2808 = vmatmul.bf16.gmra.mxu0 %v2784
        %v2809 = vpop.f32.mrf.mxu0
        %v2810 = vadd.f32 0.0, %v2809
        %v2811 = vpop.f32.mrf.mxu0
        %v2812 = vadd.f32 0.0, %v2811
        %2813 = vmatmul.bf16.gmra.mxu0 %v2785
        %v2814 = vpop.f32.mrf.mxu0
        %v2815 = vadd.f32 0.0, %v2814
        %v2816 = vpop.f32.mrf.mxu0
        %v2817 = vadd.f32 0.0, %v2816
        %2818 = vmatmul.bf16.gmra.mxu0 %v2786
        %v2819 = vpop.f32.mrf.mxu0
        %v2820 = vadd.f32 0.0, %v2819
        %v2821 = vpop.f32.mrf.mxu0
        %v2822 = vadd.f32 0.0, %v2821
        %2823 = vmatmul.bf16.gmra.mxu0 %v2787
        %v2824 = vpop.f32.mrf.mxu0
        %v2825 = vadd.f32 0.0, %v2824
        %v2826 = vpop.f32.mrf.mxu0
        %v2827 = vadd.f32 0.0, %v2826
        %2828 = vmatmul.bf16.gmra.mxu0 %v2788
        %v2829 = vpop.f32.mrf.mxu0
        %v2830 = vadd.f32 0.0, %v2829
        %v2831 = vpop.f32.mrf.mxu0
        %v2832 = vadd.f32 0.0, %v2831
        %2833 = vmatmul.bf16.gmra.mxu0 %v2789
        %v2834 = vpop.f32.mrf.mxu0
        %v2835 = vadd.f32 0.0, %v2834
        %v2836 = vpop.f32.mrf.mxu0
        %v2837 = vadd.f32 0.0, %v2836
        %2838 = vmatmul.bf16.gmra.mxu0 %v2790
        %v2839 = vpop.f32.mrf.mxu0
        %v2840 = vadd.f32 0.0, %v2839
        %v2841 = vpop.f32.mrf.mxu0
        %v2842 = vadd.f32 0.0, %v2841
        %2843 = vmatmul.bf16.gmra.mxu0 %v2791
        %v2844 = vpop.f32.mrf.mxu0
        %v2845 = vadd.f32 0.0, %v2844
        %v2846 = vpop.f32.mrf.mxu0
        %v2847 = vadd.f32 0.0, %v2846
        %2848 = vmatmul.bf16.gmra.mxu0 %v2792
        %v2849 = vpop.f32.mrf.mxu0
        %v2850 = vadd.f32 0.0, %v2849
        %v2851 = vpop.f32.mrf.mxu0
        %v2852 = vadd.f32 0.0, %v2851
        %2853 = vmatmul.bf16.gmra.mxu0 %v2793
        %v2854 = vpop.f32.mrf.mxu0
        %v2855 = vadd.f32 0.0, %v2854
        %v2856 = vpop.f32.mrf.mxu0
        %v2857 = vadd.f32 0.0, %v2856
        %2858 = vmatmul.bf16.gmra.mxu0 %v2794
        %v2859 = vpop.f32.mrf.mxu0
        %v2860 = vadd.f32 0.0, %v2859
        %v2861 = vpop.f32.mrf.mxu0
        %v2862 = vadd.f32 0.0, %v2861
        %2863 = vmatmul.bf16.gmra.mxu0 %v2795
        %v2864 = vpop.f32.mrf.mxu0
        %v2865 = vadd.f32 0.0, %v2864
        %v2866 = vpop.f32.mrf.mxu0
        %v2867 = vadd.f32 0.0, %v2866
        %2868 = vmatmul.bf16.gmra.mxu0 %v2796
        %v2869 = vpop.f32.mrf.mxu0
        %v2870 = vadd.f32 0.0, %v2869
        %v2871 = vpop.f32.mrf.mxu0
        %v2872 = vadd.f32 0.0, %v2871
        %2873 = vmatmul.bf16.gmra.mxu0 %v2797
        %v2874 = vpop.f32.mrf.mxu0
        %v2875 = vadd.f32 0.0, %v2874
        %v2876 = vpop.f32.mrf.mxu0
        %v2877 = vadd.f32 0.0, %v2876
        %2878 = vmatmul.bf16.gmra.mxu0 %v2798
        %v2879 = vpop.f32.mrf.mxu0
        %v2880 = vadd.f32 0.0, %v2879
        %v2881 = vpop.f32.mrf.mxu0
        %v2882 = vadd.f32 0.0, %v2881
        %2883 = vmatmul.bf16.gmra.mxu0 %v2799
        %v2884 = vpop.f32.mrf.mxu0
        %v2885 = vadd.f32 0.0, %v2884
        %v2886 = vpop.f32.mrf.mxu0
        %v2887 = vadd.f32 0.0, %v2886
        %2888 = vdwg.mxu0
        %v2889 = vld [vmem:[%s8] sm:$0x1]
        %s2890 = scalar_lea.vmem %s8, 1
        %v2891 = vld [vmem:[%s2890] sm:$0x1]
        %vm2892 = vcmask 523264
        %v2893 = vsel %vm2892, %v2705, 0.0
        %2894 = vadd.xlane.f32.xlu0 %v2893
        %v2895 = vpop.xlane.xlu0 %2894
        %v2896 = vsel %vm2892, %v2707, 0.0
        %2897 = vadd.xlane.f32.xlu0 %v2896
        %v2898 = vpop.xlane.xlu0 %2897
        %v2899 = vsel %vm2892, %v2710, 0.0
        %2900 = vadd.xlane.f32.xlu0 %v2899
        %v2901 = vpop.xlane.xlu0 %2900
        %v2902 = vsel %vm2892, %v2712, 0.0
        %2903 = vadd.xlane.f32.xlu0 %v2902
        %v2904 = vpop.xlane.xlu0 %2903
        %v2905 = vsel %vm2892, %v2715, 0.0
        %2906 = vadd.xlane.f32.xlu0 %v2905
        %v2907 = vpop.xlane.xlu0 %2906
        %v2908 = vsel %vm2892, %v2717, 0.0
        %2909 = vadd.xlane.f32.xlu0 %v2908
        %v2910 = vpop.xlane.xlu0 %2909
        %v2911 = vsel %vm2892, %v2720, 0.0
        %2912 = vadd.xlane.f32.xlu0 %v2911
        %v2913 = vpop.xlane.xlu0 %2912
        %v2914 = vsel %vm2892, %v2722, 0.0
        %2915 = vadd.xlane.f32.xlu0 %v2914
        %v2916 = vpop.xlane.xlu0 %2915
        %v2917 = vsel %vm2892, %v2810, 0.0
        %2918 = vadd.xlane.f32.xlu0 %v2917
        %v2919 = vpop.xlane.xlu0 %2918
        %v2920 = vsel %vm2892, %v2812, 0.0
        %2921 = vadd.xlane.f32.xlu0 %v2920
        %v2922 = vpop.xlane.xlu0 %2921
        %v2923 = vsel %vm2892, %v2815, 0.0
        %2924 = vadd.xlane.f32.xlu0 %v2923
        %v2925 = vpop.xlane.xlu0 %2924
        %v2926 = vsel %vm2892, %v2817, 0.0
        %2927 = vadd.xlane.f32.xlu0 %v2926
        %v2928 = vpop.xlane.xlu0 %2927
        %v2929 = vsel %vm2892, %v2820, 0.0
        %2930 = vadd.xlane.f32.xlu0 %v2929
        %v2931 = vpop.xlane.xlu0 %2930
        %v2932 = vsel %vm2892, %v2822, 0.0
        %2933 = vadd.xlane.f32.xlu0 %v2932
        %v2934 = vpop.xlane.xlu0 %2933
        %v2935 = vsel %vm2892, %v2825, 0.0
        %2936 = vadd.xlane.f32.xlu0 %v2935
        %v2937 = vpop.xlane.xlu0 %2936
        %v2938 = vsel %vm2892, %v2827, 0.0
        %2939 = vadd.xlane.f32.xlu0 %v2938
        %v2940 = vpop.xlane.xlu0 %2939
        %v2941 = vsel %vm2892, %v2725, 0.0
        %2942 = vadd.xlane.f32.xlu0 %v2941
        %v2943 = vpop.xlane.xlu0 %2942
        %v2944 = vsel %vm2892, %v2727, 0.0
        %2945 = vadd.xlane.f32.xlu0 %v2944
        %v2946 = vpop.xlane.xlu0 %2945
        %v2947 = vsel %vm2892, %v2730, 0.0
        %2948 = vadd.xlane.f32.xlu0 %v2947
        %v2949 = vpop.xlane.xlu0 %2948
        %v2950 = vsel %vm2892, %v2732, 0.0
        %2951 = vadd.xlane.f32.xlu0 %v2950
        %v2952 = vpop.xlane.xlu0 %2951
        %v2953 = vsel %vm2892, %v2735, 0.0
        %2954 = vadd.xlane.f32.xlu0 %v2953
        %v2955 = vpop.xlane.xlu0 %2954
        %v2956 = vsel %vm2892, %v2737, 0.0
        %2957 = vadd.xlane.f32.xlu0 %v2956
        %v2958 = vpop.xlane.xlu0 %2957
        %v2959 = vsel %vm2892, %v2740, 0.0
        %2960 = vadd.xlane.f32.xlu0 %v2959
        %v2961 = vpop.xlane.xlu0 %2960
        %v2962 = vsel %vm2892, %v2742, 0.0
        %2963 = vadd.xlane.f32.xlu0 %v2962
        %v2964 = vpop.xlane.xlu0 %2963
        %v2965 = vsel %vm2892, %v2830, 0.0
        %2966 = vadd.xlane.f32.xlu0 %v2965
        %v2967 = vpop.xlane.xlu0 %2966
        %v2968 = vsel %vm2892, %v2832, 0.0
        %2969 = vadd.xlane.f32.xlu0 %v2968
        %v2970 = vpop.xlane.xlu0 %2969
        %v2971 = vsel %vm2892, %v2835, 0.0
        %2972 = vadd.xlane.f32.xlu0 %v2971
        %v2973 = vpop.xlane.xlu0 %2972
        %v2974 = vsel %vm2892, %v2837, 0.0
        %2975 = vadd.xlane.f32.xlu0 %v2974
        %v2976 = vpop.xlane.xlu0 %2975
        %v2977 = vsel %vm2892, %v2840, 0.0
        %2978 = vadd.xlane.f32.xlu0 %v2977
        %v2979 = vpop.xlane.xlu0 %2978
        %v2980 = vsel %vm2892, %v2842, 0.0
        %2981 = vadd.xlane.f32.xlu0 %v2980
        %v2982 = vpop.xlane.xlu0 %2981
        %v2983 = vsel %vm2892, %v2845, 0.0
        %2984 = vadd.xlane.f32.xlu0 %v2983
        %v2985 = vpop.xlane.xlu0 %2984
        %v2986 = vsel %vm2892, %v2847, 0.0
        %2987 = vadd.xlane.f32.xlu0 %v2986
        %v2988 = vpop.xlane.xlu0 %2987
        %v2989 = vsel %vm2892, %v2745, 0.0
        %2990 = vadd.xlane.f32.xlu0 %v2989
        %v2991 = vpop.xlane.xlu0 %2990
        %v2992 = vsel %vm2892, %v2747, 0.0
        %2993 = vadd.xlane.f32.xlu0 %v2992
        %v2994 = vpop.xlane.xlu0 %2993
        %v2995 = vsel %vm2892, %v2750, 0.0
        %2996 = vadd.xlane.f32.xlu0 %v2995
        %v2997 = vpop.xlane.xlu0 %2996
        %v2998 = vsel %vm2892, %v2752, 0.0
        %2999 = vadd.xlane.f32.xlu0 %v2998
        %v3000 = vpop.xlane.xlu0 %2999
        %v3001 = vsel %vm2892, %v2755, 0.0
        %3002 = vadd.xlane.f32.xlu0 %v3001
        %v3003 = vpop.xlane.xlu0 %3002
        %v3004 = vsel %vm2892, %v2757, 0.0
        %3005 = vadd.xlane.f32.xlu0 %v3004
        %v3006 = vpop.xlane.xlu0 %3005
        %v3007 = vsel %vm2892, %v2760, 0.0
        %3008 = vadd.xlane.f32.xlu0 %v3007
        %v3009 = vpop.xlane.xlu0 %3008
        %v3010 = vsel %vm2892, %v2762, 0.0
        %3011 = vadd.xlane.f32.xlu0 %v3010
        %v3012 = vpop.xlane.xlu0 %3011
        %v3013 = vsel %vm2892, %v2850, 0.0
        %3014 = vadd.xlane.f32.xlu0 %v3013
        %v3015 = vpop.xlane.xlu0 %3014
        %v3016 = vsel %vm2892, %v2852, 0.0
        %3017 = vadd.xlane.f32.xlu0 %v3016
        %v3018 = vpop.xlane.xlu0 %3017
        %v3019 = vsel %vm2892, %v2855, 0.0
        %3020 = vadd.xlane.f32.xlu0 %v3019
        %v3021 = vpop.xlane.xlu0 %3020
        %v3022 = vsel %vm2892, %v2857, 0.0
        %3023 = vadd.xlane.f32.xlu0 %v3022
        %v3024 = vpop.xlane.xlu0 %3023
        %v3025 = vsel %vm2892, %v2860, 0.0
        %3026 = vadd.xlane.f32.xlu0 %v3025
        %v3027 = vpop.xlane.xlu0 %3026
        %v3028 = vsel %vm2892, %v2862, 0.0
        %3029 = vadd.xlane.f32.xlu0 %v3028
        %v3030 = vpop.xlane.xlu0 %3029
        %v3031 = vsel %vm2892, %v2865, 0.0
        %3032 = vadd.xlane.f32.xlu0 %v3031
        %v3033 = vpop.xlane.xlu0 %3032
        %v3034 = vsel %vm2892, %v2867, 0.0
        %3035 = vadd.xlane.f32.xlu0 %v3034
        %v3036 = vpop.xlane.xlu0 %3035
        %v3037 = vsel %vm2892, %v2765, 0.0
        %3038 = vadd.xlane.f32.xlu0 %v3037
        %v3039 = vpop.xlane.xlu0 %3038
        %v3040 = vsel %vm2892, %v2767, 0.0
        %3041 = vadd.xlane.f32.xlu0 %v3040
        %v3042 = vpop.xlane.xlu0 %3041
        %v3043 = vsel %vm2892, %v2770, 0.0
        %3044 = vadd.xlane.f32.xlu0 %v3043
        %v3045 = vpop.xlane.xlu0 %3044
        %v3046 = vsel %vm2892, %v2772, 0.0
        %3047 = vadd.xlane.f32.xlu0 %v3046
        %v3048 = vpop.xlane.xlu0 %3047
        %v3049 = vsel %vm2892, %v2775, 0.0
        %3050 = vadd.xlane.f32.xlu0 %v3049
        %v3051 = vpop.xlane.xlu0 %3050
        %v3052 = vsel %vm2892, %v2777, 0.0
        %3053 = vadd.xlane.f32.xlu0 %v3052
        %v3054 = vpop.xlane.xlu0 %3053
        %v3055 = vsel %vm2892, %v2780, 0.0
        %3056 = vadd.xlane.f32.xlu0 %v3055
        %v3057 = vpop.xlane.xlu0 %3056
        %v3058 = vsel %vm2892, %v2782, 0.0
        %3059 = vadd.xlane.f32.xlu0 %v3058
        %v3060 = vpop.xlane.xlu0 %3059
        %v3061 = vsel %vm2892, %v2870, 0.0
        %3062 = vadd.xlane.f32.xlu0 %v3061
        %v3063 = vpop.xlane.xlu0 %3062
        %v3064 = vsel %vm2892, %v2872, 0.0
        %3065 = vadd.xlane.f32.xlu0 %v3064
        %v3066 = vpop.xlane.xlu0 %3065
        %v3067 = vsel %vm2892, %v2875, 0.0
        %3068 = vadd.xlane.f32.xlu0 %v3067
        %v3069 = vpop.xlane.xlu0 %3068
        %v3070 = vsel %vm2892, %v2877, 0.0
        %3071 = vadd.xlane.f32.xlu0 %v3070
        %v3072 = vpop.xlane.xlu0 %3071
        %v3073 = vsel %vm2892, %v2880, 0.0
        %3074 = vadd.xlane.f32.xlu0 %v3073
        %v3075 = vpop.xlane.xlu0 %3074
        %v3076 = vsel %vm2892, %v2882, 0.0
        %3077 = vadd.xlane.f32.xlu0 %v3076
        %v3078 = vpop.xlane.xlu0 %3077
        %v3079 = vsel %vm2892, %v2885, 0.0
        %3080 = vadd.xlane.f32.xlu0 %v3079
        %v3081 = vpop.xlane.xlu0 %3080
        %v3082 = vsel %vm2892, %v2887, 0.0
        %3083 = vadd.xlane.f32.xlu0 %v3082
        %v3084 = vpop.xlane.xlu0 %3083
        %v3085 = vadd.f32 %v2895, %v2898
        %v3086 = vadd.f32 %v3085, %v2901
        %v3087 = vadd.f32 %v3086, %v2904
        %v3088 = vadd.f32 %v3087, %v2907
        %v3089 = vadd.f32 %v3088, %v2910
        %v3090 = vadd.f32 %v3089, %v2913
        %v3091 = vadd.f32 %v3090, %v2916
        %v3092 = vadd.f32 %v3091, %v2919
        %v3093 = vadd.f32 %v3092, %v2922
        %v3094 = vadd.f32 %v3093, %v2925
        %v3095 = vadd.f32 %v3094, %v2928
        %v3096 = vadd.f32 %v3095, %v2931
        %v3097 = vadd.f32 %v3096, %v2934
        %v3098 = vadd.f32 %v3097, %v2937
        %v3099 = vadd.f32 %v3098, %v2940
        %v3100 = vrot.slane %v3099, 4
        %v3101 = vadd.f32 %v3099, %v3100
        %v3102 = vrot.slane %v3101, 2
        %v3103 = vadd.f32 %v3101, %v3102
        %v3104 = vrot.slane %v3103, 1
        %v3105 = vadd.f32 %v3103, %v3104
        %v3106 = vadd.f32 %v2943, %v2946
        %v3107 = vadd.f32 %v3106, %v2949
        %v3108 = vadd.f32 %v3107, %v2952
        %v3109 = vadd.f32 %v3108, %v2955
        %v3110 = vadd.f32 %v3109, %v2958
        %v3111 = vadd.f32 %v3110, %v2961
        %v3112 = vadd.f32 %v3111, %v2964
        %v3113 = vadd.f32 %v3112, %v2967
        %v3114 = vadd.f32 %v3113, %v2970
        %v3115 = vadd.f32 %v3114, %v2973
        %v3116 = vadd.f32 %v3115, %v2976
        %v3117 = vadd.f32 %v3116, %v2979
        %v3118 = vadd.f32 %v3117, %v2982
        %v3119 = vadd.f32 %v3118, %v2985
        %v3120 = vadd.f32 %v3119, %v2988
        %v3121 = vrot.slane %v3120, 4
        %v3122 = vadd.f32 %v3120, %v3121
        %v3123 = vrot.slane %v3122, 2
        %v3124 = vadd.f32 %v3122, %v3123
        %v3125 = vrot.slane %v3124, 1
        %v3126 = vadd.f32 %v3124, %v3125
        %v3127 = vadd.f32 %v2991, %v2994
        %v3128 = vadd.f32 %v3127, %v2997
        %v3129 = vadd.f32 %v3128, %v3000
        %v3130 = vadd.f32 %v3129, %v3003
        %v3131 = vadd.f32 %v3130, %v3006
        %v3132 = vadd.f32 %v3131, %v3009
        %v3133 = vadd.f32 %v3132, %v3012
        %v3134 = vadd.f32 %v3133, %v3015
        %v3135 = vadd.f32 %v3134, %v3018
        %v3136 = vadd.f32 %v3135, %v3021
        %v3137 = vadd.f32 %v3136, %v3024
        %v3138 = vadd.f32 %v3137, %v3027
        %v3139 = vadd.f32 %v3138, %v3030
        %v3140 = vadd.f32 %v3139, %v3033
        %v3141 = vadd.f32 %v3140, %v3036
        %v3142 = vrot.slane %v3141, 4
        %v3143 = vadd.f32 %v3141, %v3142
        %v3144 = vrot.slane %v3143, 2
        %v3145 = vadd.f32 %v3143, %v3144
        %v3146 = vrot.slane %v3145, 1
        %v3147 = vadd.f32 %v3145, %v3146
        %v3148 = vadd.f32 %v3039, %v3042
        %v3149 = vadd.f32 %v3148, %v3045
        %v3150 = vadd.f32 %v3149, %v3048
        %v3151 = vadd.f32 %v3150, %v3051
        %v3152 = vadd.f32 %v3151, %v3054
        %v3153 = vadd.f32 %v3152, %v3057
        %v3154 = vadd.f32 %v3153, %v3060
        %v3155 = vadd.f32 %v3154, %v3063
        %v3156 = vadd.f32 %v3155, %v3066
        %v3157 = vadd.f32 %v3156, %v3069
        %v3158 = vadd.f32 %v3157, %v3072
        %v3159 = vadd.f32 %v3158, %v3075
        %v3160 = vadd.f32 %v3159, %v3078
        %v3161 = vadd.f32 %v3160, %v3081
        %v3162 = vadd.f32 %v3161, %v3084
        %v3163 = vrot.slane %v3162, 4
        %v3164 = vadd.f32 %v3162, %v3163
        %v3165 = vrot.slane %v3164, 2
        %v3166 = vadd.f32 %v3164, %v3165
        %v3167 = vrot.slane %v3166, 1
        %v3168 = vadd.f32 %v3166, %v3167
        %v3169 = vmul.f32 %v2705, %v2705
        %v3170 = vmul.f32 %v2707, %v2707
        %v3171 = vmul.f32 %v2710, %v2710
        %v3172 = vmul.f32 %v2712, %v2712
        %v3173 = vmul.f32 %v2715, %v2715
        %v3174 = vmul.f32 %v2717, %v2717
        %v3175 = vmul.f32 %v2720, %v2720
        %v3176 = vmul.f32 %v2722, %v2722
        %v3177 = vmul.f32 %v2810, %v2810
        %v3178 = vmul.f32 %v2812, %v2812
        %v3179 = vmul.f32 %v2815, %v2815
        %v3180 = vmul.f32 %v2817, %v2817
        %v3181 = vmul.f32 %v2820, %v2820
        %v3182 = vmul.f32 %v2822, %v2822
        %v3183 = vmul.f32 %v2825, %v2825
        %v3184 = vmul.f32 %v2827, %v2827
        %v3185 = vmul.f32 %v2725, %v2725
        %v3186 = vmul.f32 %v2727, %v2727
        %v3187 = vmul.f32 %v2730, %v2730
        %v3188 = vmul.f32 %v2732, %v2732
        %v3189 = vmul.f32 %v2735, %v2735
        %v3190 = vmul.f32 %v2737, %v2737
        %v3191 = vmul.f32 %v2740, %v2740
        %v3192 = vmul.f32 %v2742, %v2742
        %v3193 = vmul.f32 %v2830, %v2830
        %v3194 = vmul.f32 %v2832, %v2832
        %v3195 = vmul.f32 %v2835, %v2835
        %v3196 = vmul.f32 %v2837, %v2837
        %v3197 = vmul.f32 %v2840, %v2840
        %v3198 = vmul.f32 %v2842, %v2842
        %v3199 = vmul.f32 %v2845, %v2845
        %v3200 = vmul.f32 %v2847, %v2847
        %v3201 = vmul.f32 %v2745, %v2745
        %v3202 = vmul.f32 %v2747, %v2747
        %v3203 = vmul.f32 %v2750, %v2750
        %v3204 = vmul.f32 %v2752, %v2752
        %v3205 = vmul.f32 %v2755, %v2755
        %v3206 = vmul.f32 %v2757, %v2757
        %v3207 = vmul.f32 %v2760, %v2760
        %v3208 = vmul.f32 %v2762, %v2762
        %v3209 = vmul.f32 %v2850, %v2850
        %v3210 = vmul.f32 %v2852, %v2852
        %v3211 = vmul.f32 %v2855, %v2855
        %v3212 = vmul.f32 %v2857, %v2857
        %v3213 = vmul.f32 %v2860, %v2860
        %v3214 = vmul.f32 %v2862, %v2862
        %v3215 = vmul.f32 %v2865, %v2865
        %v3216 = vmul.f32 %v2867, %v2867
        %v3217 = vmul.f32 %v2765, %v2765
        %v3218 = vmul.f32 %v2767, %v2767
        %v3219 = vmul.f32 %v2770, %v2770
        %v3220 = vmul.f32 %v2772, %v2772
        %v3221 = vmul.f32 %v2775, %v2775
        %v3222 = vmul.f32 %v2777, %v2777
        %v3223 = vmul.f32 %v2780, %v2780
        %v3224 = vmul.f32 %v2782, %v2782
        %v3225 = vmul.f32 %v2870, %v2870
        %v3226 = vmul.f32 %v2872, %v2872
        %v3227 = vmul.f32 %v2875, %v2875
        %v3228 = vmul.f32 %v2877, %v2877
        %v3229 = vmul.f32 %v2880, %v2880
        %v3230 = vmul.f32 %v2882, %v2882
        %v3231 = vmul.f32 %v2885, %v2885
        %v3232 = vmul.f32 %v2887, %v2887
        %v3233 = vsel %vm2892, %v3169, 0.0
        %3234 = vadd.xlane.f32.xlu0 %v3233
        %v3235 = vpop.xlane.xlu0 %3234
        %v3236 = vsel %vm2892, %v3170, 0.0
        %3237 = vadd.xlane.f32.xlu0 %v3236
        %v3238 = vpop.xlane.xlu0 %3237
        %v3239 = vsel %vm2892, %v3171, 0.0
        %3240 = vadd.xlane.f32.xlu0 %v3239
        %v3241 = vpop.xlane.xlu0 %3240
        %v3242 = vsel %vm2892, %v3172, 0.0
        %3243 = vadd.xlane.f32.xlu0 %v3242
        %v3244 = vpop.xlane.xlu0 %3243
        %v3245 = vsel %vm2892, %v3173, 0.0
        %3246 = vadd.xlane.f32.xlu0 %v3245
        %v3247 = vpop.xlane.xlu0 %3246
        %v3248 = vsel %vm2892, %v3174, 0.0
        %3249 = vadd.xlane.f32.xlu0 %v3248
        %v3250 = vpop.xlane.xlu0 %3249
        %v3251 = vsel %vm2892, %v3175, 0.0
        %3252 = vadd.xlane.f32.xlu0 %v3251
        %v3253 = vpop.xlane.xlu0 %3252
        %v3254 = vsel %vm2892, %v3176, 0.0
        %3255 = vadd.xlane.f32.xlu0 %v3254
        %v3256 = vpop.xlane.xlu0 %3255
        %v3257 = vsel %vm2892, %v3177, 0.0
        %3258 = vadd.xlane.f32.xlu0 %v3257
        %v3259 = vpop.xlane.xlu0 %3258
        %v3260 = vsel %vm2892, %v3178, 0.0
        %3261 = vadd.xlane.f32.xlu0 %v3260
        %v3262 = vpop.xlane.xlu0 %3261
        %v3263 = vsel %vm2892, %v3179, 0.0
        %3264 = vadd.xlane.f32.xlu0 %v3263
        %v3265 = vpop.xlane.xlu0 %3264
        %v3266 = vsel %vm2892, %v3180, 0.0
        %3267 = vadd.xlane.f32.xlu0 %v3266
        %v3268 = vpop.xlane.xlu0 %3267
        %v3269 = vsel %vm2892, %v3181, 0.0
        %3270 = vadd.xlane.f32.xlu0 %v3269
        %v3271 = vpop.xlane.xlu0 %3270
        %v3272 = vsel %vm2892, %v3182, 0.0
        %3273 = vadd.xlane.f32.xlu0 %v3272
        %v3274 = vpop.xlane.xlu0 %3273
        %v3275 = vsel %vm2892, %v3183, 0.0
        %3276 = vadd.xlane.f32.xlu0 %v3275
        %v3277 = vpop.xlane.xlu0 %3276
        %v3278 = vsel %vm2892, %v3184, 0.0
        %3279 = vadd.xlane.f32.xlu0 %v3278
        %v3280 = vpop.xlane.xlu0 %3279
        %v3281 = vsel %vm2892, %v3185, 0.0
        %3282 = vadd.xlane.f32.xlu0 %v3281
        %v3283 = vpop.xlane.xlu0 %3282
        %v3284 = vsel %vm2892, %v3186, 0.0
        %3285 = vadd.xlane.f32.xlu0 %v3284
        %v3286 = vpop.xlane.xlu0 %3285
        %v3287 = vsel %vm2892, %v3187, 0.0
        %3288 = vadd.xlane.f32.xlu0 %v3287
        %v3289 = vpop.xlane.xlu0 %3288
        %v3290 = vsel %vm2892, %v3188, 0.0
        %3291 = vadd.xlane.f32.xlu0 %v3290
        %v3292 = vpop.xlane.xlu0 %3291
        %v3293 = vsel %vm2892, %v3189, 0.0
        %3294 = vadd.xlane.f32.xlu0 %v3293
        %v3295 = vpop.xlane.xlu0 %3294
        %v3296 = vsel %vm2892, %v3190, 0.0
        %3297 = vadd.xlane.f32.xlu0 %v3296
        %v3298 = vpop.xlane.xlu0 %3297
        %v3299 = vsel %vm2892, %v3191, 0.0
        %3300 = vadd.xlane.f32.xlu0 %v3299
        %v3301 = vpop.xlane.xlu0 %3300
        %v3302 = vsel %vm2892, %v3192, 0.0
        %3303 = vadd.xlane.f32.xlu0 %v3302
        %v3304 = vpop.xlane.xlu0 %3303
        %v3305 = vsel %vm2892, %v3193, 0.0
        %3306 = vadd.xlane.f32.xlu0 %v3305
        %v3307 = vpop.xlane.xlu0 %3306
        %v3308 = vsel %vm2892, %v3194, 0.0
        %3309 = vadd.xlane.f32.xlu0 %v3308
        %v3310 = vpop.xlane.xlu0 %3309
        %v3311 = vsel %vm2892, %v3195, 0.0
        %3312 = vadd.xlane.f32.xlu0 %v3311
        %v3313 = vpop.xlane.xlu0 %3312
        %v3314 = vsel %vm2892, %v3196, 0.0
        %3315 = vadd.xlane.f32.xlu0 %v3314
        %v3316 = vpop.xlane.xlu0 %3315
        %v3317 = vsel %vm2892, %v3197, 0.0
        %3318 = vadd.xlane.f32.xlu0 %v3317
        %v3319 = vpop.xlane.xlu0 %3318
        %v3320 = vsel %vm2892, %v3198, 0.0
        %3321 = vadd.xlane.f32.xlu0 %v3320
        %v3322 = vpop.xlane.xlu0 %3321
        %v3323 = vsel %vm2892, %v3199, 0.0
        %3324 = vadd.xlane.f32.xlu0 %v3323
        %v3325 = vpop.xlane.xlu0 %3324
        %v3326 = vsel %vm2892, %v3200, 0.0
        %3327 = vadd.xlane.f32.xlu0 %v3326
        %v3328 = vpop.xlane.xlu0 %3327
        %v3329 = vsel %vm2892, %v3201, 0.0
        %3330 = vadd.xlane.f32.xlu0 %v3329
        %v3331 = vpop.xlane.xlu0 %3330
        %v3332 = vsel %vm2892, %v3202, 0.0
        %3333 = vadd.xlane.f32.xlu0 %v3332
        %v3334 = vpop.xlane.xlu0 %3333
        %v3335 = vsel %vm2892, %v3203, 0.0
        %3336 = vadd.xlane.f32.xlu0 %v3335
        %v3337 = vpop.xlane.xlu0 %3336
        %v3338 = vsel %vm2892, %v3204, 0.0
        %3339 = vadd.xlane.f32.xlu0 %v3338
        %v3340 = vpop.xlane.xlu0 %3339
        %v3341 = vsel %vm2892, %v3205, 0.0
        %3342 = vadd.xlane.f32.xlu0 %v3341
        %v3343 = vpop.xlane.xlu0 %3342
        %v3344 = vsel %vm2892, %v3206, 0.0
        %3345 = vadd.xlane.f32.xlu0 %v3344
        %v3346 = vpop.xlane.xlu0 %3345
        %v3347 = vsel %vm2892, %v3207, 0.0
        %3348 = vadd.xlane.f32.xlu0 %v3347
        %v3349 = vpop.xlane.xlu0 %3348
        %v3350 = vsel %vm2892, %v3208, 0.0
        %3351 = vadd.xlane.f32.xlu0 %v3350
        %v3352 = vpop.xlane.xlu0 %3351
        %v3353 = vsel %vm2892, %v3209, 0.0
        %3354 = vadd.xlane.f32.xlu0 %v3353
        %v3355 = vpop.xlane.xlu0 %3354
        %v3356 = vsel %vm2892, %v3210, 0.0
        %3357 = vadd.xlane.f32.xlu0 %v3356
        %v3358 = vpop.xlane.xlu0 %3357
        %v3359 = vsel %vm2892, %v3211, 0.0
        %3360 = vadd.xlane.f32.xlu0 %v3359
        %v3361 = vpop.xlane.xlu0 %3360
        %v3362 = vsel %vm2892, %v3212, 0.0
        %3363 = vadd.xlane.f32.xlu0 %v3362
        %v3364 = vpop.xlane.xlu0 %3363
        %v3365 = vsel %vm2892, %v3213, 0.0
        %3366 = vadd.xlane.f32.xlu0 %v3365
        %v3367 = vpop.xlane.xlu0 %3366
        %v3368 = vsel %vm2892, %v3214, 0.0
        %3369 = vadd.xlane.f32.xlu0 %v3368
        %v3370 = vpop.xlane.xlu0 %3369
        %v3371 = vsel %vm2892, %v3215, 0.0
        %3372 = vadd.xlane.f32.xlu0 %v3371
        %v3373 = vpop.xlane.xlu0 %3372
        %v3374 = vsel %vm2892, %v3216, 0.0
        %3375 = vadd.xlane.f32.xlu0 %v3374
        %v3376 = vpop.xlane.xlu0 %3375
        %v3377 = vsel %vm2892, %v3217, 0.0
        %3378 = vadd.xlane.f32.xlu0 %v3377
        %v3379 = vpop.xlane.xlu0 %3378
        %v3380 = vsel %vm2892, %v3218, 0.0
        %3381 = vadd.xlane.f32.xlu0 %v3380
        %v3382 = vpop.xlane.xlu0 %3381
        %v3383 = vsel %vm2892, %v3219, 0.0
        %3384 = vadd.xlane.f32.xlu0 %v3383
        %v3385 = vpop.xlane.xlu0 %3384
        %v3386 = vsel %vm2892, %v3220, 0.0
        %3387 = vadd.xlane.f32.xlu0 %v3386
        %v3388 = vpop.xlane.xlu0 %3387
        %v3389 = vsel %vm2892, %v3221, 0.0
        %3390 = vadd.xlane.f32.xlu0 %v3389
        %v3391 = vpop.xlane.xlu0 %3390
        %v3392 = vsel %vm2892, %v3222, 0.0
        %3393 = vadd.xlane.f32.xlu0 %v3392
        %v3394 = vpop.xlane.xlu0 %3393
        %v3395 = vsel %vm2892, %v3223, 0.0
        %3396 = vadd.xlane.f32.xlu0 %v3395
        %v3397 = vpop.xlane.xlu0 %3396
        %v3398 = vsel %vm2892, %v3224, 0.0
        %3399 = vadd.xlane.f32.xlu0 %v3398
        %v3400 = vpop.xlane.xlu0 %3399
        %v3401 = vsel %vm2892, %v3225, 0.0
        %3402 = vadd.xlane.f32.xlu0 %v3401
        %v3403 = vpop.xlane.xlu0 %3402
        %v3404 = vsel %vm2892, %v3226, 0.0
        %3405 = vadd.xlane.f32.xlu0 %v3404
        %v3406 = vpop.xlane.xlu0 %3405
        %v3407 = vsel %vm2892, %v3227, 0.0
        %3408 = vadd.xlane.f32.xlu0 %v3407
        %v3409 = vpop.xlane.xlu0 %3408
        %v3410 = vsel %vm2892, %v3228, 0.0
        %3411 = vadd.xlane.f32.xlu0 %v3410
        %v3412 = vpop.xlane.xlu0 %3411
        %v3413 = vsel %vm2892, %v3229, 0.0
        %3414 = vadd.xlane.f32.xlu0 %v3413
        %v3415 = vpop.xlane.xlu0 %3414
        %v3416 = vsel %vm2892, %v3230, 0.0
        %3417 = vadd.xlane.f32.xlu0 %v3416
        %v3418 = vpop.xlane.xlu0 %3417
        %v3419 = vsel %vm2892, %v3231, 0.0
        %3420 = vadd.xlane.f32.xlu0 %v3419
        %v3421 = vpop.xlane.xlu0 %3420
        %v3422 = vsel %vm2892, %v3232, 0.0
        %3423 = vadd.xlane.f32.xlu0 %v3422
        %v3424 = vpop.xlane.xlu0 %3423
        %v3425 = vadd.f32 %v3235, %v3238
        %v3426 = vadd.f32 %v3425, %v3241
        %v3427 = vadd.f32 %v3426, %v3244
        %v3428 = vadd.f32 %v3427, %v3247
        %v3429 = vadd.f32 %v3428, %v3250
        %v3430 = vadd.f32 %v3429, %v3253
        %v3431 = vadd.f32 %v3430, %v3256
        %v3432 = vadd.f32 %v3431, %v3259
        %v3433 = vadd.f32 %v3432, %v3262
        %v3434 = vadd.f32 %v3433, %v3265
        %v3435 = vadd.f32 %v3434, %v3268
        %v3436 = vadd.f32 %v3435, %v3271
        %v3437 = vadd.f32 %v3436, %v3274
        %v3438 = vadd.f32 %v3437, %v3277
        %v3439 = vadd.f32 %v3438, %v3280
        %v3440 = vrot.slane %v3439, 4
        %v3441 = vadd.f32 %v3439, %v3440
        %v3442 = vrot.slane %v3441, 2
        %v3443 = vadd.f32 %v3441, %v3442
        %v3444 = vrot.slane %v3443, 1
        %v3445 = vadd.f32 %v3443, %v3444
        %v3446 = vadd.f32 %v3283, %v3286
        %v3447 = vadd.f32 %v3446, %v3289
        %v3448 = vadd.f32 %v3447, %v3292
        %v3449 = vadd.f32 %v3448, %v3295
        %v3450 = vadd.f32 %v3449, %v3298
        %v3451 = vadd.f32 %v3450, %v3301
        %v3452 = vadd.f32 %v3451, %v3304
        %v3453 = vadd.f32 %v3452, %v3307
        %v3454 = vadd.f32 %v3453, %v3310
        %v3455 = vadd.f32 %v3454, %v3313
        %v3456 = vadd.f32 %v3455, %v3316
        %v3457 = vadd.f32 %v3456, %v3319
        %v3458 = vadd.f32 %v3457, %v3322
        %v3459 = vadd.f32 %v3458, %v3325
        %v3460 = vadd.f32 %v3459, %v3328
        %v3461 = vrot.slane %v3460, 4
        %v3462 = vadd.f32 %v3460, %v3461
        %v3463 = vrot.slane %v3462, 2
        %v3464 = vadd.f32 %v3462, %v3463
        %v3465 = vrot.slane %v3464, 1
        %v3466 = vadd.f32 %v3464, %v3465
        %v3467 = vadd.f32 %v3331, %v3334
        %v3468 = vadd.f32 %v3467, %v3337
        %v3469 = vadd.f32 %v3468, %v3340
        %v3470 = vadd.f32 %v3469, %v3343
        %v3471 = vadd.f32 %v3470, %v3346
        %v3472 = vadd.f32 %v3471, %v3349
        %v3473 = vadd.f32 %v3472, %v3352
        %v3474 = vadd.f32 %v3473, %v3355
        %v3475 = vadd.f32 %v3474, %v3358
        %v3476 = vadd.f32 %v3475, %v3361
        %v3477 = vadd.f32 %v3476, %v3364
        %v3478 = vadd.f32 %v3477, %v3367
        %v3479 = vadd.f32 %v3478, %v3370
        %v3480 = vadd.f32 %v3479, %v3373
        %v3481 = vadd.f32 %v3480, %v3376
        %v3482 = vrot.slane %v3481, 4
        %v3483 = vadd.f32 %v3481, %v3482
        %v3484 = vrot.slane %v3483, 2
        %v3485 = vadd.f32 %v3483, %v3484
        %v3486 = vrot.slane %v3485, 1
        %v3487 = vadd.f32 %v3485, %v3486
        %v3488 = vadd.f32 %v3379, %v3382
        %v3489 = vadd.f32 %v3488, %v3385
        %v3490 = vadd.f32 %v3489, %v3388
        %v3491 = vadd.f32 %v3490, %v3391
        %v3492 = vadd.f32 %v3491, %v3394
        %v3493 = vadd.f32 %v3492, %v3397
        %v3494 = vadd.f32 %v3493, %v3400
        %v3495 = vadd.f32 %v3494, %v3403
        %v3496 = vadd.f32 %v3495, %v3406
        %v3497 = vadd.f32 %v3496, %v3409
        %v3498 = vadd.f32 %v3497, %v3412
        %v3499 = vadd.f32 %v3498, %v3415
        %v3500 = vadd.f32 %v3499, %v3418
        %v3501 = vadd.f32 %v3500, %v3421
        %v3502 = vadd.f32 %v3501, %v3424
        %v3503 = vrot.slane %v3502, 4
        %v3504 = vadd.f32 %v3502, %v3503
        %v3505 = vrot.slane %v3504, 2
        %v3506 = vadd.f32 %v3504, %v3505
        %v3507 = vrot.slane %v3506, 1
        %v3508 = vadd.f32 %v3506, %v3507
        %v3509 = vmul.f32 %v3105, 0.00012207031
        %v3510 = vmul.f32 %v3126, 0.00012207031
        %v3511 = vmul.f32 %v3147, 0.00012207031
        %v3512 = vmul.f32 %v3168, 0.00012207031
        %v3513 = vmul.f32 %v3445, 0.00012207031
        %v3514 = vmul.f32 %v3466, 0.00012207031
        %v3515 = vmul.f32 %v3487, 0.00012207031
        %v3516 = vmul.f32 %v3508, 0.00012207031
        %v3517 = vmul.f32 %v3509, %v3509
        %v3518 = vmul.f32 %v3510, %v3510
        %v3519 = vmul.f32 %v3511, %v3511
        %v3520 = vmul.f32 %v3512, %v3512
        %v3521 = vsub.f32 %v3513, %v3517
        %v3522 = vsub.f32 %v3514, %v3518
        %v3523 = vsub.f32 %v3515, %v3519
        %v3524 = vsub.f32 %v3516, %v3520
        %v3525 = vadd.f32 %v3521, 1e-05
        %v3526 = vadd.f32 %v3522, 1e-05
        %v3527 = vadd.f32 %v3523, 1e-05
        %v3528 = vadd.f32 %v3524, 1e-05
        %v3529 = vrsqrt.pop %v3525
        %v3530 = vmul.f32 %v3529, %v3525
        %v3531 = vmul.f32 %v3530, %v3529
        %v3532 = vmul.f32 0.5, %v3531
        %v3533 = vsub.f32 1.5, %v3532
        %v3534 = vmul.f32 %v3529, %v3533
        %vm3535 = vweird.f32 %v3525
        %vm3536 = vweird.f32 %v3529
        %vm3537 = vmor %vm3535, %vm3536
        %v3538 = vsel %vm3537, %v3529, %v3534
        %v3539 = vrsqrt.pop %v3526
        %v3540 = vmul.f32 %v3539, %v3526
        %v3541 = vmul.f32 %v3540, %v3539
        %v3542 = vmul.f32 0.5, %v3541
        %v3543 = vsub.f32 1.5, %v3542
        %v3544 = vmul.f32 %v3539, %v3543
        %vm3545 = vweird.f32 %v3526
        %vm3546 = vweird.f32 %v3539
        %vm3547 = vmor %vm3545, %vm3546
        %v3548 = vsel %vm3547, %v3539, %v3544
        %v3549 = vrsqrt.pop %v3527
        %v3550 = vmul.f32 %v3549, %v3527
        %v3551 = vmul.f32 %v3550, %v3549
        %v3552 = vmul.f32 0.5, %v3551
        %v3553 = vsub.f32 1.5, %v3552
        %v3554 = vmul.f32 %v3549, %v3553
        %vm3555 = vweird.f32 %v3527
        %vm3556 = vweird.f32 %v3549
        %vm3557 = vmor %vm3555, %vm3556
        %v3558 = vsel %vm3557, %v3549, %v3554
        %v3559 = vrsqrt.pop %v3528
        %v3560 = vmul.f32 %v3559, %v3528
        %v3561 = vmul.f32 %v3560, %v3559
        %v3562 = vmul.f32 0.5, %v3561
        %v3563 = vsub.f32 1.5, %v3562
        %v3564 = vmul.f32 %v3559, %v3563
        %vm3565 = vweird.f32 %v3528
        %vm3566 = vweird.f32 %v3559
        %vm3567 = vmor %vm3565, %vm3566
        %v3568 = vsel %vm3567, %v3559, %v3564
        %v3569 = vmul.f32 %v3538, %v2889
        %v3570 = vmul.f32 %v3548, %v2889
        %v3571 = vmul.f32 %v3558, %v2889
        %v3572 = vmul.f32 %v3568, %v2889
        %v3573 = vmul.f32 %v3509, %v3569
        %v3574 = vmul.f32 %v3510, %v3570
        %v3575 = vmul.f32 %v3511, %v3571
        %v3576 = vmul.f32 %v3512, %v3572
        %v3577 = vsub.f32 %v2891, %v3573
        %v3578 = vsub.f32 %v2891, %v3574
        %v3579 = vsub.f32 %v2891, %v3575
        %v3580 = vsub.f32 %v2891, %v3576
        %v3585 = vperm.slane %v3569, 0
        %v3586 = vperm.slane %v3570, 0
        %v3587 = vperm.slane %v3571, 0
        %v3588 = vperm.slane %v3572, 0
        %v3593 = vmul.f32 %v2705, %v3585
        %v3594 = vmul.f32 %v2707, %v3585
        %v3595 = vmul.f32 %v2710, %v3585
        %v3596 = vmul.f32 %v2712, %v3585
        %v3597 = vmul.f32 %v2715, %v3585
        %v3598 = vmul.f32 %v2717, %v3585
        %v3599 = vmul.f32 %v2720, %v3585
        %v3600 = vmul.f32 %v2722, %v3585
        %v3601 = vmul.f32 %v2810, %v3585
        %v3602 = vmul.f32 %v2812, %v3585
        %v3603 = vmul.f32 %v2815, %v3585
        %v3604 = vmul.f32 %v2817, %v3585
        %v3605 = vmul.f32 %v2820, %v3585
        %v3606 = vmul.f32 %v2822, %v3585
        %v3607 = vmul.f32 %v2825, %v3585
        %v3608 = vmul.f32 %v2827, %v3585
        %v3609 = vmul.f32 %v2725, %v3586
        %v3610 = vmul.f32 %v2727, %v3586
        %v3611 = vmul.f32 %v2730, %v3586
        %v3612 = vmul.f32 %v2732, %v3586
        %v3613 = vmul.f32 %v2735, %v3586
        %v3614 = vmul.f32 %v2737, %v3586
        %v3615 = vmul.f32 %v2740, %v3586
        %v3616 = vmul.f32 %v2742, %v3586
        %v3617 = vmul.f32 %v2830, %v3586
        %v3618 = vmul.f32 %v2832, %v3586
        %v3619 = vmul.f32 %v2835, %v3586
        %v3620 = vmul.f32 %v2837, %v3586
        %v3621 = vmul.f32 %v2840, %v3586
        %v3622 = vmul.f32 %v2842, %v3586
        %v3623 = vmul.f32 %v2845, %v3586
        %v3624 = vmul.f32 %v2847, %v3586
        %v3625 = vmul.f32 %v2745, %v3587
        %v3626 = vmul.f32 %v2747, %v3587
        %v3627 = vmul.f32 %v2750, %v3587
        %v3628 = vmul.f32 %v2752, %v3587
        %v3629 = vmul.f32 %v2755, %v3587
        %v3630 = vmul.f32 %v2757, %v3587
        %v3631 = vmul.f32 %v2760, %v3587
        %v3632 = vmul.f32 %v2762, %v3587
        %v3633 = vmul.f32 %v2850, %v3587
        %v3634 = vmul.f32 %v2852, %v3587
        %v3635 = vmul.f32 %v2855, %v3587
        %v3636 = vmul.f32 %v2857, %v3587
        %v3637 = vmul.f32 %v2860, %v3587
        %v3638 = vmul.f32 %v2862, %v3587
        %v3639 = vmul.f32 %v2865, %v3587
        %v3640 = vmul.f32 %v2867, %v3587
        %v3641 = vmul.f32 %v2765, %v3588
        %v3642 = vmul.f32 %v2767, %v3588
        %v3643 = vmul.f32 %v2770, %v3588
        %v3644 = vmul.f32 %v2772, %v3588
        %v3645 = vmul.f32 %v2775, %v3588
        %v3646 = vmul.f32 %v2777, %v3588
        %v3647 = vmul.f32 %v2780, %v3588
        %v3648 = vmul.f32 %v2782, %v3588
        %v3649 = vmul.f32 %v2870, %v3588
        %v3650 = vmul.f32 %v2872, %v3588
        %v3651 = vmul.f32 %v2875, %v3588
        %v3652 = vmul.f32 %v2877, %v3588
        %v3653 = vmul.f32 %v2880, %v3588
        %v3654 = vmul.f32 %v2882, %v3588
        %v3655 = vmul.f32 %v2885, %v3588
        %v3656 = vmul.f32 %v2887, %v3588
        %v3661 = vperm.slane %v3577, 0
        %v3662 = vperm.slane %v3578, 0
        %v3663 = vperm.slane %v3579, 0
        %v3664 = vperm.slane %v3580, 0
        %v3669 = vadd.f32 %v3593, %v3661
        %v3670 = vadd.f32 %v3594, %v3661
        %v3671 = vadd.f32 %v3595, %v3661
        %v3672 = vadd.f32 %v3596, %v3661
        %v3673 = vadd.f32 %v3597, %v3661
        %v3674 = vadd.f32 %v3598, %v3661
        %v3675 = vadd.f32 %v3599, %v3661
        %v3676 = vadd.f32 %v3600, %v3661
        %v3677 = vadd.f32 %v3601, %v3661
        %v3678 = vadd.f32 %v3602, %v3661
        %v3679 = vadd.f32 %v3603, %v3661
        %v3680 = vadd.f32 %v3604, %v3661
        %v3681 = vadd.f32 %v3605, %v3661
        %v3682 = vadd.f32 %v3606, %v3661
        %v3683 = vadd.f32 %v3607, %v3661
        %v3684 = vadd.f32 %v3608, %v3661
        %v3685 = vadd.f32 %v3609, %v3662
        %v3686 = vadd.f32 %v3610, %v3662
        %v3687 = vadd.f32 %v3611, %v3662
        %v3688 = vadd.f32 %v3612, %v3662
        %v3689 = vadd.f32 %v3613, %v3662
        %v3690 = vadd.f32 %v3614, %v3662
        %v3691 = vadd.f32 %v3615, %v3662
        %v3692 = vadd.f32 %v3616, %v3662
        %v3693 = vadd.f32 %v3617, %v3662
        %v3694 = vadd.f32 %v3618, %v3662
        %v3695 = vadd.f32 %v3619, %v3662
        %v3696 = vadd.f32 %v3620, %v3662
        %v3697 = vadd.f32 %v3621, %v3662
        %v3698 = vadd.f32 %v3622, %v3662
        %v3699 = vadd.f32 %v3623, %v3662
        %v3700 = vadd.f32 %v3624, %v3662
        %v3701 = vadd.f32 %v3625, %v3663
        %v3702 = vadd.f32 %v3626, %v3663
        %v3703 = vadd.f32 %v3627, %v3663
        %v3704 = vadd.f32 %v3628, %v3663
        %v3705 = vadd.f32 %v3629, %v3663
        %v3706 = vadd.f32 %v3630, %v3663
        %v3707 = vadd.f32 %v3631, %v3663
        %v3708 = vadd.f32 %v3632, %v3663
        %v3709 = vadd.f32 %v3633, %v3663
        %v3710 = vadd.f32 %v3634, %v3663
        %v3711 = vadd.f32 %v3635, %v3663
        %v3712 = vadd.f32 %v3636, %v3663
        %v3713 = vadd.f32 %v3637, %v3663
        %v3714 = vadd.f32 %v3638, %v3663
        %v3715 = vadd.f32 %v3639, %v3663
        %v3716 = vadd.f32 %v3640, %v3663
        %v3717 = vadd.f32 %v3641, %v3664
        %v3718 = vadd.f32 %v3642, %v3664
        %v3719 = vadd.f32 %v3643, %v3664
        %v3720 = vadd.f32 %v3644, %v3664
        %v3721 = vadd.f32 %v3645, %v3664
        %v3722 = vadd.f32 %v3646, %v3664
        %v3723 = vadd.f32 %v3647, %v3664
        %v3724 = vadd.f32 %v3648, %v3664
        %v3725 = vadd.f32 %v3649, %v3664
        %v3726 = vadd.f32 %v3650, %v3664
        %v3727 = vadd.f32 %v3651, %v3664
        %v3728 = vadd.f32 %v3652, %v3664
        %v3729 = vadd.f32 %v3653, %v3664
        %v3730 = vadd.f32 %v3654, %v3664
        %v3731 = vadd.f32 %v3655, %v3664
        %v3732 = vadd.f32 %v3656, %v3664
        %v3733 = vmax.f32 %v3669, 0.0
        %v3734 = vmax.f32 %v3670, 0.0
        %v3735 = vmax.f32 %v3671, 0.0
        %v3736 = vmax.f32 %v3672, 0.0
        %v3737 = vmax.f32 %v3673, 0.0
        %v3738 = vmax.f32 %v3674, 0.0
        %v3739 = vmax.f32 %v3675, 0.0
        %v3740 = vmax.f32 %v3676, 0.0
        %v3741 = vmax.f32 %v3677, 0.0
        %v3742 = vmax.f32 %v3678, 0.0
        %v3743 = vmax.f32 %v3679, 0.0
        %v3744 = vmax.f32 %v3680, 0.0
        %v3745 = vmax.f32 %v3681, 0.0
        %v3746 = vmax.f32 %v3682, 0.0
        %v3747 = vmax.f32 %v3683, 0.0
        %v3748 = vmax.f32 %v3684, 0.0
        %v3749 = vmax.f32 %v3685, 0.0
        %v3750 = vmax.f32 %v3686, 0.0
        %v3751 = vmax.f32 %v3687, 0.0
        %v3752 = vmax.f32 %v3688, 0.0
        %v3753 = vmax.f32 %v3689, 0.0
        %v3754 = vmax.f32 %v3690, 0.0
        %v3755 = vmax.f32 %v3691, 0.0
        %v3756 = vmax.f32 %v3692, 0.0
        %v3757 = vmax.f32 %v3693, 0.0
        %v3758 = vmax.f32 %v3694, 0.0
        %v3759 = vmax.f32 %v3695, 0.0
        %v3760 = vmax.f32 %v3696, 0.0
        %v3761 = vmax.f32 %v3697, 0.0
        %v3762 = vmax.f32 %v3698, 0.0
        %v3763 = vmax.f32 %v3699, 0.0
        %v3764 = vmax.f32 %v3700, 0.0
        %v3765 = vmax.f32 %v3701, 0.0
        %v3766 = vmax.f32 %v3702, 0.0
        %v3767 = vmax.f32 %v3703, 0.0
        %v3768 = vmax.f32 %v3704, 0.0
        %v3769 = vmax.f32 %v3705, 0.0
        %v3770 = vmax.f32 %v3706, 0.0
        %v3771 = vmax.f32 %v3707, 0.0
        %v3772 = vmax.f32 %v3708, 0.0
        %v3773 = vmax.f32 %v3709, 0.0
        %v3774 = vmax.f32 %v3710, 0.0
        %v3775 = vmax.f32 %v3711, 0.0
        %v3776 = vmax.f32 %v3712, 0.0
        %v3777 = vmax.f32 %v3713, 0.0
        %v3778 = vmax.f32 %v3714, 0.0
        %v3779 = vmax.f32 %v3715, 0.0
        %v3780 = vmax.f32 %v3716, 0.0
        %v3781 = vmax.f32 %v3717, 0.0
        %v3782 = vmax.f32 %v3718, 0.0
        %v3783 = vmax.f32 %v3719, 0.0
        %v3784 = vmax.f32 %v3720, 0.0
        %v3785 = vmax.f32 %v3721, 0.0
        %v3786 = vmax.f32 %v3722, 0.0
        %v3787 = vmax.f32 %v3723, 0.0
        %v3788 = vmax.f32 %v3724, 0.0
        %v3789 = vmax.f32 %v3725, 0.0
        %v3790 = vmax.f32 %v3726, 0.0
        %v3791 = vmax.f32 %v3727, 0.0
        %v3792 = vmax.f32 %v3728, 0.0
        %v3793 = vmax.f32 %v3729, 0.0
        %v3794 = vmax.f32 %v3730, 0.0
        %v3795 = vmax.f32 %v3731, 0.0
        %v3796 = vmax.f32 %v3732, 0.0
        %v3797 = vpack.c.bf16 %v3734, %v3733
        %v3798 = vpack.c.bf16 %v3736, %v3735
        %v3799 = vpack.c.bf16 %v3738, %v3737
        %v3800 = vpack.c.bf16 %v3740, %v3739
        %v3801 = vpack.c.bf16 %v3742, %v3741
        %v3802 = vpack.c.bf16 %v3744, %v3743
        %v3803 = vpack.c.bf16 %v3746, %v3745
        %v3804 = vpack.c.bf16 %v3748, %v3747
        %v3805 = vpack.c.bf16 %v3750, %v3749
        %v3806 = vpack.c.bf16 %v3752, %v3751
        %v3807 = vpack.c.bf16 %v3754, %v3753
        %v3808 = vpack.c.bf16 %v3756, %v3755
        %v3809 = vpack.c.bf16 %v3758, %v3757
        %v3810 = vpack.c.bf16 %v3760, %v3759
        %v3811 = vpack.c.bf16 %v3762, %v3761
        %v3812 = vpack.c.bf16 %v3764, %v3763
        %v3813 = vpack.c.bf16 %v3766, %v3765
        %v3814 = vpack.c.bf16 %v3768, %v3767
        %v3815 = vpack.c.bf16 %v3770, %v3769
        %v3816 = vpack.c.bf16 %v3772, %v3771
        %v3817 = vpack.c.bf16 %v3774, %v3773
        %v3818 = vpack.c.bf16 %v3776, %v3775
        %v3819 = vpack.c.bf16 %v3778, %v3777
        %v3820 = vpack.c.bf16 %v3780, %v3779
        %v3821 = vpack.c.bf16 %v3782, %v3781
        %v3822 = vpack.c.bf16 %v3784, %v3783
        %v3823 = vpack.c.bf16 %v3786, %v3785
        %v3824 = vpack.c.bf16 %v3788, %v3787
        %v3825 = vpack.c.bf16 %v3790, %v3789
        %v3826 = vpack.c.bf16 %v3792, %v3791
        %v3827 = vpack.c.bf16 %v3794, %v3793
        %v3828 = vpack.c.bf16 %v3796, %v3795
        %v3837 = vunpack.c.l.b16 %v567
        %v3838 = vunpack.c.l.b16 %v568
        %v3839 = vunpack.c.l.b16 %v569
        %v3840 = vunpack.c.l.b16 %v570
        %v3841 = vunpack.c.l.b16 %v571
        %v3842 = vunpack.c.l.b16 %v572
        %v3843 = vunpack.c.l.b16 %v573
        %v3844 = vunpack.c.l.b16 %v574
        %v3845 = vpack.c.b16 %v3838, %v3837
        %v3846 = vpack.c.b16 %v3840, %v3839
        %v3847 = vpack.c.b16 %v3842, %v3841
        %v3848 = vpack.c.b16 %v3844, %v3843
        %v3854 = vsel %vm2892, %v3797, 0
        %v3857 = vsel %vm2892, %v3798, 0
        %v3860 = vsel %vm2892, %v3799, 0
        %v3863 = vsel %vm2892, %v3800, 0
        %v3866 = vsel %vm2892, %v3801, 0
        %v3869 = vsel %vm2892, %v3802, 0
        %v3872 = vsel %vm2892, %v3803, 0
        %v3875 = vsel %vm2892, %v3804, 0
        %v3878 = vsel %vm2892, %v3805, 0
        %v3881 = vsel %vm2892, %v3806, 0
        %v3884 = vsel %vm2892, %v3807, 0
        %v3887 = vsel %vm2892, %v3808, 0
        %v3890 = vsel %vm2892, %v3809, 0
        %v3893 = vsel %vm2892, %v3810, 0
        %v3896 = vsel %vm2892, %v3811, 0
        %v3899 = vsel %vm2892, %v3812, 0
        %v3902 = vsel %vm2892, %v3813, 0
        %v3905 = vsel %vm2892, %v3814, 0
        %v3908 = vsel %vm2892, %v3815, 0
        %v3911 = vsel %vm2892, %v3816, 0
        %v3914 = vsel %vm2892, %v3817, 0
        %v3917 = vsel %vm2892, %v3818, 0
        %v3920 = vsel %vm2892, %v3819, 0
        %v3923 = vsel %vm2892, %v3820, 0
        %v3926 = vsel %vm2892, %v3821, 0
        %v3929 = vsel %vm2892, %v3822, 0
        %v3932 = vsel %vm2892, %v3823, 0
        %v3935 = vsel %vm2892, %v3824, 0
        %v3938 = vsel %vm2892, %v3825, 0
        %v3941 = vsel %vm2892, %v3826, 0
        %v3944 = vsel %vm2892, %v3827, 0
        %v3947 = vsel %vm2892, %v3828, 0
        %3949 = vmatpush.bf16.msra.mxu0 0
        %3950 = vmatpush.bf16.msra.mxu0 0
        %3951 = vmatpush.bf16.msra.mxu0 0
        %3952 = vmatpush.bf16.msra.mxu0 0
        %3953 = vmatpush.bf16.msra.mxu0 %v3848
        %3954 = vmatpush.bf16.msra.mxu0 %v3847
        %3955 = vmatpush.bf16.msra.mxu0 %v3846
        %3956 = vmatpush.bf16.msra.mxu0 %v3845
        %3957 = vmatmul.bf16.gmra.mxu0 %v3854
        %v3958 = vpop.f32.mrf.mxu0
        %v3959 = vadd.f32 0.0, %v3958
        %v3960 = vpop.f32.mrf.mxu0
        %v3961 = vadd.f32 0.0, %v3960
        %3962 = vmatmul.bf16.gmra.mxu0 %v3857
        %v3963 = vpop.f32.mrf.mxu0
        %v3964 = vadd.f32 0.0, %v3963
        %v3965 = vpop.f32.mrf.mxu0
        %v3966 = vadd.f32 0.0, %v3965
        %3967 = vmatmul.bf16.gmra.mxu0 %v3860
        %v3968 = vpop.f32.mrf.mxu0
        %v3969 = vadd.f32 0.0, %v3968
        %v3970 = vpop.f32.mrf.mxu0
        %v3971 = vadd.f32 0.0, %v3970
        %3972 = vmatmul.bf16.gmra.mxu0 %v3863
        %v3973 = vpop.f32.mrf.mxu0
        %v3974 = vadd.f32 0.0, %v3973
        %v3975 = vpop.f32.mrf.mxu0
        %v3976 = vadd.f32 0.0, %v3975
        %3977 = vmatmul.bf16.gmra.mxu0 %v3866
        %v3978 = vpop.f32.mrf.mxu0
        %v3979 = vadd.f32 0.0, %v3978
        %v3980 = vpop.f32.mrf.mxu0
        %v3981 = vadd.f32 0.0, %v3980
        %3982 = vmatmul.bf16.gmra.mxu0 %v3869
        %v3983 = vpop.f32.mrf.mxu0
        %v3984 = vadd.f32 0.0, %v3983
        %v3985 = vpop.f32.mrf.mxu0
        %v3986 = vadd.f32 0.0, %v3985
        %3987 = vmatmul.bf16.gmra.mxu0 %v3872
        %v3988 = vpop.f32.mrf.mxu0
        %v3989 = vadd.f32 0.0, %v3988
        %v3990 = vpop.f32.mrf.mxu0
        %v3991 = vadd.f32 0.0, %v3990
        %3992 = vmatmul.bf16.gmra.mxu0 %v3875
        %v3993 = vpop.f32.mrf.mxu0
        %v3994 = vadd.f32 0.0, %v3993
        %v3995 = vpop.f32.mrf.mxu0
        %v3996 = vadd.f32 0.0, %v3995
        %3997 = vmatmul.bf16.gmra.mxu0 %v3878
        %v3998 = vpop.f32.mrf.mxu0
        %v3999 = vadd.f32 0.0, %v3998
        %v4000 = vpop.f32.mrf.mxu0
        %v4001 = vadd.f32 0.0, %v4000
        %4002 = vmatmul.bf16.gmra.mxu0 %v3881
        %v4003 = vpop.f32.mrf.mxu0
        %v4004 = vadd.f32 0.0, %v4003
        %v4005 = vpop.f32.mrf.mxu0
        %v4006 = vadd.f32 0.0, %v4005
        %4007 = vmatmul.bf16.gmra.mxu0 %v3884
        %v4008 = vpop.f32.mrf.mxu0
        %v4009 = vadd.f32 0.0, %v4008
        %v4010 = vpop.f32.mrf.mxu0
        %v4011 = vadd.f32 0.0, %v4010
        %4012 = vmatmul.bf16.gmra.mxu0 %v3887
        %v4013 = vpop.f32.mrf.mxu0
        %v4014 = vadd.f32 0.0, %v4013
        %v4015 = vpop.f32.mrf.mxu0
        %v4016 = vadd.f32 0.0, %v4015
        %4017 = vmatmul.bf16.gmra.mxu0 %v3890
        %v4018 = vpop.f32.mrf.mxu0
        %v4019 = vadd.f32 0.0, %v4018
        %v4020 = vpop.f32.mrf.mxu0
        %v4021 = vadd.f32 0.0, %v4020
        %4022 = vmatmul.bf16.gmra.mxu0 %v3893
        %v4023 = vpop.f32.mrf.mxu0
        %v4024 = vadd.f32 0.0, %v4023
        %v4025 = vpop.f32.mrf.mxu0
        %v4026 = vadd.f32 0.0, %v4025
        %4027 = vmatmul.bf16.gmra.mxu0 %v3896
        %v4028 = vpop.f32.mrf.mxu0
        %v4029 = vadd.f32 0.0, %v4028
        %v4030 = vpop.f32.mrf.mxu0
        %v4031 = vadd.f32 0.0, %v4030
        %4032 = vmatmul.bf16.gmra.mxu0 %v3899
        %v4033 = vpop.f32.mrf.mxu0
        %v4034 = vadd.f32 0.0, %v4033
        %v4035 = vpop.f32.mrf.mxu0
        %v4036 = vadd.f32 0.0, %v4035
        %4037 = vmatmul.bf16.gmra.mxu0 %v3902
        %v4038 = vpop.f32.mrf.mxu0
        %v4039 = vadd.f32 0.0, %v4038
        %v4040 = vpop.f32.mrf.mxu0
        %v4041 = vadd.f32 0.0, %v4040
        %4042 = vmatmul.bf16.gmra.mxu0 %v3905
        %v4043 = vpop.f32.mrf.mxu0
        %v4044 = vadd.f32 0.0, %v4043
        %v4045 = vpop.f32.mrf.mxu0
        %v4046 = vadd.f32 0.0, %v4045
        %4047 = vmatmul.bf16.gmra.mxu0 %v3908
        %v4048 = vpop.f32.mrf.mxu0
        %v4049 = vadd.f32 0.0, %v4048
        %v4050 = vpop.f32.mrf.mxu0
        %v4051 = vadd.f32 0.0, %v4050
        %4052 = vmatmul.bf16.gmra.mxu0 %v3911
        %v4053 = vpop.f32.mrf.mxu0
        %v4054 = vadd.f32 0.0, %v4053
        %v4055 = vpop.f32.mrf.mxu0
        %v4056 = vadd.f32 0.0, %v4055
        %4057 = vmatmul.bf16.gmra.mxu0 %v3914
        %v4058 = vpop.f32.mrf.mxu0
        %v4059 = vadd.f32 0.0, %v4058
        %v4060 = vpop.f32.mrf.mxu0
        %v4061 = vadd.f32 0.0, %v4060
        %4062 = vmatmul.bf16.gmra.mxu0 %v3917
        %v4063 = vpop.f32.mrf.mxu0
        %v4064 = vadd.f32 0.0, %v4063
        %v4065 = vpop.f32.mrf.mxu0
        %v4066 = vadd.f32 0.0, %v4065
        %4067 = vmatmul.bf16.gmra.mxu0 %v3920
        %v4068 = vpop.f32.mrf.mxu0
        %v4069 = vadd.f32 0.0, %v4068
        %v4070 = vpop.f32.mrf.mxu0
        %v4071 = vadd.f32 0.0, %v4070
        %4072 = vmatmul.bf16.gmra.mxu0 %v3923
        %v4073 = vpop.f32.mrf.mxu0
        %v4074 = vadd.f32 0.0, %v4073
        %v4075 = vpop.f32.mrf.mxu0
        %v4076 = vadd.f32 0.0, %v4075
        %4077 = vmatmul.bf16.gmra.mxu0 %v3926
        %v4078 = vpop.f32.mrf.mxu0
        %v4079 = vadd.f32 0.0, %v4078
        %v4080 = vpop.f32.mrf.mxu0
        %v4081 = vadd.f32 0.0, %v4080
        %4082 = vmatmul.bf16.gmra.mxu0 %v3929
        %v4083 = vpop.f32.mrf.mxu0
        %v4084 = vadd.f32 0.0, %v4083
        %v4085 = vpop.f32.mrf.mxu0
        %v4086 = vadd.f32 0.0, %v4085
        %4087 = vmatmul.bf16.gmra.mxu0 %v3932
        %v4088 = vpop.f32.mrf.mxu0
        %v4089 = vadd.f32 0.0, %v4088
        %v4090 = vpop.f32.mrf.mxu0
        %v4091 = vadd.f32 0.0, %v4090
        %4092 = vmatmul.bf16.gmra.mxu0 %v3935
        %v4093 = vpop.f32.mrf.mxu0
        %v4094 = vadd.f32 0.0, %v4093
        %v4095 = vpop.f32.mrf.mxu0
        %v4096 = vadd.f32 0.0, %v4095
        %4097 = vmatmul.bf16.gmra.mxu0 %v3938
        %v4098 = vpop.f32.mrf.mxu0
        %v4099 = vadd.f32 0.0, %v4098
        %v4100 = vpop.f32.mrf.mxu0
        %v4101 = vadd.f32 0.0, %v4100
        %4102 = vmatmul.bf16.gmra.mxu0 %v3941
        %v4103 = vpop.f32.mrf.mxu0
        %v4104 = vadd.f32 0.0, %v4103
        %v4105 = vpop.f32.mrf.mxu0
        %v4106 = vadd.f32 0.0, %v4105
        %4107 = vmatmul.bf16.gmra.mxu0 %v3944
        %v4108 = vpop.f32.mrf.mxu0
        %v4109 = vadd.f32 0.0, %v4108
        %v4110 = vpop.f32.mrf.mxu0
        %v4111 = vadd.f32 0.0, %v4110
        %4112 = vmatmul.bf16.gmra.mxu0 %v3947
        %v4113 = vpop.f32.mrf.mxu0
        %v4114 = vadd.f32 0.0, %v4113
        %v4115 = vpop.f32.mrf.mxu0
        %v4116 = vadd.f32 0.0, %v4115
        %4117 = vdwg.mxu0
        %v4118 = vld [vmem:[%s9] sm:$0x1]
        %s4119 = scalar_lea.vmem %s9, 1
        %v4120 = vld [vmem:[%s4119] sm:$0x1]
        %4121 = vadd.xlane.f32.xlu0 %v3959
        %v4122 = vpop.xlane.xlu0 %4121
        %4123 = vadd.xlane.f32.xlu0 %v3961
        %v4124 = vpop.xlane.xlu0 %4123
        %4125 = vadd.xlane.f32.xlu0 %v3964
        %v4126 = vpop.xlane.xlu0 %4125
        %4127 = vadd.xlane.f32.xlu0 %v3966
        %v4128 = vpop.xlane.xlu0 %4127
        %4129 = vadd.xlane.f32.xlu0 %v3969
        %v4130 = vpop.xlane.xlu0 %4129
        %4131 = vadd.xlane.f32.xlu0 %v3971
        %v4132 = vpop.xlane.xlu0 %4131
        %4133 = vadd.xlane.f32.xlu0 %v3974
        %v4134 = vpop.xlane.xlu0 %4133
        %4135 = vadd.xlane.f32.xlu0 %v3976
        %v4136 = vpop.xlane.xlu0 %4135
        %4137 = vadd.xlane.f32.xlu0 %v3979
        %v4138 = vpop.xlane.xlu0 %4137
        %4139 = vadd.xlane.f32.xlu0 %v3981
        %v4140 = vpop.xlane.xlu0 %4139
        %4141 = vadd.xlane.f32.xlu0 %v3984
        %v4142 = vpop.xlane.xlu0 %4141
        %4143 = vadd.xlane.f32.xlu0 %v3986
        %v4144 = vpop.xlane.xlu0 %4143
        %4145 = vadd.xlane.f32.xlu0 %v3989
        %v4146 = vpop.xlane.xlu0 %4145
        %4147 = vadd.xlane.f32.xlu0 %v3991
        %v4148 = vpop.xlane.xlu0 %4147
        %4149 = vadd.xlane.f32.xlu0 %v3994
        %v4150 = vpop.xlane.xlu0 %4149
        %4151 = vadd.xlane.f32.xlu0 %v3996
        %v4152 = vpop.xlane.xlu0 %4151
        %4153 = vadd.xlane.f32.xlu0 %v3999
        %v4154 = vpop.xlane.xlu0 %4153
        %4155 = vadd.xlane.f32.xlu0 %v4001
        %v4156 = vpop.xlane.xlu0 %4155
        %4157 = vadd.xlane.f32.xlu0 %v4004
        %v4158 = vpop.xlane.xlu0 %4157
        %4159 = vadd.xlane.f32.xlu0 %v4006
        %v4160 = vpop.xlane.xlu0 %4159
        %4161 = vadd.xlane.f32.xlu0 %v4009
        %v4162 = vpop.xlane.xlu0 %4161
        %4163 = vadd.xlane.f32.xlu0 %v4011
        %v4164 = vpop.xlane.xlu0 %4163
        %4165 = vadd.xlane.f32.xlu0 %v4014
        %v4166 = vpop.xlane.xlu0 %4165
        %4167 = vadd.xlane.f32.xlu0 %v4016
        %v4168 = vpop.xlane.xlu0 %4167
        %4169 = vadd.xlane.f32.xlu0 %v4019
        %v4170 = vpop.xlane.xlu0 %4169
        %4171 = vadd.xlane.f32.xlu0 %v4021
        %v4172 = vpop.xlane.xlu0 %4171
        %4173 = vadd.xlane.f32.xlu0 %v4024
        %v4174 = vpop.xlane.xlu0 %4173
        %4175 = vadd.xlane.f32.xlu0 %v4026
        %v4176 = vpop.xlane.xlu0 %4175
        %4177 = vadd.xlane.f32.xlu0 %v4029
        %v4178 = vpop.xlane.xlu0 %4177
        %4179 = vadd.xlane.f32.xlu0 %v4031
        %v4180 = vpop.xlane.xlu0 %4179
        %4181 = vadd.xlane.f32.xlu0 %v4034
        %v4182 = vpop.xlane.xlu0 %4181
        %4183 = vadd.xlane.f32.xlu0 %v4036
        %v4184 = vpop.xlane.xlu0 %4183
        %4185 = vadd.xlane.f32.xlu0 %v4039
        %v4186 = vpop.xlane.xlu0 %4185
        %4187 = vadd.xlane.f32.xlu0 %v4041
        %v4188 = vpop.xlane.xlu0 %4187
        %4189 = vadd.xlane.f32.xlu0 %v4044
        %v4190 = vpop.xlane.xlu0 %4189
        %4191 = vadd.xlane.f32.xlu0 %v4046
        %v4192 = vpop.xlane.xlu0 %4191
        %4193 = vadd.xlane.f32.xlu0 %v4049
        %v4194 = vpop.xlane.xlu0 %4193
        %4195 = vadd.xlane.f32.xlu0 %v4051
        %v4196 = vpop.xlane.xlu0 %4195
        %4197 = vadd.xlane.f32.xlu0 %v4054
        %v4198 = vpop.xlane.xlu0 %4197
        %4199 = vadd.xlane.f32.xlu0 %v4056
        %v4200 = vpop.xlane.xlu0 %4199
        %4201 = vadd.xlane.f32.xlu0 %v4059
        %v4202 = vpop.xlane.xlu0 %4201
        %4203 = vadd.xlane.f32.xlu0 %v4061
        %v4204 = vpop.xlane.xlu0 %4203
        %4205 = vadd.xlane.f32.xlu0 %v4064
        %v4206 = vpop.xlane.xlu0 %4205
        %4207 = vadd.xlane.f32.xlu0 %v4066
        %v4208 = vpop.xlane.xlu0 %4207
        %4209 = vadd.xlane.f32.xlu0 %v4069
        %v4210 = vpop.xlane.xlu0 %4209
        %4211 = vadd.xlane.f32.xlu0 %v4071
        %v4212 = vpop.xlane.xlu0 %4211
        %4213 = vadd.xlane.f32.xlu0 %v4074
        %v4214 = vpop.xlane.xlu0 %4213
        %4215 = vadd.xlane.f32.xlu0 %v4076
        %v4216 = vpop.xlane.xlu0 %4215
        %4217 = vadd.xlane.f32.xlu0 %v4079
        %v4218 = vpop.xlane.xlu0 %4217
        %4219 = vadd.xlane.f32.xlu0 %v4081
        %v4220 = vpop.xlane.xlu0 %4219
        %4221 = vadd.xlane.f32.xlu0 %v4084
        %v4222 = vpop.xlane.xlu0 %4221
        %4223 = vadd.xlane.f32.xlu0 %v4086
        %v4224 = vpop.xlane.xlu0 %4223
        %4225 = vadd.xlane.f32.xlu0 %v4089
        %v4226 = vpop.xlane.xlu0 %4225
        %4227 = vadd.xlane.f32.xlu0 %v4091
        %v4228 = vpop.xlane.xlu0 %4227
        %4229 = vadd.xlane.f32.xlu0 %v4094
        %v4230 = vpop.xlane.xlu0 %4229
        %4231 = vadd.xlane.f32.xlu0 %v4096
        %v4232 = vpop.xlane.xlu0 %4231
        %4233 = vadd.xlane.f32.xlu0 %v4099
        %v4234 = vpop.xlane.xlu0 %4233
        %4235 = vadd.xlane.f32.xlu0 %v4101
        %v4236 = vpop.xlane.xlu0 %4235
        %4237 = vadd.xlane.f32.xlu0 %v4104
        %v4238 = vpop.xlane.xlu0 %4237
        %4239 = vadd.xlane.f32.xlu0 %v4106
        %v4240 = vpop.xlane.xlu0 %4239
        %4241 = vadd.xlane.f32.xlu0 %v4109
        %v4242 = vpop.xlane.xlu0 %4241
        %4243 = vadd.xlane.f32.xlu0 %v4111
        %v4244 = vpop.xlane.xlu0 %4243
        %4245 = vadd.xlane.f32.xlu0 %v4114
        %v4246 = vpop.xlane.xlu0 %4245
        %4247 = vadd.xlane.f32.xlu0 %v4116
        %v4248 = vpop.xlane.xlu0 %4247
        %v4249 = vadd.f32 %v4122, %v4124
        %v4250 = vadd.f32 %v4249, %v4126
        %v4251 = vadd.f32 %v4250, %v4128
        %v4252 = vadd.f32 %v4251, %v4130
        %v4253 = vadd.f32 %v4252, %v4132
        %v4254 = vadd.f32 %v4253, %v4134
        %v4255 = vadd.f32 %v4254, %v4136
        %v4256 = vadd.f32 %v4255, %v4138
        %v4257 = vadd.f32 %v4256, %v4140
        %v4258 = vadd.f32 %v4257, %v4142
        %v4259 = vadd.f32 %v4258, %v4144
        %v4260 = vadd.f32 %v4259, %v4146
        %v4261 = vadd.f32 %v4260, %v4148
        %v4262 = vadd.f32 %v4261, %v4150
        %v4263 = vadd.f32 %v4262, %v4152
        %v4264 = vrot.slane %v4263, 4
        %v4265 = vadd.f32 %v4263, %v4264
        %v4266 = vrot.slane %v4265, 2
        %v4267 = vadd.f32 %v4265, %v4266
        %v4268 = vrot.slane %v4267, 1
        %v4269 = vadd.f32 %v4267, %v4268
        %v4270 = vadd.f32 %v4154, %v4156
        %v4271 = vadd.f32 %v4270, %v4158
        %v4272 = vadd.f32 %v4271, %v4160
        %v4273 = vadd.f32 %v4272, %v4162
        %v4274 = vadd.f32 %v4273, %v4164
        %v4275 = vadd.f32 %v4274, %v4166
        %v4276 = vadd.f32 %v4275, %v4168
        %v4277 = vadd.f32 %v4276, %v4170
        %v4278 = vadd.f32 %v4277, %v4172
        %v4279 = vadd.f32 %v4278, %v4174
        %v4280 = vadd.f32 %v4279, %v4176
        %v4281 = vadd.f32 %v4280, %v4178
        %v4282 = vadd.f32 %v4281, %v4180
        %v4283 = vadd.f32 %v4282, %v4182
        %v4284 = vadd.f32 %v4283, %v4184
        %v4285 = vrot.slane %v4284, 4
        %v4286 = vadd.f32 %v4284, %v4285
        %v4287 = vrot.slane %v4286, 2
        %v4288 = vadd.f32 %v4286, %v4287
        %v4289 = vrot.slane %v4288, 1
        %v4290 = vadd.f32 %v4288, %v4289
        %v4291 = vadd.f32 %v4186, %v4188
        %v4292 = vadd.f32 %v4291, %v4190
        %v4293 = vadd.f32 %v4292, %v4192
        %v4294 = vadd.f32 %v4293, %v4194
        %v4295 = vadd.f32 %v4294, %v4196
        %v4296 = vadd.f32 %v4295, %v4198
        %v4297 = vadd.f32 %v4296, %v4200
        %v4298 = vadd.f32 %v4297, %v4202
        %v4299 = vadd.f32 %v4298, %v4204
        %v4300 = vadd.f32 %v4299, %v4206
        %v4301 = vadd.f32 %v4300, %v4208
        %v4302 = vadd.f32 %v4301, %v4210
        %v4303 = vadd.f32 %v4302, %v4212
        %v4304 = vadd.f32 %v4303, %v4214
        %v4305 = vadd.f32 %v4304, %v4216
        %v4306 = vrot.slane %v4305, 4
        %v4307 = vadd.f32 %v4305, %v4306
        %v4308 = vrot.slane %v4307, 2
        %v4309 = vadd.f32 %v4307, %v4308
        %v4310 = vrot.slane %v4309, 1
        %v4311 = vadd.f32 %v4309, %v4310
        %v4312 = vadd.f32 %v4218, %v4220
        %v4313 = vadd.f32 %v4312, %v4222
        %v4314 = vadd.f32 %v4313, %v4224
        %v4315 = vadd.f32 %v4314, %v4226
        %v4316 = vadd.f32 %v4315, %v4228
        %v4317 = vadd.f32 %v4316, %v4230
        %v4318 = vadd.f32 %v4317, %v4232
        %v4319 = vadd.f32 %v4318, %v4234
        %v4320 = vadd.f32 %v4319, %v4236
        %v4321 = vadd.f32 %v4320, %v4238
        %v4322 = vadd.f32 %v4321, %v4240
        %v4323 = vadd.f32 %v4322, %v4242
        %v4324 = vadd.f32 %v4323, %v4244
        %v4325 = vadd.f32 %v4324, %v4246
        %v4326 = vadd.f32 %v4325, %v4248
        %v4327 = vrot.slane %v4326, 4
        %v4328 = vadd.f32 %v4326, %v4327
        %v4329 = vrot.slane %v4328, 2
        %v4330 = vadd.f32 %v4328, %v4329
        %v4331 = vrot.slane %v4330, 1
        %v4332 = vadd.f32 %v4330, %v4331
        %v4333 = vmul.f32 %v3959, %v3959
        %v4334 = vmul.f32 %v3961, %v3961
        %v4335 = vmul.f32 %v3964, %v3964
        %v4336 = vmul.f32 %v3966, %v3966
        %v4337 = vmul.f32 %v3969, %v3969
        %v4338 = vmul.f32 %v3971, %v3971
        %v4339 = vmul.f32 %v3974, %v3974
        %v4340 = vmul.f32 %v3976, %v3976
        %v4341 = vmul.f32 %v3979, %v3979
        %v4342 = vmul.f32 %v3981, %v3981
        %v4343 = vmul.f32 %v3984, %v3984
        %v4344 = vmul.f32 %v3986, %v3986
        %v4345 = vmul.f32 %v3989, %v3989
        %v4346 = vmul.f32 %v3991, %v3991
        %v4347 = vmul.f32 %v3994, %v3994
        %v4348 = vmul.f32 %v3996, %v3996
        %v4349 = vmul.f32 %v3999, %v3999
        %v4350 = vmul.f32 %v4001, %v4001
        %v4351 = vmul.f32 %v4004, %v4004
        %v4352 = vmul.f32 %v4006, %v4006
        %v4353 = vmul.f32 %v4009, %v4009
        %v4354 = vmul.f32 %v4011, %v4011
        %v4355 = vmul.f32 %v4014, %v4014
        %v4356 = vmul.f32 %v4016, %v4016
        %v4357 = vmul.f32 %v4019, %v4019
        %v4358 = vmul.f32 %v4021, %v4021
        %v4359 = vmul.f32 %v4024, %v4024
        %v4360 = vmul.f32 %v4026, %v4026
        %v4361 = vmul.f32 %v4029, %v4029
        %v4362 = vmul.f32 %v4031, %v4031
        %v4363 = vmul.f32 %v4034, %v4034
        %v4364 = vmul.f32 %v4036, %v4036
        %v4365 = vmul.f32 %v4039, %v4039
        %v4366 = vmul.f32 %v4041, %v4041
        %v4367 = vmul.f32 %v4044, %v4044
        %v4368 = vmul.f32 %v4046, %v4046
        %v4369 = vmul.f32 %v4049, %v4049
        %v4370 = vmul.f32 %v4051, %v4051
        %v4371 = vmul.f32 %v4054, %v4054
        %v4372 = vmul.f32 %v4056, %v4056
        %v4373 = vmul.f32 %v4059, %v4059
        %v4374 = vmul.f32 %v4061, %v4061
        %v4375 = vmul.f32 %v4064, %v4064
        %v4376 = vmul.f32 %v4066, %v4066
        %v4377 = vmul.f32 %v4069, %v4069
        %v4378 = vmul.f32 %v4071, %v4071
        %v4379 = vmul.f32 %v4074, %v4074
        %v4380 = vmul.f32 %v4076, %v4076
        %v4381 = vmul.f32 %v4079, %v4079
        %v4382 = vmul.f32 %v4081, %v4081
        %v4383 = vmul.f32 %v4084, %v4084
        %v4384 = vmul.f32 %v4086, %v4086
        %v4385 = vmul.f32 %v4089, %v4089
        %v4386 = vmul.f32 %v4091, %v4091
        %v4387 = vmul.f32 %v4094, %v4094
        %v4388 = vmul.f32 %v4096, %v4096
        %v4389 = vmul.f32 %v4099, %v4099
        %v4390 = vmul.f32 %v4101, %v4101
        %v4391 = vmul.f32 %v4104, %v4104
        %v4392 = vmul.f32 %v4106, %v4106
        %v4393 = vmul.f32 %v4109, %v4109
        %v4394 = vmul.f32 %v4111, %v4111
        %v4395 = vmul.f32 %v4114, %v4114
        %v4396 = vmul.f32 %v4116, %v4116
        %4397 = vadd.xlane.f32.xlu0 %v4333
        %v4398 = vpop.xlane.xlu0 %4397
        %4399 = vadd.xlane.f32.xlu0 %v4334
        %v4400 = vpop.xlane.xlu0 %4399
        %4401 = vadd.xlane.f32.xlu0 %v4335
        %v4402 = vpop.xlane.xlu0 %4401
        %4403 = vadd.xlane.f32.xlu0 %v4336
        %v4404 = vpop.xlane.xlu0 %4403
        %4405 = vadd.xlane.f32.xlu0 %v4337
        %v4406 = vpop.xlane.xlu0 %4405
        %4407 = vadd.xlane.f32.xlu0 %v4338
        %v4408 = vpop.xlane.xlu0 %4407
        %4409 = vadd.xlane.f32.xlu0 %v4339
        %v4410 = vpop.xlane.xlu0 %4409
        %4411 = vadd.xlane.f32.xlu0 %v4340
        %v4412 = vpop.xlane.xlu0 %4411
        %4413 = vadd.xlane.f32.xlu0 %v4341
        %v4414 = vpop.xlane.xlu0 %4413
        %4415 = vadd.xlane.f32.xlu0 %v4342
        %v4416 = vpop.xlane.xlu0 %4415
        %4417 = vadd.xlane.f32.xlu0 %v4343
        %v4418 = vpop.xlane.xlu0 %4417
        %4419 = vadd.xlane.f32.xlu0 %v4344
        %v4420 = vpop.xlane.xlu0 %4419
        %4421 = vadd.xlane.f32.xlu0 %v4345
        %v4422 = vpop.xlane.xlu0 %4421
        %4423 = vadd.xlane.f32.xlu0 %v4346
        %v4424 = vpop.xlane.xlu0 %4423
        %4425 = vadd.xlane.f32.xlu0 %v4347
        %v4426 = vpop.xlane.xlu0 %4425
        %4427 = vadd.xlane.f32.xlu0 %v4348
        %v4428 = vpop.xlane.xlu0 %4427
        %4429 = vadd.xlane.f32.xlu0 %v4349
        %v4430 = vpop.xlane.xlu0 %4429
        %4431 = vadd.xlane.f32.xlu0 %v4350
        %v4432 = vpop.xlane.xlu0 %4431
        %4433 = vadd.xlane.f32.xlu0 %v4351
        %v4434 = vpop.xlane.xlu0 %4433
        %4435 = vadd.xlane.f32.xlu0 %v4352
        %v4436 = vpop.xlane.xlu0 %4435
        %4437 = vadd.xlane.f32.xlu0 %v4353
        %v4438 = vpop.xlane.xlu0 %4437
        %4439 = vadd.xlane.f32.xlu0 %v4354
        %v4440 = vpop.xlane.xlu0 %4439
        %4441 = vadd.xlane.f32.xlu0 %v4355
        %v4442 = vpop.xlane.xlu0 %4441
        %4443 = vadd.xlane.f32.xlu0 %v4356
        %v4444 = vpop.xlane.xlu0 %4443
        %4445 = vadd.xlane.f32.xlu0 %v4357
        %v4446 = vpop.xlane.xlu0 %4445
        %4447 = vadd.xlane.f32.xlu0 %v4358
        %v4448 = vpop.xlane.xlu0 %4447
        %4449 = vadd.xlane.f32.xlu0 %v4359
        %v4450 = vpop.xlane.xlu0 %4449
        %4451 = vadd.xlane.f32.xlu0 %v4360
        %v4452 = vpop.xlane.xlu0 %4451
        %4453 = vadd.xlane.f32.xlu0 %v4361
        %v4454 = vpop.xlane.xlu0 %4453
        %4455 = vadd.xlane.f32.xlu0 %v4362
        %v4456 = vpop.xlane.xlu0 %4455
        %4457 = vadd.xlane.f32.xlu0 %v4363
        %v4458 = vpop.xlane.xlu0 %4457
        %4459 = vadd.xlane.f32.xlu0 %v4364
        %v4460 = vpop.xlane.xlu0 %4459
        %4461 = vadd.xlane.f32.xlu0 %v4365
        %v4462 = vpop.xlane.xlu0 %4461
        %4463 = vadd.xlane.f32.xlu0 %v4366
        %v4464 = vpop.xlane.xlu0 %4463
        %4465 = vadd.xlane.f32.xlu0 %v4367
        %v4466 = vpop.xlane.xlu0 %4465
        %4467 = vadd.xlane.f32.xlu0 %v4368
        %v4468 = vpop.xlane.xlu0 %4467
        %4469 = vadd.xlane.f32.xlu0 %v4369
        %v4470 = vpop.xlane.xlu0 %4469
        %4471 = vadd.xlane.f32.xlu0 %v4370
        %v4472 = vpop.xlane.xlu0 %4471
        %4473 = vadd.xlane.f32.xlu0 %v4371
        %v4474 = vpop.xlane.xlu0 %4473
        %4475 = vadd.xlane.f32.xlu0 %v4372
        %v4476 = vpop.xlane.xlu0 %4475
        %4477 = vadd.xlane.f32.xlu0 %v4373
        %v4478 = vpop.xlane.xlu0 %4477
        %4479 = vadd.xlane.f32.xlu0 %v4374
        %v4480 = vpop.xlane.xlu0 %4479
        %4481 = vadd.xlane.f32.xlu0 %v4375
        %v4482 = vpop.xlane.xlu0 %4481
        %4483 = vadd.xlane.f32.xlu0 %v4376
        %v4484 = vpop.xlane.xlu0 %4483
        %4485 = vadd.xlane.f32.xlu0 %v4377
        %v4486 = vpop.xlane.xlu0 %4485
        %4487 = vadd.xlane.f32.xlu0 %v4378
        %v4488 = vpop.xlane.xlu0 %4487
        %4489 = vadd.xlane.f32.xlu0 %v4379
        %v4490 = vpop.xlane.xlu0 %4489
        %4491 = vadd.xlane.f32.xlu0 %v4380
        %v4492 = vpop.xlane.xlu0 %4491
        %4493 = vadd.xlane.f32.xlu0 %v4381
        %v4494 = vpop.xlane.xlu0 %4493
        %4495 = vadd.xlane.f32.xlu0 %v4382
        %v4496 = vpop.xlane.xlu0 %4495
        %4497 = vadd.xlane.f32.xlu0 %v4383
        %v4498 = vpop.xlane.xlu0 %4497
        %4499 = vadd.xlane.f32.xlu0 %v4384
        %v4500 = vpop.xlane.xlu0 %4499
        %4501 = vadd.xlane.f32.xlu0 %v4385
        %v4502 = vpop.xlane.xlu0 %4501
        %4503 = vadd.xlane.f32.xlu0 %v4386
        %v4504 = vpop.xlane.xlu0 %4503
        %4505 = vadd.xlane.f32.xlu0 %v4387
        %v4506 = vpop.xlane.xlu0 %4505
        %4507 = vadd.xlane.f32.xlu0 %v4388
        %v4508 = vpop.xlane.xlu0 %4507
        %4509 = vadd.xlane.f32.xlu0 %v4389
        %v4510 = vpop.xlane.xlu0 %4509
        %4511 = vadd.xlane.f32.xlu0 %v4390
        %v4512 = vpop.xlane.xlu0 %4511
        %4513 = vadd.xlane.f32.xlu0 %v4391
        %v4514 = vpop.xlane.xlu0 %4513
        %4515 = vadd.xlane.f32.xlu0 %v4392
        %v4516 = vpop.xlane.xlu0 %4515
        %4517 = vadd.xlane.f32.xlu0 %v4393
        %v4518 = vpop.xlane.xlu0 %4517
        %4519 = vadd.xlane.f32.xlu0 %v4394
        %v4520 = vpop.xlane.xlu0 %4519
        %4521 = vadd.xlane.f32.xlu0 %v4395
        %v4522 = vpop.xlane.xlu0 %4521
        %4523 = vadd.xlane.f32.xlu0 %v4396
        %v4524 = vpop.xlane.xlu0 %4523
        %v4525 = vadd.f32 %v4398, %v4400
        %v4526 = vadd.f32 %v4525, %v4402
        %v4527 = vadd.f32 %v4526, %v4404
        %v4528 = vadd.f32 %v4527, %v4406
        %v4529 = vadd.f32 %v4528, %v4408
        %v4530 = vadd.f32 %v4529, %v4410
        %v4531 = vadd.f32 %v4530, %v4412
        %v4532 = vadd.f32 %v4531, %v4414
        %v4533 = vadd.f32 %v4532, %v4416
        %v4534 = vadd.f32 %v4533, %v4418
        %v4535 = vadd.f32 %v4534, %v4420
        %v4536 = vadd.f32 %v4535, %v4422
        %v4537 = vadd.f32 %v4536, %v4424
        %v4538 = vadd.f32 %v4537, %v4426
        %v4539 = vadd.f32 %v4538, %v4428
        %v4540 = vrot.slane %v4539, 4
        %v4541 = vadd.f32 %v4539, %v4540
        %v4542 = vrot.slane %v4541, 2
        %v4543 = vadd.f32 %v4541, %v4542
        %v4544 = vrot.slane %v4543, 1
        %v4545 = vadd.f32 %v4543, %v4544
        %v4546 = vadd.f32 %v4430, %v4432
        %v4547 = vadd.f32 %v4546, %v4434
        %v4548 = vadd.f32 %v4547, %v4436
        %v4549 = vadd.f32 %v4548, %v4438
        %v4550 = vadd.f32 %v4549, %v4440
        %v4551 = vadd.f32 %v4550, %v4442
        %v4552 = vadd.f32 %v4551, %v4444
        %v4553 = vadd.f32 %v4552, %v4446
        %v4554 = vadd.f32 %v4553, %v4448
        %v4555 = vadd.f32 %v4554, %v4450
        %v4556 = vadd.f32 %v4555, %v4452
        %v4557 = vadd.f32 %v4556, %v4454
        %v4558 = vadd.f32 %v4557, %v4456
        %v4559 = vadd.f32 %v4558, %v4458
        %v4560 = vadd.f32 %v4559, %v4460
        %v4561 = vrot.slane %v4560, 4
        %v4562 = vadd.f32 %v4560, %v4561
        %v4563 = vrot.slane %v4562, 2
        %v4564 = vadd.f32 %v4562, %v4563
        %v4565 = vrot.slane %v4564, 1
        %v4566 = vadd.f32 %v4564, %v4565
        %v4567 = vadd.f32 %v4462, %v4464
        %v4568 = vadd.f32 %v4567, %v4466
        %v4569 = vadd.f32 %v4568, %v4468
        %v4570 = vadd.f32 %v4569, %v4470
        %v4571 = vadd.f32 %v4570, %v4472
        %v4572 = vadd.f32 %v4571, %v4474
        %v4573 = vadd.f32 %v4572, %v4476
        %v4574 = vadd.f32 %v4573, %v4478
        %v4575 = vadd.f32 %v4574, %v4480
        %v4576 = vadd.f32 %v4575, %v4482
        %v4577 = vadd.f32 %v4576, %v4484
        %v4578 = vadd.f32 %v4577, %v4486
        %v4579 = vadd.f32 %v4578, %v4488
        %v4580 = vadd.f32 %v4579, %v4490
        %v4581 = vadd.f32 %v4580, %v4492
        %v4582 = vrot.slane %v4581, 4
        %v4583 = vadd.f32 %v4581, %v4582
        %v4584 = vrot.slane %v4583, 2
        %v4585 = vadd.f32 %v4583, %v4584
        %v4586 = vrot.slane %v4585, 1
        %v4587 = vadd.f32 %v4585, %v4586
        %v4588 = vadd.f32 %v4494, %v4496
        %v4589 = vadd.f32 %v4588, %v4498
        %v4590 = vadd.f32 %v4589, %v4500
        %v4591 = vadd.f32 %v4590, %v4502
        %v4592 = vadd.f32 %v4591, %v4504
        %v4593 = vadd.f32 %v4592, %v4506
        %v4594 = vadd.f32 %v4593, %v4508
        %v4595 = vadd.f32 %v4594, %v4510
        %v4596 = vadd.f32 %v4595, %v4512
        %v4597 = vadd.f32 %v4596, %v4514
        %v4598 = vadd.f32 %v4597, %v4516
        %v4599 = vadd.f32 %v4598, %v4518
        %v4600 = vadd.f32 %v4599, %v4520
        %v4601 = vadd.f32 %v4600, %v4522
        %v4602 = vadd.f32 %v4601, %v4524
        %v4603 = vrot.slane %v4602, 4
        %v4604 = vadd.f32 %v4602, %v4603
        %v4605 = vrot.slane %v4604, 2
        %v4606 = vadd.f32 %v4604, %v4605
        %v4607 = vrot.slane %v4606, 1
        %v4608 = vadd.f32 %v4606, %v4607
        %v4609 = vmul.f32 %v4269, 6.1035156e-05
        %v4610 = vmul.f32 %v4290, 6.1035156e-05
        %v4611 = vmul.f32 %v4311, 6.1035156e-05
        %v4612 = vmul.f32 %v4332, 6.1035156e-05
        %v4613 = vmul.f32 %v4545, 6.1035156e-05
        %v4614 = vmul.f32 %v4566, 6.1035156e-05
        %v4615 = vmul.f32 %v4587, 6.1035156e-05
        %v4616 = vmul.f32 %v4608, 6.1035156e-05
        %v4617 = vmul.f32 %v4609, %v4609
        %v4618 = vmul.f32 %v4610, %v4610
        %v4619 = vmul.f32 %v4611, %v4611
        %v4620 = vmul.f32 %v4612, %v4612
        %v4621 = vsub.f32 %v4613, %v4617
        %v4622 = vsub.f32 %v4614, %v4618
        %v4623 = vsub.f32 %v4615, %v4619
        %v4624 = vsub.f32 %v4616, %v4620
        %v4625 = vadd.f32 %v4621, 1e-05
        %v4626 = vadd.f32 %v4622, 1e-05
        %v4627 = vadd.f32 %v4623, 1e-05
        %v4628 = vadd.f32 %v4624, 1e-05
        %v4629 = vrsqrt.pop %v4625
        %v4630 = vmul.f32 %v4629, %v4625
        %v4631 = vmul.f32 %v4630, %v4629
        %v4632 = vmul.f32 0.5, %v4631
        %v4633 = vsub.f32 1.5, %v4632
        %v4634 = vmul.f32 %v4629, %v4633
        %vm4635 = vweird.f32 %v4625
        %vm4636 = vweird.f32 %v4629
        %vm4637 = vmor %vm4635, %vm4636
        %v4638 = vsel %vm4637, %v4629, %v4634
        %v4639 = vrsqrt.pop %v4626
        %v4640 = vmul.f32 %v4639, %v4626
        %v4641 = vmul.f32 %v4640, %v4639
        %v4642 = vmul.f32 0.5, %v4641
        %v4643 = vsub.f32 1.5, %v4642
        %v4644 = vmul.f32 %v4639, %v4643
        %vm4645 = vweird.f32 %v4626
        %vm4646 = vweird.f32 %v4639
        %vm4647 = vmor %vm4645, %vm4646
        %v4648 = vsel %vm4647, %v4639, %v4644
        %v4649 = vrsqrt.pop %v4627
        %v4650 = vmul.f32 %v4649, %v4627
        %v4651 = vmul.f32 %v4650, %v4649
        %v4652 = vmul.f32 0.5, %v4651
        %v4653 = vsub.f32 1.5, %v4652
        %v4654 = vmul.f32 %v4649, %v4653
        %vm4655 = vweird.f32 %v4627
        %vm4656 = vweird.f32 %v4649
        %vm4657 = vmor %vm4655, %vm4656
        %v4658 = vsel %vm4657, %v4649, %v4654
        %v4659 = vrsqrt.pop %v4628
        %v4660 = vmul.f32 %v4659, %v4628
        %v4661 = vmul.f32 %v4660, %v4659
        %v4662 = vmul.f32 0.5, %v4661
        %v4663 = vsub.f32 1.5, %v4662
        %v4664 = vmul.f32 %v4659, %v4663
        %vm4665 = vweird.f32 %v4628
        %vm4666 = vweird.f32 %v4659
        %vm4667 = vmor %vm4665, %vm4666
        %v4668 = vsel %vm4667, %v4659, %v4664
        %v4669 = vmul.f32 %v4638, %v4118
        %v4670 = vmul.f32 %v4648, %v4118
        %v4671 = vmul.f32 %v4658, %v4118
        %v4672 = vmul.f32 %v4668, %v4118
        %v4673 = vmul.f32 %v4609, %v4669
        %v4674 = vmul.f32 %v4610, %v4670
        %v4675 = vmul.f32 %v4611, %v4671
        %v4676 = vmul.f32 %v4612, %v4672
        %v4677 = vsub.f32 %v4120, %v4673
        %v4678 = vsub.f32 %v4120, %v4674
        %v4679 = vsub.f32 %v4120, %v4675
        %v4680 = vsub.f32 %v4120, %v4676
        %v4685 = vperm.slane %v4669, 0
        %v4686 = vperm.slane %v4670, 0
        %v4687 = vperm.slane %v4671, 0
        %v4688 = vperm.slane %v4672, 0
        %v4693 = vmul.f32 %v3959, %v4685
        %v4694 = vmul.f32 %v3961, %v4685
        %v4695 = vmul.f32 %v3964, %v4685
        %v4696 = vmul.f32 %v3966, %v4685
        %v4697 = vmul.f32 %v3969, %v4685
        %v4698 = vmul.f32 %v3971, %v4685
        %v4699 = vmul.f32 %v3974, %v4685
        %v4700 = vmul.f32 %v3976, %v4685
        %v4701 = vmul.f32 %v3979, %v4685
        %v4702 = vmul.f32 %v3981, %v4685
        %v4703 = vmul.f32 %v3984, %v4685
        %v4704 = vmul.f32 %v3986, %v4685
        %v4705 = vmul.f32 %v3989, %v4685
        %v4706 = vmul.f32 %v3991, %v4685
        %v4707 = vmul.f32 %v3994, %v4685
        %v4708 = vmul.f32 %v3996, %v4685
        %v4709 = vmul.f32 %v3999, %v4686
        %v4710 = vmul.f32 %v4001, %v4686
        %v4711 = vmul.f32 %v4004, %v4686
        %v4712 = vmul.f32 %v4006, %v4686
        %v4713 = vmul.f32 %v4009, %v4686
        %v4714 = vmul.f32 %v4011, %v4686
        %v4715 = vmul.f32 %v4014, %v4686
        %v4716 = vmul.f32 %v4016, %v4686
        %v4717 = vmul.f32 %v4019, %v4686
        %v4718 = vmul.f32 %v4021, %v4686
        %v4719 = vmul.f32 %v4024, %v4686
        %v4720 = vmul.f32 %v4026, %v4686
        %v4721 = vmul.f32 %v4029, %v4686
        %v4722 = vmul.f32 %v4031, %v4686
        %v4723 = vmul.f32 %v4034, %v4686
        %v4724 = vmul.f32 %v4036, %v4686
        %v4725 = vmul.f32 %v4039, %v4687
        %v4726 = vmul.f32 %v4041, %v4687
        %v4727 = vmul.f32 %v4044, %v4687
        %v4728 = vmul.f32 %v4046, %v4687
        %v4729 = vmul.f32 %v4049, %v4687
        %v4730 = vmul.f32 %v4051, %v4687
        %v4731 = vmul.f32 %v4054, %v4687
        %v4732 = vmul.f32 %v4056, %v4687
        %v4733 = vmul.f32 %v4059, %v4687
        %v4734 = vmul.f32 %v4061, %v4687
        %v4735 = vmul.f32 %v4064, %v4687
        %v4736 = vmul.f32 %v4066, %v4687
        %v4737 = vmul.f32 %v4069, %v4687
        %v4738 = vmul.f32 %v4071, %v4687
        %v4739 = vmul.f32 %v4074, %v4687
        %v4740 = vmul.f32 %v4076, %v4687
        %v4741 = vmul.f32 %v4079, %v4688
        %v4742 = vmul.f32 %v4081, %v4688
        %v4743 = vmul.f32 %v4084, %v4688
        %v4744 = vmul.f32 %v4086, %v4688
        %v4745 = vmul.f32 %v4089, %v4688
        %v4746 = vmul.f32 %v4091, %v4688
        %v4747 = vmul.f32 %v4094, %v4688
        %v4748 = vmul.f32 %v4096, %v4688
        %v4749 = vmul.f32 %v4099, %v4688
        %v4750 = vmul.f32 %v4101, %v4688
        %v4751 = vmul.f32 %v4104, %v4688
        %v4752 = vmul.f32 %v4106, %v4688
        %v4753 = vmul.f32 %v4109, %v4688
        %v4754 = vmul.f32 %v4111, %v4688
        %v4755 = vmul.f32 %v4114, %v4688
        %v4756 = vmul.f32 %v4116, %v4688
        %v4761 = vperm.slane %v4677, 0
        %v4762 = vperm.slane %v4678, 0
        %v4763 = vperm.slane %v4679, 0
        %v4764 = vperm.slane %v4680, 0
        %v4769 = vadd.f32 %v4693, %v4761
        %v4770 = vadd.f32 %v4694, %v4761
        %v4771 = vadd.f32 %v4695, %v4761
        %v4772 = vadd.f32 %v4696, %v4761
        %v4773 = vadd.f32 %v4697, %v4761
        %v4774 = vadd.f32 %v4698, %v4761
        %v4775 = vadd.f32 %v4699, %v4761
        %v4776 = vadd.f32 %v4700, %v4761
        %v4777 = vadd.f32 %v4701, %v4761
        %v4778 = vadd.f32 %v4702, %v4761
        %v4779 = vadd.f32 %v4703, %v4761
        %v4780 = vadd.f32 %v4704, %v4761
        %v4781 = vadd.f32 %v4705, %v4761
        %v4782 = vadd.f32 %v4706, %v4761
        %v4783 = vadd.f32 %v4707, %v4761
        %v4784 = vadd.f32 %v4708, %v4761
        %v4785 = vadd.f32 %v4709, %v4762
        %v4786 = vadd.f32 %v4710, %v4762
        %v4787 = vadd.f32 %v4711, %v4762
        %v4788 = vadd.f32 %v4712, %v4762
        %v4789 = vadd.f32 %v4713, %v4762
        %v4790 = vadd.f32 %v4714, %v4762
        %v4791 = vadd.f32 %v4715, %v4762
        %v4792 = vadd.f32 %v4716, %v4762
        %v4793 = vadd.f32 %v4717, %v4762
        %v4794 = vadd.f32 %v4718, %v4762
        %v4795 = vadd.f32 %v4719, %v4762
        %v4796 = vadd.f32 %v4720, %v4762
        %v4797 = vadd.f32 %v4721, %v4762
        %v4798 = vadd.f32 %v4722, %v4762
        %v4799 = vadd.f32 %v4723, %v4762
        %v4800 = vadd.f32 %v4724, %v4762
        %v4801 = vadd.f32 %v4725, %v4763
        %v4802 = vadd.f32 %v4726, %v4763
        %v4803 = vadd.f32 %v4727, %v4763
        %v4804 = vadd.f32 %v4728, %v4763
        %v4805 = vadd.f32 %v4729, %v4763
        %v4806 = vadd.f32 %v4730, %v4763
        %v4807 = vadd.f32 %v4731, %v4763
        %v4808 = vadd.f32 %v4732, %v4763
        %v4809 = vadd.f32 %v4733, %v4763
        %v4810 = vadd.f32 %v4734, %v4763
        %v4811 = vadd.f32 %v4735, %v4763
        %v4812 = vadd.f32 %v4736, %v4763
        %v4813 = vadd.f32 %v4737, %v4763
        %v4814 = vadd.f32 %v4738, %v4763
        %v4815 = vadd.f32 %v4739, %v4763
        %v4816 = vadd.f32 %v4740, %v4763
        %v4817 = vadd.f32 %v4741, %v4764
        %v4818 = vadd.f32 %v4742, %v4764
        %v4819 = vadd.f32 %v4743, %v4764
        %v4820 = vadd.f32 %v4744, %v4764
        %v4821 = vadd.f32 %v4745, %v4764
        %v4822 = vadd.f32 %v4746, %v4764
        %v4823 = vadd.f32 %v4747, %v4764
        %v4824 = vadd.f32 %v4748, %v4764
        %v4825 = vadd.f32 %v4749, %v4764
        %v4826 = vadd.f32 %v4750, %v4764
        %v4827 = vadd.f32 %v4751, %v4764
        %v4828 = vadd.f32 %v4752, %v4764
        %v4829 = vadd.f32 %v4753, %v4764
        %v4830 = vadd.f32 %v4754, %v4764
        %v4831 = vadd.f32 %v4755, %v4764
        %v4832 = vadd.f32 %v4756, %v4764
        %v4833 = vmax.f32 %v4769, 0.0
        %v4834 = vmax.f32 %v4770, 0.0
        %v4835 = vmax.f32 %v4771, 0.0
        %v4836 = vmax.f32 %v4772, 0.0
        %v4837 = vmax.f32 %v4773, 0.0
        %v4838 = vmax.f32 %v4774, 0.0
        %v4839 = vmax.f32 %v4775, 0.0
        %v4840 = vmax.f32 %v4776, 0.0
        %v4841 = vmax.f32 %v4777, 0.0
        %v4842 = vmax.f32 %v4778, 0.0
        %v4843 = vmax.f32 %v4779, 0.0
        %v4844 = vmax.f32 %v4780, 0.0
        %v4845 = vmax.f32 %v4781, 0.0
        %v4846 = vmax.f32 %v4782, 0.0
        %v4847 = vmax.f32 %v4783, 0.0
        %v4848 = vmax.f32 %v4784, 0.0
        %v4849 = vmax.f32 %v4785, 0.0
        %v4850 = vmax.f32 %v4786, 0.0
        %v4851 = vmax.f32 %v4787, 0.0
        %v4852 = vmax.f32 %v4788, 0.0
        %v4853 = vmax.f32 %v4789, 0.0
        %v4854 = vmax.f32 %v4790, 0.0
        %v4855 = vmax.f32 %v4791, 0.0
        %v4856 = vmax.f32 %v4792, 0.0
        %v4857 = vmax.f32 %v4793, 0.0
        %v4858 = vmax.f32 %v4794, 0.0
        %v4859 = vmax.f32 %v4795, 0.0
        %v4860 = vmax.f32 %v4796, 0.0
        %v4861 = vmax.f32 %v4797, 0.0
        %v4862 = vmax.f32 %v4798, 0.0
        %v4863 = vmax.f32 %v4799, 0.0
        %v4864 = vmax.f32 %v4800, 0.0
        %v4865 = vmax.f32 %v4801, 0.0
        %v4866 = vmax.f32 %v4802, 0.0
        %v4867 = vmax.f32 %v4803, 0.0
        %v4868 = vmax.f32 %v4804, 0.0
        %v4869 = vmax.f32 %v4805, 0.0
        %v4870 = vmax.f32 %v4806, 0.0
        %v4871 = vmax.f32 %v4807, 0.0
        %v4872 = vmax.f32 %v4808, 0.0
        %v4873 = vmax.f32 %v4809, 0.0
        %v4874 = vmax.f32 %v4810, 0.0
        %v4875 = vmax.f32 %v4811, 0.0
        %v4876 = vmax.f32 %v4812, 0.0
        %v4877 = vmax.f32 %v4813, 0.0
        %v4878 = vmax.f32 %v4814, 0.0
        %v4879 = vmax.f32 %v4815, 0.0
        %v4880 = vmax.f32 %v4816, 0.0
        %v4881 = vmax.f32 %v4817, 0.0
        %v4882 = vmax.f32 %v4818, 0.0
        %v4883 = vmax.f32 %v4819, 0.0
        %v4884 = vmax.f32 %v4820, 0.0
        %v4885 = vmax.f32 %v4821, 0.0
        %v4886 = vmax.f32 %v4822, 0.0
        %v4887 = vmax.f32 %v4823, 0.0
        %v4888 = vmax.f32 %v4824, 0.0
        %v4889 = vmax.f32 %v4825, 0.0
        %v4890 = vmax.f32 %v4826, 0.0
        %v4891 = vmax.f32 %v4827, 0.0
        %v4892 = vmax.f32 %v4828, 0.0
        %v4893 = vmax.f32 %v4829, 0.0
        %v4894 = vmax.f32 %v4830, 0.0
        %v4895 = vmax.f32 %v4831, 0.0
        %v4896 = vmax.f32 %v4832, 0.0
        %v4897 = vpack.c.bf16 %v1780, %v1780
        %v4898 = vpack.c.bf16 %v1781, %v1781
        %v4899 = vpack.c.bf16 %v1782, %v1782
        %v4900 = vpack.c.bf16 %v1783, %v1783
        %v4901 = vpack.c.bf16 %v1784, %v1784
        %v4902 = vpack.c.bf16 %v1785, %v1785
        %v4903 = vpack.c.bf16 %v1786, %v1786
        %v4904 = vpack.c.bf16 %v1787, %v1787
        %v4905 = vpack.c.bf16 %v1788, %v1788
        %v4906 = vpack.c.bf16 %v1789, %v1789
        %v4907 = vpack.c.bf16 %v1790, %v1790
        %v4908 = vpack.c.bf16 %v1791, %v1791
        %v4909 = vpack.c.bf16 %v1792, %v1792
        %v4910 = vpack.c.bf16 %v1793, %v1793
        %v4911 = vpack.c.bf16 %v1794, %v1794
        %v4912 = vpack.c.bf16 %v1795, %v1795
        %v4913 = vpack.c.bf16 %v1796, %v1796
        %v4914 = vpack.c.bf16 %v1797, %v1797
        %v4915 = vpack.c.bf16 %v1798, %v1798
        %v4916 = vpack.c.bf16 %v1799, %v1799
        %v4917 = vpack.c.bf16 %v1800, %v1800
        %v4918 = vpack.c.bf16 %v1801, %v1801
        %v4919 = vpack.c.bf16 %v1802, %v1802
        %v4920 = vpack.c.bf16 %v1803, %v1803
        %v4921 = vpack.c.bf16 %v1804, %v1804
        %v4922 = vpack.c.bf16 %v1805, %v1805
        %v4923 = vpack.c.bf16 %v1806, %v1806
        %v4924 = vpack.c.bf16 %v1807, %v1807
        %v4925 = vpack.c.bf16 %v1808, %v1808
        %v4926 = vpack.c.bf16 %v1809, %v1809
        %v4927 = vpack.c.bf16 %v1810, %v1810
        %v4928 = vpack.c.bf16 %v1811, %v1811
        %v4929 = vpack.c.bf16 %v4833, %v4833
        %v4930 = vpack.c.bf16 %v4834, %v4834
        %v4931 = vpack.c.bf16 %v4835, %v4835
        %v4932 = vpack.c.bf16 %v4836, %v4836
        %v4933 = vpack.c.bf16 %v4837, %v4837
        %v4934 = vpack.c.bf16 %v4838, %v4838
        %v4935 = vpack.c.bf16 %v4839, %v4839
        %v4936 = vpack.c.bf16 %v4840, %v4840
        %v4937 = vpack.c.bf16 %v4841, %v4841
        %v4938 = vpack.c.bf16 %v4842, %v4842
        %v4939 = vpack.c.bf16 %v4843, %v4843
        %v4940 = vpack.c.bf16 %v4844, %v4844
        %v4941 = vpack.c.bf16 %v4845, %v4845
        %v4942 = vpack.c.bf16 %v4846, %v4846
        %v4943 = vpack.c.bf16 %v4847, %v4847
        %v4944 = vpack.c.bf16 %v4848, %v4848
        %v4945 = vpack.c.bf16 %v4849, %v4849
        %v4946 = vpack.c.bf16 %v4850, %v4850
        %v4947 = vpack.c.bf16 %v4851, %v4851
        %v4948 = vpack.c.bf16 %v4852, %v4852
        %v4949 = vpack.c.bf16 %v4853, %v4853
        %v4950 = vpack.c.bf16 %v4854, %v4854
        %v4951 = vpack.c.bf16 %v4855, %v4855
        %v4952 = vpack.c.bf16 %v4856, %v4856
        %v4953 = vpack.c.bf16 %v4857, %v4857
        %v4954 = vpack.c.bf16 %v4858, %v4858
        %v4955 = vpack.c.bf16 %v4859, %v4859
        %v4956 = vpack.c.bf16 %v4860, %v4860
        %v4957 = vpack.c.bf16 %v4861, %v4861
        %v4958 = vpack.c.bf16 %v4862, %v4862
        %v4959 = vpack.c.bf16 %v4863, %v4863
        %v4960 = vpack.c.bf16 %v4864, %v4864
        %v4961 = vpack.c.bf16 %v4865, %v4865
        %v4962 = vpack.c.bf16 %v4866, %v4866
        %v4963 = vpack.c.bf16 %v4867, %v4867
        %v4964 = vpack.c.bf16 %v4868, %v4868
        %v4965 = vpack.c.bf16 %v4869, %v4869
        %v4966 = vpack.c.bf16 %v4870, %v4870
        %v4967 = vpack.c.bf16 %v4871, %v4871
        %v4968 = vpack.c.bf16 %v4872, %v4872
        %v4969 = vpack.c.bf16 %v4873, %v4873
        %v4970 = vpack.c.bf16 %v4874, %v4874
        %v4971 = vpack.c.bf16 %v4875, %v4875
        %v4972 = vpack.c.bf16 %v4876, %v4876
        %v4973 = vpack.c.bf16 %v4877, %v4877
        %v4974 = vpack.c.bf16 %v4878, %v4878
        %v4975 = vpack.c.bf16 %v4879, %v4879
        %v4976 = vpack.c.bf16 %v4880, %v4880
        %v4977 = vpack.c.bf16 %v4881, %v4881
        %v4978 = vpack.c.bf16 %v4882, %v4882
        %v4979 = vpack.c.bf16 %v4883, %v4883
        %v4980 = vpack.c.bf16 %v4884, %v4884
        %v4981 = vpack.c.bf16 %v4885, %v4885
        %v4982 = vpack.c.bf16 %v4886, %v4886
        %v4983 = vpack.c.bf16 %v4887, %v4887
        %v4984 = vpack.c.bf16 %v4888, %v4888
        %v4985 = vpack.c.bf16 %v4889, %v4889
        %v4986 = vpack.c.bf16 %v4890, %v4890
        %v4987 = vpack.c.bf16 %v4891, %v4891
        %v4988 = vpack.c.bf16 %v4892, %v4892
        %v4989 = vpack.c.bf16 %v4893, %v4893
        %v4990 = vpack.c.bf16 %v4894, %v4894
        %v4991 = vpack.c.bf16 %v4895, %v4895
        %v4992 = vpack.c.bf16 %v4896, %v4896
        %v5001 = vunpack.c.l.b16 %v4897
        %v5002 = vunpack.c.l.b16 %v4898
        %v5003 = vunpack.c.l.b16 %v4899
        %v5004 = vunpack.c.l.b16 %v4900
        %v5005 = vunpack.c.l.b16 %v4901
        %v5006 = vunpack.c.l.b16 %v4902
        %v5007 = vunpack.c.l.b16 %v4903
        %v5008 = vunpack.c.l.b16 %v4904
        %v5009 = vpack.c.b16 %v5002, %v5001
        %v5010 = vpack.c.b16 %v5004, %v5003
        %v5011 = vpack.c.b16 %v5006, %v5005
        %v5012 = vpack.c.b16 %v5008, %v5007
        %v5033 = vunpack.c.l.b16 %v4929
        %v5034 = vunpack.c.l.b16 %v4930
        %v5035 = vunpack.c.l.b16 %v4931
        %v5036 = vunpack.c.l.b16 %v4932
        %v5037 = vunpack.c.l.b16 %v4933
        %v5038 = vunpack.c.l.b16 %v4934
        %v5039 = vunpack.c.l.b16 %v4935
        %v5040 = vunpack.c.l.b16 %v4936
        %v5041 = vunpack.c.l.b16 %v4937
        %v5042 = vunpack.c.l.b16 %v4938
        %v5043 = vunpack.c.l.b16 %v4939
        %v5044 = vunpack.c.l.b16 %v4940
        %v5045 = vunpack.c.l.b16 %v4941
        %v5046 = vunpack.c.l.b16 %v4942
        %v5047 = vunpack.c.l.b16 %v4943
        %v5048 = vunpack.c.l.b16 %v4944
        %v5049 = vpack.c.b16 %v5034, %v5033
        %v5050 = vpack.c.b16 %v5036, %v5035
        %v5051 = vpack.c.b16 %v5038, %v5037
        %v5052 = vpack.c.b16 %v5040, %v5039
        %v5053 = vpack.c.b16 %v5042, %v5041
        %v5054 = vpack.c.b16 %v5044, %v5043
        %v5055 = vpack.c.b16 %v5046, %v5045
        %v5056 = vpack.c.b16 %v5048, %v5047
        %5065 = vmatpush.bf16.msra.mxu0 %v5056
        %5066 = vmatpush.bf16.msra.mxu0 %v5055
        %5067 = vmatpush.bf16.msra.mxu0 %v5054
        %5068 = vmatpush.bf16.msra.mxu0 %v5053
        %5069 = vmatpush.bf16.msra.mxu0 %v5052
        %5070 = vmatpush.bf16.msra.mxu0 %v5051
        %5071 = vmatpush.bf16.msra.mxu0 %v5050
        %5072 = vmatpush.bf16.msra.mxu0 %v5049
        %5073 = vmatmul.bf16.gmra.mxu0 %v5009
        %v5074 = vpop.f32.mrf.mxu0
        %v5075 = vadd.f32 0.0, %v5074
        %v5076 = vpop.f32.mrf.mxu0
        %v5077 = vadd.f32 0.0, %v5076
        %5078 = vmatmul.bf16.gmra.mxu0 %v5010
        %v5079 = vpop.f32.mrf.mxu0
        %v5080 = vadd.f32 0.0, %v5079
        %v5081 = vpop.f32.mrf.mxu0
        %v5082 = vadd.f32 0.0, %v5081
        %5083 = vmatmul.bf16.gmra.mxu0 %v5011
        %v5084 = vpop.f32.mrf.mxu0
        %v5085 = vadd.f32 0.0, %v5084
        %v5086 = vpop.f32.mrf.mxu0
        %v5087 = vadd.f32 0.0, %v5086
        %5088 = vmatmul.bf16.gmra.mxu0 %v5012
        %v5089 = vpop.f32.mrf.mxu0
        %v5090 = vadd.f32 0.0, %v5089
        %v5091 = vpop.f32.mrf.mxu0
        %v5092 = vadd.f32 0.0, %v5091
        %5093 = vdwg.mxu0
        %v5102 = vunpack.c.l.b16 %v4905
        %v5103 = vunpack.c.l.b16 %v4906
        %v5104 = vunpack.c.l.b16 %v4907
        %v5105 = vunpack.c.l.b16 %v4908
        %v5106 = vunpack.c.l.b16 %v4909
        %v5107 = vunpack.c.l.b16 %v4910
        %v5108 = vunpack.c.l.b16 %v4911
        %v5109 = vunpack.c.l.b16 %v4912
        %v5110 = vpack.c.b16 %v5103, %v5102
        %v5111 = vpack.c.b16 %v5105, %v5104
        %v5112 = vpack.c.b16 %v5107, %v5106
        %v5113 = vpack.c.b16 %v5109, %v5108
        %v5134 = vunpack.c.l.b16 %v4945
        %v5135 = vunpack.c.l.b16 %v4946
        %v5136 = vunpack.c.l.b16 %v4947
        %v5137 = vunpack.c.l.b16 %v4948
        %v5138 = vunpack.c.l.b16 %v4949
        %v5139 = vunpack.c.l.b16 %v4950
        %v5140 = vunpack.c.l.b16 %v4951
        %v5141 = vunpack.c.l.b16 %v4952
        %v5142 = vunpack.c.l.b16 %v4953
        %v5143 = vunpack.c.l.b16 %v4954
        %v5144 = vunpack.c.l.b16 %v4955
        %v5145 = vunpack.c.l.b16 %v4956
        %v5146 = vunpack.c.l.b16 %v4957
        %v5147 = vunpack.c.l.b16 %v4958
        %v5148 = vunpack.c.l.b16 %v4959
        %v5149 = vunpack.c.l.b16 %v4960
        %v5150 = vpack.c.b16 %v5135, %v5134
        %v5151 = vpack.c.b16 %v5137, %v5136
        %v5152 = vpack.c.b16 %v5139, %v5138
        %v5153 = vpack.c.b16 %v5141, %v5140
        %v5154 = vpack.c.b16 %v5143, %v5142
        %v5155 = vpack.c.b16 %v5145, %v5144
        %v5156 = vpack.c.b16 %v5147, %v5146
        %v5157 = vpack.c.b16 %v5149, %v5148
        %5166 = vmatpush.bf16.msra.mxu0 %v5157
        %5167 = vmatpush.bf16.msra.mxu0 %v5156
        %5168 = vmatpush.bf16.msra.mxu0 %v5155
        %5169 = vmatpush.bf16.msra.mxu0 %v5154
        %5170 = vmatpush.bf16.msra.mxu0 %v5153
        %5171 = vmatpush.bf16.msra.mxu0 %v5152
        %5172 = vmatpush.bf16.msra.mxu0 %v5151
        %5173 = vmatpush.bf16.msra.mxu0 %v5150
        %5174 = vmatmul.bf16.gmra.mxu0 %v5110
        %v5175 = vpop.f32.mrf.mxu0
        %v5176 = vadd.f32 0.0, %v5175
        %v5177 = vpop.f32.mrf.mxu0
        %v5178 = vadd.f32 0.0, %v5177
        %5179 = vmatmul.bf16.gmra.mxu0 %v5111
        %v5180 = vpop.f32.mrf.mxu0
        %v5181 = vadd.f32 0.0, %v5180
        %v5182 = vpop.f32.mrf.mxu0
        %v5183 = vadd.f32 0.0, %v5182
        %5184 = vmatmul.bf16.gmra.mxu0 %v5112
        %v5185 = vpop.f32.mrf.mxu0
        %v5186 = vadd.f32 0.0, %v5185
        %v5187 = vpop.f32.mrf.mxu0
        %v5188 = vadd.f32 0.0, %v5187
        %5189 = vmatmul.bf16.gmra.mxu0 %v5113
        %v5190 = vpop.f32.mrf.mxu0
        %v5191 = vadd.f32 0.0, %v5190
        %v5192 = vpop.f32.mrf.mxu0
        %v5193 = vadd.f32 0.0, %v5192
        %5194 = vdwg.mxu0
        %v5203 = vunpack.c.l.b16 %v4913
        %v5204 = vunpack.c.l.b16 %v4914
        %v5205 = vunpack.c.l.b16 %v4915
        %v5206 = vunpack.c.l.b16 %v4916
        %v5207 = vunpack.c.l.b16 %v4917
        %v5208 = vunpack.c.l.b16 %v4918
        %v5209 = vunpack.c.l.b16 %v4919
        %v5210 = vunpack.c.l.b16 %v4920
        %v5211 = vpack.c.b16 %v5204, %v5203
        %v5212 = vpack.c.b16 %v5206, %v5205
        %v5213 = vpack.c.b16 %v5208, %v5207
        %v5214 = vpack.c.b16 %v5210, %v5209
        %v5235 = vunpack.c.l.b16 %v4961
        %v5236 = vunpack.c.l.b16 %v4962
        %v5237 = vunpack.c.l.b16 %v4963
        %v5238 = vunpack.c.l.b16 %v4964
        %v5239 = vunpack.c.l.b16 %v4965
        %v5240 = vunpack.c.l.b16 %v4966
        %v5241 = vunpack.c.l.b16 %v4967
        %v5242 = vunpack.c.l.b16 %v4968
        %v5243 = vunpack.c.l.b16 %v4969
        %v5244 = vunpack.c.l.b16 %v4970
        %v5245 = vunpack.c.l.b16 %v4971
        %v5246 = vunpack.c.l.b16 %v4972
        %v5247 = vunpack.c.l.b16 %v4973
        %v5248 = vunpack.c.l.b16 %v4974
        %v5249 = vunpack.c.l.b16 %v4975
        %v5250 = vunpack.c.l.b16 %v4976
        %v5251 = vpack.c.b16 %v5236, %v5235
        %v5252 = vpack.c.b16 %v5238, %v5237
        %v5253 = vpack.c.b16 %v5240, %v5239
        %v5254 = vpack.c.b16 %v5242, %v5241
        %v5255 = vpack.c.b16 %v5244, %v5243
        %v5256 = vpack.c.b16 %v5246, %v5245
        %v5257 = vpack.c.b16 %v5248, %v5247
        %v5258 = vpack.c.b16 %v5250, %v5249
        %5267 = vmatpush.bf16.msra.mxu0 %v5258
        %5268 = vmatpush.bf16.msra.mxu0 %v5257
        %5269 = vmatpush.bf16.msra.mxu0 %v5256
        %5270 = vmatpush.bf16.msra.mxu0 %v5255
        %5271 = vmatpush.bf16.msra.mxu0 %v5254
        %5272 = vmatpush.bf16.msra.mxu0 %v5253
        %5273 = vmatpush.bf16.msra.mxu0 %v5252
        %5274 = vmatpush.bf16.msra.mxu0 %v5251
        %5275 = vmatmul.bf16.gmra.mxu0 %v5211
        %v5276 = vpop.f32.mrf.mxu0
        %v5277 = vadd.f32 0.0, %v5276
        %v5278 = vpop.f32.mrf.mxu0
        %v5279 = vadd.f32 0.0, %v5278
        %5280 = vmatmul.bf16.gmra.mxu0 %v5212
        %v5281 = vpop.f32.mrf.mxu0
        %v5282 = vadd.f32 0.0, %v5281
        %v5283 = vpop.f32.mrf.mxu0
        %v5284 = vadd.f32 0.0, %v5283
        %5285 = vmatmul.bf16.gmra.mxu0 %v5213
        %v5286 = vpop.f32.mrf.mxu0
        %v5287 = vadd.f32 0.0, %v5286
        %v5288 = vpop.f32.mrf.mxu0
        %v5289 = vadd.f32 0.0, %v5288
        %5290 = vmatmul.bf16.gmra.mxu0 %v5214
        %v5291 = vpop.f32.mrf.mxu0
        %v5292 = vadd.f32 0.0, %v5291
        %v5293 = vpop.f32.mrf.mxu0
        %v5294 = vadd.f32 0.0, %v5293
        %5295 = vdwg.mxu0
        %v5304 = vunpack.c.l.b16 %v4921
        %v5305 = vunpack.c.l.b16 %v4922
        %v5306 = vunpack.c.l.b16 %v4923
        %v5307 = vunpack.c.l.b16 %v4924
        %v5308 = vunpack.c.l.b16 %v4925
        %v5309 = vunpack.c.l.b16 %v4926
        %v5310 = vunpack.c.l.b16 %v4927
        %v5311 = vunpack.c.l.b16 %v4928
        %v5312 = vpack.c.b16 %v5305, %v5304
        %v5313 = vpack.c.b16 %v5307, %v5306
        %v5314 = vpack.c.b16 %v5309, %v5308
        %v5315 = vpack.c.b16 %v5311, %v5310
        %v5336 = vunpack.c.l.b16 %v4977
        %v5337 = vunpack.c.l.b16 %v4978
        %v5338 = vunpack.c.l.b16 %v4979
        %v5339 = vunpack.c.l.b16 %v4980
        %v5340 = vunpack.c.l.b16 %v4981
        %v5341 = vunpack.c.l.b16 %v4982
        %v5342 = vunpack.c.l.b16 %v4983
        %v5343 = vunpack.c.l.b16 %v4984
        %v5344 = vunpack.c.l.b16 %v4985
        %v5345 = vunpack.c.l.b16 %v4986
        %v5346 = vunpack.c.l.b16 %v4987
        %v5347 = vunpack.c.l.b16 %v4988
        %v5348 = vunpack.c.l.b16 %v4989
        %v5349 = vunpack.c.l.b16 %v4990
        %v5350 = vunpack.c.l.b16 %v4991
        %v5351 = vunpack.c.l.b16 %v4992
        %v5352 = vpack.c.b16 %v5337, %v5336
        %v5353 = vpack.c.b16 %v5339, %v5338
        %v5354 = vpack.c.b16 %v5341, %v5340
        %v5355 = vpack.c.b16 %v5343, %v5342
        %v5356 = vpack.c.b16 %v5345, %v5344
        %v5357 = vpack.c.b16 %v5347, %v5346
        %v5358 = vpack.c.b16 %v5349, %v5348
        %v5359 = vpack.c.b16 %v5351, %v5350
        %5368 = vmatpush.bf16.msra.mxu0 %v5359
        %5369 = vmatpush.bf16.msra.mxu0 %v5358
        %5370 = vmatpush.bf16.msra.mxu0 %v5357
        %5371 = vmatpush.bf16.msra.mxu0 %v5356
        %5372 = vmatpush.bf16.msra.mxu0 %v5355
        %5373 = vmatpush.bf16.msra.mxu0 %v5354
        %5374 = vmatpush.bf16.msra.mxu0 %v5353
        %5375 = vmatpush.bf16.msra.mxu0 %v5352
        %5376 = vmatmul.bf16.gmra.mxu0 %v5312
        %v5377 = vpop.f32.mrf.mxu0
        %v5378 = vadd.f32 0.0, %v5377
        %v5379 = vpop.f32.mrf.mxu0
        %v5380 = vadd.f32 0.0, %v5379
        %5381 = vmatmul.bf16.gmra.mxu0 %v5313
        %v5382 = vpop.f32.mrf.mxu0
        %v5383 = vadd.f32 0.0, %v5382
        %v5384 = vpop.f32.mrf.mxu0
        %v5385 = vadd.f32 0.0, %v5384
        %5386 = vmatmul.bf16.gmra.mxu0 %v5314
        %v5387 = vpop.f32.mrf.mxu0
        %v5388 = vadd.f32 0.0, %v5387
        %v5389 = vpop.f32.mrf.mxu0
        %v5390 = vadd.f32 0.0, %v5389
        %5391 = vmatmul.bf16.gmra.mxu0 %v5315
        %v5392 = vpop.f32.mrf.mxu0
        %v5393 = vadd.f32 0.0, %v5392
        %v5394 = vpop.f32.mrf.mxu0
        %v5395 = vadd.f32 0.0, %v5394
        %5396 = vdwg.mxu0
        %v5397 = vpack.c.bf16 %v5075, %v5075
        %v5398 = vpack.c.bf16 %v5077, %v5077
        %v5399 = vpack.c.bf16 %v5080, %v5080
        %v5400 = vpack.c.bf16 %v5082, %v5082
        %v5401 = vpack.c.bf16 %v5085, %v5085
        %v5402 = vpack.c.bf16 %v5087, %v5087
        %v5403 = vpack.c.bf16 %v5090, %v5090
        %v5404 = vpack.c.bf16 %v5092, %v5092
        %v5405 = vpack.c.bf16 %v5176, %v5176
        %v5406 = vpack.c.bf16 %v5178, %v5178
        %v5407 = vpack.c.bf16 %v5181, %v5181
        %v5408 = vpack.c.bf16 %v5183, %v5183
        %v5409 = vpack.c.bf16 %v5186, %v5186
        %v5410 = vpack.c.bf16 %v5188, %v5188
        %v5411 = vpack.c.bf16 %v5191, %v5191
        %v5412 = vpack.c.bf16 %v5193, %v5193
        %v5413 = vpack.c.bf16 %v5277, %v5277
        %v5414 = vpack.c.bf16 %v5279, %v5279
        %v5415 = vpack.c.bf16 %v5282, %v5282
        %v5416 = vpack.c.bf16 %v5284, %v5284
        %v5417 = vpack.c.bf16 %v5287, %v5287
        %v5418 = vpack.c.bf16 %v5289, %v5289
        %v5419 = vpack.c.bf16 %v5292, %v5292
        %v5420 = vpack.c.bf16 %v5294, %v5294
        %v5421 = vpack.c.bf16 %v5378, %v5378
        %v5422 = vpack.c.bf16 %v5380, %v5380
        %v5423 = vpack.c.bf16 %v5383, %v5383
        %v5424 = vpack.c.bf16 %v5385, %v5385
        %v5425 = vpack.c.bf16 %v5388, %v5388
        %v5426 = vpack.c.bf16 %v5390, %v5390
        %v5427 = vpack.c.bf16 %v5393, %v5393
        %v5428 = vpack.c.bf16 %v5395, %v5395
        %v5445 = vunpack.c.l.b16 %v575
        %v5446 = vunpack.c.l.b16 %v576
        %v5447 = vunpack.c.l.b16 %v577
        %v5448 = vunpack.c.l.b16 %v578
        %v5449 = vunpack.c.l.b16 %v579
        %v5450 = vunpack.c.l.b16 %v580
        %v5451 = vunpack.c.l.b16 %v581
        %v5452 = vunpack.c.l.b16 %v582
        %v5453 = vunpack.c.l.b16 %v583
        %v5454 = vunpack.c.l.b16 %v584
        %v5455 = vunpack.c.l.b16 %v585
        %v5456 = vunpack.c.l.b16 %v586
        %v5457 = vunpack.c.l.b16 %v587
        %v5458 = vunpack.c.l.b16 %v588
        %v5459 = vunpack.c.l.b16 %v589
        %v5460 = vunpack.c.l.b16 %v590
        %v5461 = vpack.c.b16 %v5446, %v5445
        %v5462 = vpack.c.b16 %v5448, %v5447
        %v5463 = vpack.c.b16 %v5450, %v5449
        %v5464 = vpack.c.b16 %v5452, %v5451
        %v5465 = vpack.c.b16 %v5454, %v5453
        %v5466 = vpack.c.b16 %v5456, %v5455
        %v5467 = vpack.c.b16 %v5458, %v5457
        %v5468 = vpack.c.b16 %v5460, %v5459
        %v5493 = vunpack.c.l.b16 %v5397
        %v5494 = vunpack.c.l.b16 %v5398
        %v5495 = vunpack.c.l.b16 %v5399
        %v5496 = vunpack.c.l.b16 %v5400
        %v5497 = vunpack.c.l.b16 %v5401
        %v5498 = vunpack.c.l.b16 %v5402
        %v5499 = vunpack.c.l.b16 %v5403
        %v5500 = vunpack.c.l.b16 %v5404
        %v5501 = vunpack.c.l.b16 %v5405
        %v5502 = vunpack.c.l.b16 %v5406
        %v5503 = vunpack.c.l.b16 %v5407
        %v5504 = vunpack.c.l.b16 %v5408
        %v5505 = vunpack.c.l.b16 %v5409
        %v5506 = vunpack.c.l.b16 %v5410
        %v5507 = vunpack.c.l.b16 %v5411
        %v5508 = vunpack.c.l.b16 %v5412
        %v5509 = vpack.c.b16 %v5494, %v5493
        %v5510 = vpack.c.b16 %v5496, %v5495
        %v5511 = vpack.c.b16 %v5498, %v5497
        %v5512 = vpack.c.b16 %v5500, %v5499
        %v5513 = vpack.c.b16 %v5502, %v5501
        %v5514 = vpack.c.b16 %v5504, %v5503
        %v5515 = vpack.c.b16 %v5506, %v5505
        %v5516 = vpack.c.b16 %v5508, %v5507
        %5525 = vmatpush.bf16.msra.mxu0 %v5516
        %5526 = vmatpush.bf16.msra.mxu0 %v5515
        %5527 = vmatpush.bf16.msra.mxu0 %v5514
        %5528 = vmatpush.bf16.msra.mxu0 %v5513
        %5529 = vmatpush.bf16.msra.mxu0 %v5512
        %5530 = vmatpush.bf16.msra.mxu0 %v5511
        %5531 = vmatpush.bf16.msra.mxu0 %v5510
        %5532 = vmatpush.bf16.msra.mxu0 %v5509
        %5533 = vmatmul.bf16.gmra.mxu0 %v5461
        %v5534 = vpop.f32.mrf.mxu0
        %v5535 = vadd.f32 0.0, %v5534
        %v5536 = vpop.f32.mrf.mxu0
        %v5537 = vadd.f32 0.0, %v5536
        %5538 = vmatmul.bf16.gmra.mxu0 %v5462
        %v5539 = vpop.f32.mrf.mxu0
        %v5540 = vadd.f32 0.0, %v5539
        %v5541 = vpop.f32.mrf.mxu0
        %v5542 = vadd.f32 0.0, %v5541
        %5543 = vmatmul.bf16.gmra.mxu0 %v5463
        %v5544 = vpop.f32.mrf.mxu0
        %v5545 = vadd.f32 0.0, %v5544
        %v5546 = vpop.f32.mrf.mxu0
        %v5547 = vadd.f32 0.0, %v5546
        %5548 = vmatmul.bf16.gmra.mxu0 %v5464
        %v5549 = vpop.f32.mrf.mxu0
        %v5550 = vadd.f32 0.0, %v5549
        %v5551 = vpop.f32.mrf.mxu0
        %v5552 = vadd.f32 0.0, %v5551
        %5553 = vmatmul.bf16.gmra.mxu0 %v5465
        %v5554 = vpop.f32.mrf.mxu0
        %v5555 = vadd.f32 0.0, %v5554
        %v5556 = vpop.f32.mrf.mxu0
        %v5557 = vadd.f32 0.0, %v5556
        %5558 = vmatmul.bf16.gmra.mxu0 %v5466
        %v5559 = vpop.f32.mrf.mxu0
        %v5560 = vadd.f32 0.0, %v5559
        %v5561 = vpop.f32.mrf.mxu0
        %v5562 = vadd.f32 0.0, %v5561
        %5563 = vmatmul.bf16.gmra.mxu0 %v5467
        %v5564 = vpop.f32.mrf.mxu0
        %v5565 = vadd.f32 0.0, %v5564
        %v5566 = vpop.f32.mrf.mxu0
        %v5567 = vadd.f32 0.0, %v5566
        %5568 = vmatmul.bf16.gmra.mxu0 %v5468
        %v5569 = vpop.f32.mrf.mxu0
        %v5570 = vadd.f32 0.0, %v5569
        %v5571 = vpop.f32.mrf.mxu0
        %v5572 = vadd.f32 0.0, %v5571
        %5573 = vdwg.mxu0
        %v5590 = vunpack.c.l.b16 %v5413
        %v5591 = vunpack.c.l.b16 %v5414
        %v5592 = vunpack.c.l.b16 %v5415
        %v5593 = vunpack.c.l.b16 %v5416
        %v5594 = vunpack.c.l.b16 %v5417
        %v5595 = vunpack.c.l.b16 %v5418
        %v5596 = vunpack.c.l.b16 %v5419
        %v5597 = vunpack.c.l.b16 %v5420
        %v5598 = vunpack.c.l.b16 %v5421
        %v5599 = vunpack.c.l.b16 %v5422
        %v5600 = vunpack.c.l.b16 %v5423
        %v5601 = vunpack.c.l.b16 %v5424
        %v5602 = vunpack.c.l.b16 %v5425
        %v5603 = vunpack.c.l.b16 %v5426
        %v5604 = vunpack.c.l.b16 %v5427
        %v5605 = vunpack.c.l.b16 %v5428
        %v5606 = vpack.c.b16 %v5591, %v5590
        %v5607 = vpack.c.b16 %v5593, %v5592
        %v5608 = vpack.c.b16 %v5595, %v5594
        %v5609 = vpack.c.b16 %v5597, %v5596
        %v5610 = vpack.c.b16 %v5599, %v5598
        %v5611 = vpack.c.b16 %v5601, %v5600
        %v5612 = vpack.c.b16 %v5603, %v5602
        %v5613 = vpack.c.b16 %v5605, %v5604
        %5622 = vmatpush.bf16.msra.mxu0 %v5613
        %5623 = vmatpush.bf16.msra.mxu0 %v5612
        %5624 = vmatpush.bf16.msra.mxu0 %v5611
        %5625 = vmatpush.bf16.msra.mxu0 %v5610
        %5626 = vmatpush.bf16.msra.mxu0 %v5609
        %5627 = vmatpush.bf16.msra.mxu0 %v5608
        %5628 = vmatpush.bf16.msra.mxu0 %v5607
        %5629 = vmatpush.bf16.msra.mxu0 %v5606
        %5630 = vmatmul.bf16.gmra.mxu0 %v5461
        %v5631 = vpop.f32.mrf.mxu0
        %v5632 = vadd.f32 0.0, %v5631
        %v5633 = vpop.f32.mrf.mxu0
        %v5634 = vadd.f32 0.0, %v5633
        %5635 = vmatmul.bf16.gmra.mxu0 %v5462
        %v5636 = vpop.f32.mrf.mxu0
        %v5637 = vadd.f32 0.0, %v5636
        %v5638 = vpop.f32.mrf.mxu0
        %v5639 = vadd.f32 0.0, %v5638
        %5640 = vmatmul.bf16.gmra.mxu0 %v5463
        %v5641 = vpop.f32.mrf.mxu0
        %v5642 = vadd.f32 0.0, %v5641
        %v5643 = vpop.f32.mrf.mxu0
        %v5644 = vadd.f32 0.0, %v5643
        %5645 = vmatmul.bf16.gmra.mxu0 %v5464
        %v5646 = vpop.f32.mrf.mxu0
        %v5647 = vadd.f32 0.0, %v5646
        %v5648 = vpop.f32.mrf.mxu0
        %v5649 = vadd.f32 0.0, %v5648
        %5650 = vmatmul.bf16.gmra.mxu0 %v5465
        %v5651 = vpop.f32.mrf.mxu0
        %v5652 = vadd.f32 0.0, %v5651
        %v5653 = vpop.f32.mrf.mxu0
        %v5654 = vadd.f32 0.0, %v5653
        %5655 = vmatmul.bf16.gmra.mxu0 %v5466
        %v5656 = vpop.f32.mrf.mxu0
        %v5657 = vadd.f32 0.0, %v5656
        %v5658 = vpop.f32.mrf.mxu0
        %v5659 = vadd.f32 0.0, %v5658
        %5660 = vmatmul.bf16.gmra.mxu0 %v5467
        %v5661 = vpop.f32.mrf.mxu0
        %v5662 = vadd.f32 0.0, %v5661
        %v5663 = vpop.f32.mrf.mxu0
        %v5664 = vadd.f32 0.0, %v5663
        %5665 = vmatmul.bf16.gmra.mxu0 %v5468
        %v5666 = vpop.f32.mrf.mxu0
        %v5667 = vadd.f32 0.0, %v5666
        %v5668 = vpop.f32.mrf.mxu0
        %v5669 = vadd.f32 0.0, %v5668
        %5670 = vdwg.mxu0
        %v5671 = vld [vmem:[%s10] sm:$0xff]
        %v5672 = vld [vmem:[%s10 + $0x8] sm:$0xff]
        %v5673 = vld [vmem:[%s10 + $0x10] sm:$0xff]
        %v5674 = vld [vmem:[%s10 + $0x18] sm:$0xff]
        %v5675 = vld [vmem:[%s10 + $0x20] sm:$0xff]
        %v5676 = vld [vmem:[%s10 + $0x28] sm:$0xff]
        %v5677 = vld [vmem:[%s10 + $0x30] sm:$0xff]
        %v5678 = vld [vmem:[%s10 + $0x38] sm:$0xff]
        %v5679 = vld [vmem:[%s10 + $0x40] sm:$0xff]
        %v5680 = vld [vmem:[%s10 + $0x48] sm:$0xff]
        %v5681 = vld [vmem:[%s10 + $0x50] sm:$0xff]
        %v5682 = vld [vmem:[%s10 + $0x58] sm:$0xff]
        %v5683 = vld [vmem:[%s10 + $0x60] sm:$0xff]
        %v5684 = vld [vmem:[%s10 + $0x68] sm:$0xff]
        %v5685 = vld [vmem:[%s10 + $0x70] sm:$0xff]
        %v5686 = vld [vmem:[%s10 + $0x78] sm:$0xff]
        %s5687 = scalar_lea.vmem %s10, 128
        %v5688 = vld [vmem:[%s5687] sm:$0xff]
        %v5689 = vld [vmem:[%s5687 + $0x8] sm:$0xff]
        %v5690 = vld [vmem:[%s5687 + $0x10] sm:$0xff]
        %v5691 = vld [vmem:[%s5687 + $0x18] sm:$0xff]
        %v5692 = vld [vmem:[%s5687 + $0x20] sm:$0xff]
        %v5693 = vld [vmem:[%s5687 + $0x28] sm:$0xff]
        %v5694 = vld [vmem:[%s5687 + $0x30] sm:$0xff]
        %v5695 = vld [vmem:[%s5687 + $0x38] sm:$0xff]
        %v5696 = vld [vmem:[%s5687 + $0x40] sm:$0xff]
        %v5697 = vld [vmem:[%s5687 + $0x48] sm:$0xff]
        %v5698 = vld [vmem:[%s5687 + $0x50] sm:$0xff]
        %v5699 = vld [vmem:[%s5687 + $0x58] sm:$0xff]
        %v5700 = vld [vmem:[%s5687 + $0x60] sm:$0xff]
        %v5701 = vld [vmem:[%s5687 + $0x68] sm:$0xff]
        %v5702 = vld [vmem:[%s5687 + $0x70] sm:$0xff]
        %v5703 = vld [vmem:[%s5687 + $0x78] sm:$0xff]
        %5704 = vadd.xlane.f32.xlu0 %v5535
        %v5705 = vpop.xlane.xlu0 %5704
        %5706 = vadd.xlane.f32.xlu0 %v5537
        %v5707 = vpop.xlane.xlu0 %5706
        %5708 = vadd.xlane.f32.xlu0 %v5540
        %v5709 = vpop.xlane.xlu0 %5708
        %5710 = vadd.xlane.f32.xlu0 %v5542
        %v5711 = vpop.xlane.xlu0 %5710
        %5712 = vadd.xlane.f32.xlu0 %v5545
        %v5713 = vpop.xlane.xlu0 %5712
        %5714 = vadd.xlane.f32.xlu0 %v5547
        %v5715 = vpop.xlane.xlu0 %5714
        %5716 = vadd.xlane.f32.xlu0 %v5550
        %v5717 = vpop.xlane.xlu0 %5716
        %5718 = vadd.xlane.f32.xlu0 %v5552
        %v5719 = vpop.xlane.xlu0 %5718
        %5720 = vadd.xlane.f32.xlu0 %v5555
        %v5721 = vpop.xlane.xlu0 %5720
        %5722 = vadd.xlane.f32.xlu0 %v5557
        %v5723 = vpop.xlane.xlu0 %5722
        %5724 = vadd.xlane.f32.xlu0 %v5560
        %v5725 = vpop.xlane.xlu0 %5724
        %5726 = vadd.xlane.f32.xlu0 %v5562
        %v5727 = vpop.xlane.xlu0 %5726
        %5728 = vadd.xlane.f32.xlu0 %v5565
        %v5729 = vpop.xlane.xlu0 %5728
        %5730 = vadd.xlane.f32.xlu0 %v5567
        %v5731 = vpop.xlane.xlu0 %5730
        %5732 = vadd.xlane.f32.xlu0 %v5570
        %v5733 = vpop.xlane.xlu0 %5732
        %5734 = vadd.xlane.f32.xlu0 %v5572
        %v5735 = vpop.xlane.xlu0 %5734
        %5736 = vadd.xlane.f32.xlu0 %v5632
        %v5737 = vpop.xlane.xlu0 %5736
        %5738 = vadd.xlane.f32.xlu0 %v5634
        %v5739 = vpop.xlane.xlu0 %5738
        %5740 = vadd.xlane.f32.xlu0 %v5637
        %v5741 = vpop.xlane.xlu0 %5740
        %5742 = vadd.xlane.f32.xlu0 %v5639
        %v5743 = vpop.xlane.xlu0 %5742
        %5744 = vadd.xlane.f32.xlu0 %v5642
        %v5745 = vpop.xlane.xlu0 %5744
        %5746 = vadd.xlane.f32.xlu0 %v5644
        %v5747 = vpop.xlane.xlu0 %5746
        %5748 = vadd.xlane.f32.xlu0 %v5647
        %v5749 = vpop.xlane.xlu0 %5748
        %5750 = vadd.xlane.f32.xlu0 %v5649
        %v5751 = vpop.xlane.xlu0 %5750
        %5752 = vadd.xlane.f32.xlu0 %v5652
        %v5753 = vpop.xlane.xlu0 %5752
        %5754 = vadd.xlane.f32.xlu0 %v5654
        %v5755 = vpop.xlane.xlu0 %5754
        %5756 = vadd.xlane.f32.xlu0 %v5657
        %v5757 = vpop.xlane.xlu0 %5756
        %5758 = vadd.xlane.f32.xlu0 %v5659
        %v5759 = vpop.xlane.xlu0 %5758
        %5760 = vadd.xlane.f32.xlu0 %v5662
        %v5761 = vpop.xlane.xlu0 %5760
        %5762 = vadd.xlane.f32.xlu0 %v5664
        %v5763 = vpop.xlane.xlu0 %5762
        %5764 = vadd.xlane.f32.xlu0 %v5667
        %v5765 = vpop.xlane.xlu0 %5764
        %5766 = vadd.xlane.f32.xlu0 %v5669
        %v5767 = vpop.xlane.xlu0 %5766
        %v5768 = vadd.f32 %v5705, %v5707
        %v5769 = vadd.f32 %v5768, %v5709
        %v5770 = vadd.f32 %v5769, %v5711
        %v5771 = vadd.f32 %v5770, %v5713
        %v5772 = vadd.f32 %v5771, %v5715
        %v5773 = vadd.f32 %v5772, %v5717
        %v5774 = vadd.f32 %v5773, %v5719
        %v5775 = vrot.slane %v5774, 4
        %v5776 = vadd.f32 %v5774, %v5775
        %v5777 = vrot.slane %v5776, 2
        %v5778 = vadd.f32 %v5776, %v5777
        %v5779 = vrot.slane %v5778, 1
        %v5780 = vadd.f32 %v5778, %v5779
        %v5781 = vadd.f32 %v5721, %v5723
        %v5782 = vadd.f32 %v5781, %v5725
        %v5783 = vadd.f32 %v5782, %v5727
        %v5784 = vadd.f32 %v5783, %v5729
        %v5785 = vadd.f32 %v5784, %v5731
        %v5786 = vadd.f32 %v5785, %v5733
        %v5787 = vadd.f32 %v5786, %v5735
        %v5788 = vrot.slane %v5787, 4
        %v5789 = vadd.f32 %v5787, %v5788
        %v5790 = vrot.slane %v5789, 2
        %v5791 = vadd.f32 %v5789, %v5790
        %v5792 = vrot.slane %v5791, 1
        %v5793 = vadd.f32 %v5791, %v5792
        %v5794 = vadd.f32 %v5737, %v5739
        %v5795 = vadd.f32 %v5794, %v5741
        %v5796 = vadd.f32 %v5795, %v5743
        %v5797 = vadd.f32 %v5796, %v5745
        %v5798 = vadd.f32 %v5797, %v5747
        %v5799 = vadd.f32 %v5798, %v5749
        %v5800 = vadd.f32 %v5799, %v5751
        %v5801 = vrot.slane %v5800, 4
        %v5802 = vadd.f32 %v5800, %v5801
        %v5803 = vrot.slane %v5802, 2
        %v5804 = vadd.f32 %v5802, %v5803
        %v5805 = vrot.slane %v5804, 1
        %v5806 = vadd.f32 %v5804, %v5805
        %v5807 = vadd.f32 %v5753, %v5755
        %v5808 = vadd.f32 %v5807, %v5757
        %v5809 = vadd.f32 %v5808, %v5759
        %v5810 = vadd.f32 %v5809, %v5761
        %v5811 = vadd.f32 %v5810, %v5763
        %v5812 = vadd.f32 %v5811, %v5765
        %v5813 = vadd.f32 %v5812, %v5767
        %v5814 = vrot.slane %v5813, 4
        %v5815 = vadd.f32 %v5813, %v5814
        %v5816 = vrot.slane %v5815, 2
        %v5817 = vadd.f32 %v5815, %v5816
        %v5818 = vrot.slane %v5817, 1
        %v5819 = vadd.f32 %v5817, %v5818
        %v5820 = vmul.f32 %v5535, %v5535
        %v5821 = vmul.f32 %v5537, %v5537
        %v5822 = vmul.f32 %v5540, %v5540
        %v5823 = vmul.f32 %v5542, %v5542
        %v5824 = vmul.f32 %v5545, %v5545
        %v5825 = vmul.f32 %v5547, %v5547
        %v5826 = vmul.f32 %v5550, %v5550
        %v5827 = vmul.f32 %v5552, %v5552
        %v5828 = vmul.f32 %v5555, %v5555
        %v5829 = vmul.f32 %v5557, %v5557
        %v5830 = vmul.f32 %v5560, %v5560
        %v5831 = vmul.f32 %v5562, %v5562
        %v5832 = vmul.f32 %v5565, %v5565
        %v5833 = vmul.f32 %v5567, %v5567
        %v5834 = vmul.f32 %v5570, %v5570
        %v5835 = vmul.f32 %v5572, %v5572
        %v5836 = vmul.f32 %v5632, %v5632
        %v5837 = vmul.f32 %v5634, %v5634
        %v5838 = vmul.f32 %v5637, %v5637
        %v5839 = vmul.f32 %v5639, %v5639
        %v5840 = vmul.f32 %v5642, %v5642
        %v5841 = vmul.f32 %v5644, %v5644
        %v5842 = vmul.f32 %v5647, %v5647
        %v5843 = vmul.f32 %v5649, %v5649
        %v5844 = vmul.f32 %v5652, %v5652
        %v5845 = vmul.f32 %v5654, %v5654
        %v5846 = vmul.f32 %v5657, %v5657
        %v5847 = vmul.f32 %v5659, %v5659
        %v5848 = vmul.f32 %v5662, %v5662
        %v5849 = vmul.f32 %v5664, %v5664
        %v5850 = vmul.f32 %v5667, %v5667
        %v5851 = vmul.f32 %v5669, %v5669
        %5852 = vadd.xlane.f32.xlu0 %v5820
        %v5853 = vpop.xlane.xlu0 %5852
        %5854 = vadd.xlane.f32.xlu0 %v5821
        %v5855 = vpop.xlane.xlu0 %5854
        %5856 = vadd.xlane.f32.xlu0 %v5822
        %v5857 = vpop.xlane.xlu0 %5856
        %5858 = vadd.xlane.f32.xlu0 %v5823
        %v5859 = vpop.xlane.xlu0 %5858
        %5860 = vadd.xlane.f32.xlu0 %v5824
        %v5861 = vpop.xlane.xlu0 %5860
        %5862 = vadd.xlane.f32.xlu0 %v5825
        %v5863 = vpop.xlane.xlu0 %5862
        %5864 = vadd.xlane.f32.xlu0 %v5826
        %v5865 = vpop.xlane.xlu0 %5864
        %5866 = vadd.xlane.f32.xlu0 %v5827
        %v5867 = vpop.xlane.xlu0 %5866
        %5868 = vadd.xlane.f32.xlu0 %v5828
        %v5869 = vpop.xlane.xlu0 %5868
        %5870 = vadd.xlane.f32.xlu0 %v5829
        %v5871 = vpop.xlane.xlu0 %5870
        %5872 = vadd.xlane.f32.xlu0 %v5830
        %v5873 = vpop.xlane.xlu0 %5872
        %5874 = vadd.xlane.f32.xlu0 %v5831
        %v5875 = vpop.xlane.xlu0 %5874
        %5876 = vadd.xlane.f32.xlu0 %v5832
        %v5877 = vpop.xlane.xlu0 %5876
        %5878 = vadd.xlane.f32.xlu0 %v5833
        %v5879 = vpop.xlane.xlu0 %5878
        %5880 = vadd.xlane.f32.xlu0 %v5834
        %v5881 = vpop.xlane.xlu0 %5880
        %5882 = vadd.xlane.f32.xlu0 %v5835
        %v5883 = vpop.xlane.xlu0 %5882
        %5884 = vadd.xlane.f32.xlu0 %v5836
        %v5885 = vpop.xlane.xlu0 %5884
        %5886 = vadd.xlane.f32.xlu0 %v5837
        %v5887 = vpop.xlane.xlu0 %5886
        %5888 = vadd.xlane.f32.xlu0 %v5838
        %v5889 = vpop.xlane.xlu0 %5888
        %5890 = vadd.xlane.f32.xlu0 %v5839
        %v5891 = vpop.xlane.xlu0 %5890
        %5892 = vadd.xlane.f32.xlu0 %v5840
        %v5893 = vpop.xlane.xlu0 %5892
        %5894 = vadd.xlane.f32.xlu0 %v5841
        %v5895 = vpop.xlane.xlu0 %5894
        %5896 = vadd.xlane.f32.xlu0 %v5842
        %v5897 = vpop.xlane.xlu0 %5896
        %5898 = vadd.xlane.f32.xlu0 %v5843
        %v5899 = vpop.xlane.xlu0 %5898
        %5900 = vadd.xlane.f32.xlu0 %v5844
        %v5901 = vpop.xlane.xlu0 %5900
        %5902 = vadd.xlane.f32.xlu0 %v5845
        %v5903 = vpop.xlane.xlu0 %5902
        %5904 = vadd.xlane.f32.xlu0 %v5846
        %v5905 = vpop.xlane.xlu0 %5904
        %5906 = vadd.xlane.f32.xlu0 %v5847
        %v5907 = vpop.xlane.xlu0 %5906
        %5908 = vadd.xlane.f32.xlu0 %v5848
        %v5909 = vpop.xlane.xlu0 %5908
        %5910 = vadd.xlane.f32.xlu0 %v5849
        %v5911 = vpop.xlane.xlu0 %5910
        %5912 = vadd.xlane.f32.xlu0 %v5850
        %v5913 = vpop.xlane.xlu0 %5912
        %5914 = vadd.xlane.f32.xlu0 %v5851
        %v5915 = vpop.xlane.xlu0 %5914
        %v5916 = vadd.f32 %v5853, %v5855
        %v5917 = vadd.f32 %v5916, %v5857
        %v5918 = vadd.f32 %v5917, %v5859
        %v5919 = vadd.f32 %v5918, %v5861
        %v5920 = vadd.f32 %v5919, %v5863
        %v5921 = vadd.f32 %v5920, %v5865
        %v5922 = vadd.f32 %v5921, %v5867
        %v5923 = vrot.slane %v5922, 4
        %v5924 = vadd.f32 %v5922, %v5923
        %v5925 = vrot.slane %v5924, 2
        %v5926 = vadd.f32 %v5924, %v5925
        %v5927 = vrot.slane %v5926, 1
        %v5928 = vadd.f32 %v5926, %v5927
        %v5929 = vadd.f32 %v5869, %v5871
        %v5930 = vadd.f32 %v5929, %v5873
        %v5931 = vadd.f32 %v5930, %v5875
        %v5932 = vadd.f32 %v5931, %v5877
        %v5933 = vadd.f32 %v5932, %v5879
        %v5934 = vadd.f32 %v5933, %v5881
        %v5935 = vadd.f32 %v5934, %v5883
        %v5936 = vrot.slane %v5935, 4
        %v5937 = vadd.f32 %v5935, %v5936
        %v5938 = vrot.slane %v5937, 2
        %v5939 = vadd.f32 %v5937, %v5938
        %v5940 = vrot.slane %v5939, 1
        %v5941 = vadd.f32 %v5939, %v5940
        %v5942 = vadd.f32 %v5885, %v5887
        %v5943 = vadd.f32 %v5942, %v5889
        %v5944 = vadd.f32 %v5943, %v5891
        %v5945 = vadd.f32 %v5944, %v5893
        %v5946 = vadd.f32 %v5945, %v5895
        %v5947 = vadd.f32 %v5946, %v5897
        %v5948 = vadd.f32 %v5947, %v5899
        %v5949 = vrot.slane %v5948, 4
        %v5950 = vadd.f32 %v5948, %v5949
        %v5951 = vrot.slane %v5950, 2
        %v5952 = vadd.f32 %v5950, %v5951
        %v5953 = vrot.slane %v5952, 1
        %v5954 = vadd.f32 %v5952, %v5953
        %v5955 = vadd.f32 %v5901, %v5903
        %v5956 = vadd.f32 %v5955, %v5905
        %v5957 = vadd.f32 %v5956, %v5907
        %v5958 = vadd.f32 %v5957, %v5909
        %v5959 = vadd.f32 %v5958, %v5911
        %v5960 = vadd.f32 %v5959, %v5913
        %v5961 = vadd.f32 %v5960, %v5915
        %v5962 = vrot.slane %v5961, 4
        %v5963 = vadd.f32 %v5961, %v5962
        %v5964 = vrot.slane %v5963, 2
        %v5965 = vadd.f32 %v5963, %v5964
        %v5966 = vrot.slane %v5965, 1
        %v5967 = vadd.f32 %v5965, %v5966
        %v5968 = vmul.f32 %v5780, 0.00012207031
        %v5969 = vmul.f32 %v5793, 0.00012207031
        %v5970 = vmul.f32 %v5806, 0.00012207031
        %v5971 = vmul.f32 %v5819, 0.00012207031
        %v5972 = vmul.f32 %v5928, 0.00012207031
        %v5973 = vmul.f32 %v5941, 0.00012207031
        %v5974 = vmul.f32 %v5954, 0.00012207031
        %v5975 = vmul.f32 %v5967, 0.00012207031
        %v5976 = vmul.f32 %v5968, %v5968
        %v5977 = vmul.f32 %v5969, %v5969
        %v5978 = vmul.f32 %v5970, %v5970
        %v5979 = vmul.f32 %v5971, %v5971
        %v5980 = vsub.f32 %v5972, %v5976
        %v5981 = vsub.f32 %v5973, %v5977
        %v5982 = vsub.f32 %v5974, %v5978
        %v5983 = vsub.f32 %v5975, %v5979
        %v5984 = vadd.f32 %v5980, 1e-05
        %v5985 = vadd.f32 %v5981, 1e-05
        %v5986 = vadd.f32 %v5982, 1e-05
        %v5987 = vadd.f32 %v5983, 1e-05
        %v5988 = vrsqrt.pop %v5984
        %v5989 = vmul.f32 %v5988, %v5984
        %v5990 = vmul.f32 %v5989, %v5988
        %v5991 = vmul.f32 0.5, %v5990
        %v5992 = vsub.f32 1.5, %v5991
        %v5993 = vmul.f32 %v5988, %v5992
        %vm5994 = vweird.f32 %v5984
        %vm5995 = vweird.f32 %v5988
        %vm5996 = vmor %vm5994, %vm5995
        %v5997 = vsel %vm5996, %v5988, %v5993
        %v5998 = vrsqrt.pop %v5985
        %v5999 = vmul.f32 %v5998, %v5985
        %v6000 = vmul.f32 %v5999, %v5998
        %v6001 = vmul.f32 0.5, %v6000
        %v6002 = vsub.f32 1.5, %v6001
        %v6003 = vmul.f32 %v5998, %v6002
        %vm6004 = vweird.f32 %v5985
        %vm6005 = vweird.f32 %v5998
        %vm6006 = vmor %vm6004, %vm6005
        %v6007 = vsel %vm6006, %v5998, %v6003
        %v6008 = vrsqrt.pop %v5986
        %v6009 = vmul.f32 %v6008, %v5986
        %v6010 = vmul.f32 %v6009, %v6008
        %v6011 = vmul.f32 0.5, %v6010
        %v6012 = vsub.f32 1.5, %v6011
        %v6013 = vmul.f32 %v6008, %v6012
        %vm6014 = vweird.f32 %v5986
        %vm6015 = vweird.f32 %v6008
        %vm6016 = vmor %vm6014, %vm6015
        %v6017 = vsel %vm6016, %v6008, %v6013
        %v6018 = vrsqrt.pop %v5987
        %v6019 = vmul.f32 %v6018, %v5987
        %v6020 = vmul.f32 %v6019, %v6018
        %v6021 = vmul.f32 0.5, %v6020
        %v6022 = vsub.f32 1.5, %v6021
        %v6023 = vmul.f32 %v6018, %v6022
        %vm6024 = vweird.f32 %v5987
        %vm6025 = vweird.f32 %v6018
        %vm6026 = vmor %vm6024, %vm6025
        %v6027 = vsel %vm6026, %v6018, %v6023
        %v6028 = vmul.f32 %v5997, %v5671
        %v6029 = vmul.f32 %v5997, %v5672
        %v6030 = vmul.f32 %v5997, %v5673
        %v6031 = vmul.f32 %v5997, %v5674
        %v6032 = vmul.f32 %v5997, %v5675
        %v6033 = vmul.f32 %v5997, %v5676
        %v6034 = vmul.f32 %v5997, %v5677
        %v6035 = vmul.f32 %v5997, %v5678
        %v6036 = vmul.f32 %v6007, %v5679
        %v6037 = vmul.f32 %v6007, %v5680
        %v6038 = vmul.f32 %v6007, %v5681
        %v6039 = vmul.f32 %v6007, %v5682
        %v6040 = vmul.f32 %v6007, %v5683
        %v6041 = vmul.f32 %v6007, %v5684
        %v6042 = vmul.f32 %v6007, %v5685
        %v6043 = vmul.f32 %v6007, %v5686
        %v6044 = vmul.f32 %v6017, %v5671
        %v6045 = vmul.f32 %v6017, %v5672
        %v6046 = vmul.f32 %v6017, %v5673
        %v6047 = vmul.f32 %v6017, %v5674
        %v6048 = vmul.f32 %v6017, %v5675
        %v6049 = vmul.f32 %v6017, %v5676
        %v6050 = vmul.f32 %v6017, %v5677
        %v6051 = vmul.f32 %v6017, %v5678
        %v6052 = vmul.f32 %v6027, %v5679
        %v6053 = vmul.f32 %v6027, %v5680
        %v6054 = vmul.f32 %v6027, %v5681
        %v6055 = vmul.f32 %v6027, %v5682
        %v6056 = vmul.f32 %v6027, %v5683
        %v6057 = vmul.f32 %v6027, %v5684
        %v6058 = vmul.f32 %v6027, %v5685
        %v6059 = vmul.f32 %v6027, %v5686
        %v6060 = vmul.f32 %v5968, %v6028
        %v6061 = vmul.f32 %v5968, %v6029
        %v6062 = vmul.f32 %v5968, %v6030
        %v6063 = vmul.f32 %v5968, %v6031
        %v6064 = vmul.f32 %v5968, %v6032
        %v6065 = vmul.f32 %v5968, %v6033
        %v6066 = vmul.f32 %v5968, %v6034
        %v6067 = vmul.f32 %v5968, %v6035
        %v6068 = vmul.f32 %v5969, %v6036
        %v6069 = vmul.f32 %v5969, %v6037
        %v6070 = vmul.f32 %v5969, %v6038
        %v6071 = vmul.f32 %v5969, %v6039
        %v6072 = vmul.f32 %v5969, %v6040
        %v6073 = vmul.f32 %v5969, %v6041
        %v6074 = vmul.f32 %v5969, %v6042
        %v6075 = vmul.f32 %v5969, %v6043
        %v6076 = vmul.f32 %v5970, %v6044
        %v6077 = vmul.f32 %v5970, %v6045
        %v6078 = vmul.f32 %v5970, %v6046
        %v6079 = vmul.f32 %v5970, %v6047
        %v6080 = vmul.f32 %v5970, %v6048
        %v6081 = vmul.f32 %v5970, %v6049
        %v6082 = vmul.f32 %v5970, %v6050
        %v6083 = vmul.f32 %v5970, %v6051
        %v6084 = vmul.f32 %v5971, %v6052
        %v6085 = vmul.f32 %v5971, %v6053
        %v6086 = vmul.f32 %v5971, %v6054
        %v6087 = vmul.f32 %v5971, %v6055
        %v6088 = vmul.f32 %v5971, %v6056
        %v6089 = vmul.f32 %v5971, %v6057
        %v6090 = vmul.f32 %v5971, %v6058
        %v6091 = vmul.f32 %v5971, %v6059
        %v6092 = vsub.f32 %v5688, %v6060
        %v6093 = vsub.f32 %v5689, %v6061
        %v6094 = vsub.f32 %v5690, %v6062
        %v6095 = vsub.f32 %v5691, %v6063
        %v6096 = vsub.f32 %v5692, %v6064
        %v6097 = vsub.f32 %v5693, %v6065
        %v6098 = vsub.f32 %v5694, %v6066
        %v6099 = vsub.f32 %v5695, %v6067
        %v6100 = vsub.f32 %v5696, %v6068
        %v6101 = vsub.f32 %v5697, %v6069
        %v6102 = vsub.f32 %v5698, %v6070
        %v6103 = vsub.f32 %v5699, %v6071
        %v6104 = vsub.f32 %v5700, %v6072
        %v6105 = vsub.f32 %v5701, %v6073
        %v6106 = vsub.f32 %v5702, %v6074
        %v6107 = vsub.f32 %v5703, %v6075
        %v6108 = vsub.f32 %v5688, %v6076
        %v6109 = vsub.f32 %v5689, %v6077
        %v6110 = vsub.f32 %v5690, %v6078
        %v6111 = vsub.f32 %v5691, %v6079
        %v6112 = vsub.f32 %v5692, %v6080
        %v6113 = vsub.f32 %v5693, %v6081
        %v6114 = vsub.f32 %v5694, %v6082
        %v6115 = vsub.f32 %v5695, %v6083
        %v6116 = vsub.f32 %v5696, %v6084
        %v6117 = vsub.f32 %v5697, %v6085
        %v6118 = vsub.f32 %v5698, %v6086
        %v6119 = vsub.f32 %v5699, %v6087
        %v6120 = vsub.f32 %v5700, %v6088
        %v6121 = vsub.f32 %v5701, %v6089
        %v6122 = vsub.f32 %v5702, %v6090
        %v6123 = vsub.f32 %v5703, %v6091
        %6125 = vset.pattern.permute.xlu0 0
        %6126 = vperm.xlu0 %6125, %v6028
        %v6127 = vpop.permute.xlu0 %6126
        %6130 = vset.pattern.permute.xlu0 0
        %6131 = vperm.xlu0 %6130, %v6029
        %v6132 = vpop.permute.xlu0 %6131
        %6135 = vset.pattern.permute.xlu0 0
        %6136 = vperm.xlu0 %6135, %v6030
        %v6137 = vpop.permute.xlu0 %6136
        %6140 = vset.pattern.permute.xlu0 0
        %6141 = vperm.xlu0 %6140, %v6031
        %v6142 = vpop.permute.xlu0 %6141
        %6145 = vset.pattern.permute.xlu0 0
        %6146 = vperm.xlu0 %6145, %v6032
        %v6147 = vpop.permute.xlu0 %6146
        %6150 = vset.pattern.permute.xlu0 0
        %6151 = vperm.xlu0 %6150, %v6033
        %v6152 = vpop.permute.xlu0 %6151
        %6155 = vset.pattern.permute.xlu0 0
        %6156 = vperm.xlu0 %6155, %v6034
        %v6157 = vpop.permute.xlu0 %6156
        %6160 = vset.pattern.permute.xlu0 0
        %6161 = vperm.xlu0 %6160, %v6035
        %v6162 = vpop.permute.xlu0 %6161
        %6165 = vset.pattern.permute.xlu0 0
        %6166 = vperm.xlu0 %6165, %v6036
        %v6167 = vpop.permute.xlu0 %6166
        %6170 = vset.pattern.permute.xlu0 0
        %6171 = vperm.xlu0 %6170, %v6037
        %v6172 = vpop.permute.xlu0 %6171
        %6175 = vset.pattern.permute.xlu0 0
        %6176 = vperm.xlu0 %6175, %v6038
        %v6177 = vpop.permute.xlu0 %6176
        %6180 = vset.pattern.permute.xlu0 0
        %6181 = vperm.xlu0 %6180, %v6039
        %v6182 = vpop.permute.xlu0 %6181
        %6185 = vset.pattern.permute.xlu0 0
        %6186 = vperm.xlu0 %6185, %v6040
        %v6187 = vpop.permute.xlu0 %6186
        %6190 = vset.pattern.permute.xlu0 0
        %6191 = vperm.xlu0 %6190, %v6041
        %v6192 = vpop.permute.xlu0 %6191
        %6195 = vset.pattern.permute.xlu0 0
        %6196 = vperm.xlu0 %6195, %v6042
        %v6197 = vpop.permute.xlu0 %6196
        %6200 = vset.pattern.permute.xlu0 0
        %6201 = vperm.xlu0 %6200, %v6043
        %v6202 = vpop.permute.xlu0 %6201
        %6205 = vset.pattern.permute.xlu0 0
        %6206 = vperm.xlu0 %6205, %v6044
        %v6207 = vpop.permute.xlu0 %6206
        %6210 = vset.pattern.permute.xlu0 0
        %6211 = vperm.xlu0 %6210, %v6045
        %v6212 = vpop.permute.xlu0 %6211
        %6215 = vset.pattern.permute.xlu0 0
        %6216 = vperm.xlu0 %6215, %v6046
        %v6217 = vpop.permute.xlu0 %6216
        %6220 = vset.pattern.permute.xlu0 0
        %6221 = vperm.xlu0 %6220, %v6047
        %v6222 = vpop.permute.xlu0 %6221
        %6225 = vset.pattern.permute.xlu0 0
        %6226 = vperm.xlu0 %6225, %v6048
        %v6227 = vpop.permute.xlu0 %6226
        %6230 = vset.pattern.permute.xlu0 0
        %6231 = vperm.xlu0 %6230, %v6049
        %v6232 = vpop.permute.xlu0 %6231
        %6235 = vset.pattern.permute.xlu0 0
        %6236 = vperm.xlu0 %6235, %v6050
        %v6237 = vpop.permute.xlu0 %6236
        %6240 = vset.pattern.permute.xlu0 0
        %6241 = vperm.xlu0 %6240, %v6051
        %v6242 = vpop.permute.xlu0 %6241
        %6245 = vset.pattern.permute.xlu0 0
        %6246 = vperm.xlu0 %6245, %v6052
        %v6247 = vpop.permute.xlu0 %6246
        %6250 = vset.pattern.permute.xlu0 0
        %6251 = vperm.xlu0 %6250, %v6053
        %v6252 = vpop.permute.xlu0 %6251
        %6255 = vset.pattern.permute.xlu0 0
        %6256 = vperm.xlu0 %6255, %v6054
        %v6257 = vpop.permute.xlu0 %6256
        %6260 = vset.pattern.permute.xlu0 0
        %6261 = vperm.xlu0 %6260, %v6055
        %v6262 = vpop.permute.xlu0 %6261
        %6265 = vset.pattern.permute.xlu0 0
        %6266 = vperm.xlu0 %6265, %v6056
        %v6267 = vpop.permute.xlu0 %6266
        %6270 = vset.pattern.permute.xlu0 0
        %6271 = vperm.xlu0 %6270, %v6057
        %v6272 = vpop.permute.xlu0 %6271
        %6275 = vset.pattern.permute.xlu0 0
        %6276 = vperm.xlu0 %6275, %v6058
        %v6277 = vpop.permute.xlu0 %6276
        %6280 = vset.pattern.permute.xlu0 0
        %6281 = vperm.xlu0 %6280, %v6059
        %v6282 = vpop.permute.xlu0 %6281
        %v6284 = vmul.f32 %v5535, %v6127
        %v6285 = vmul.f32 %v5537, %v6132
        %v6286 = vmul.f32 %v5540, %v6137
        %v6287 = vmul.f32 %v5542, %v6142
        %v6288 = vmul.f32 %v5545, %v6147
        %v6289 = vmul.f32 %v5547, %v6152
        %v6290 = vmul.f32 %v5550, %v6157
        %v6291 = vmul.f32 %v5552, %v6162
        %v6292 = vmul.f32 %v5555, %v6167
        %v6293 = vmul.f32 %v5557, %v6172
        %v6294 = vmul.f32 %v5560, %v6177
        %v6295 = vmul.f32 %v5562, %v6182
        %v6296 = vmul.f32 %v5565, %v6187
        %v6297 = vmul.f32 %v5567, %v6192
        %v6298 = vmul.f32 %v5570, %v6197
        %v6299 = vmul.f32 %v5572, %v6202
        %v6300 = vmul.f32 %v5632, %v6207
        %v6301 = vmul.f32 %v5634, %v6212
        %v6302 = vmul.f32 %v5637, %v6217
        %v6303 = vmul.f32 %v5639, %v6222
        %v6304 = vmul.f32 %v5642, %v6227
        %v6305 = vmul.f32 %v5644, %v6232
        %v6306 = vmul.f32 %v5647, %v6237
        %v6307 = vmul.f32 %v5649, %v6242
        %v6308 = vmul.f32 %v5652, %v6247
        %v6309 = vmul.f32 %v5654, %v6252
        %v6310 = vmul.f32 %v5657, %v6257
        %v6311 = vmul.f32 %v5659, %v6262
        %v6312 = vmul.f32 %v5662, %v6267
        %v6313 = vmul.f32 %v5664, %v6272
        %v6314 = vmul.f32 %v5667, %v6277
        %v6315 = vmul.f32 %v5669, %v6282
        %6317 = vset.pattern.permute.xlu0 0
        %6318 = vperm.xlu0 %6317, %v6092
        %v6319 = vpop.permute.xlu0 %6318
        %6322 = vset.pattern.permute.xlu0 0
        %6323 = vperm.xlu0 %6322, %v6093
        %v6324 = vpop.permute.xlu0 %6323
        %6327 = vset.pattern.permute.xlu0 0
        %6328 = vperm.xlu0 %6327, %v6094
        %v6329 = vpop.permute.xlu0 %6328
        %6332 = vset.pattern.permute.xlu0 0
        %6333 = vperm.xlu0 %6332, %v6095
        %v6334 = vpop.permute.xlu0 %6333
        %6337 = vset.pattern.permute.xlu0 0
        %6338 = vperm.xlu0 %6337, %v6096
        %v6339 = vpop.permute.xlu0 %6338
        %6342 = vset.pattern.permute.xlu0 0
        %6343 = vperm.xlu0 %6342, %v6097
        %v6344 = vpop.permute.xlu0 %6343
        %6347 = vset.pattern.permute.xlu0 0
        %6348 = vperm.xlu0 %6347, %v6098
        %v6349 = vpop.permute.xlu0 %6348
        %6352 = vset.pattern.permute.xlu0 0
        %6353 = vperm.xlu0 %6352, %v6099
        %v6354 = vpop.permute.xlu0 %6353
        %6357 = vset.pattern.permute.xlu0 0
        %6358 = vperm.xlu0 %6357, %v6100
        %v6359 = vpop.permute.xlu0 %6358
        %6362 = vset.pattern.permute.xlu0 0
        %6363 = vperm.xlu0 %6362, %v6101
        %v6364 = vpop.permute.xlu0 %6363
        %6367 = vset.pattern.permute.xlu0 0
        %6368 = vperm.xlu0 %6367, %v6102
        %v6369 = vpop.permute.xlu0 %6368
        %6372 = vset.pattern.permute.xlu0 0
        %6373 = vperm.xlu0 %6372, %v6103
        %v6374 = vpop.permute.xlu0 %6373
        %6377 = vset.pattern.permute.xlu0 0
        %6378 = vperm.xlu0 %6377, %v6104
        %v6379 = vpop.permute.xlu0 %6378
        %6382 = vset.pattern.permute.xlu0 0
        %6383 = vperm.xlu0 %6382, %v6105
        %v6384 = vpop.permute.xlu0 %6383
        %6387 = vset.pattern.permute.xlu0 0
        %6388 = vperm.xlu0 %6387, %v6106
        %v6389 = vpop.permute.xlu0 %6388
        %6392 = vset.pattern.permute.xlu0 0
        %6393 = vperm.xlu0 %6392, %v6107
        %v6394 = vpop.permute.xlu0 %6393
        %6397 = vset.pattern.permute.xlu0 0
        %6398 = vperm.xlu0 %6397, %v6108
        %v6399 = vpop.permute.xlu0 %6398
        %6402 = vset.pattern.permute.xlu0 0
        %6403 = vperm.xlu0 %6402, %v6109
        %v6404 = vpop.permute.xlu0 %6403
        %6407 = vset.pattern.permute.xlu0 0
        %6408 = vperm.xlu0 %6407, %v6110
        %v6409 = vpop.permute.xlu0 %6408
        %6412 = vset.pattern.permute.xlu0 0
        %6413 = vperm.xlu0 %6412, %v6111
        %v6414 = vpop.permute.xlu0 %6413
        %6417 = vset.pattern.permute.xlu0 0
        %6418 = vperm.xlu0 %6417, %v6112
        %v6419 = vpop.permute.xlu0 %6418
        %6422 = vset.pattern.permute.xlu0 0
        %6423 = vperm.xlu0 %6422, %v6113
        %v6424 = vpop.permute.xlu0 %6423
        %6427 = vset.pattern.permute.xlu0 0
        %6428 = vperm.xlu0 %6427, %v6114
        %v6429 = vpop.permute.xlu0 %6428
        %6432 = vset.pattern.permute.xlu0 0
        %6433 = vperm.xlu0 %6432, %v6115
        %v6434 = vpop.permute.xlu0 %6433
        %6437 = vset.pattern.permute.xlu0 0
        %6438 = vperm.xlu0 %6437, %v6116
        %v6439 = vpop.permute.xlu0 %6438
        %6442 = vset.pattern.permute.xlu0 0
        %6443 = vperm.xlu0 %6442, %v6117
        %v6444 = vpop.permute.xlu0 %6443
        %6447 = vset.pattern.permute.xlu0 0
        %6448 = vperm.xlu0 %6447, %v6118
        %v6449 = vpop.permute.xlu0 %6448
        %6452 = vset.pattern.permute.xlu0 0
        %6453 = vperm.xlu0 %6452, %v6119
        %v6454 = vpop.permute.xlu0 %6453
        %6457 = vset.pattern.permute.xlu0 0
        %6458 = vperm.xlu0 %6457, %v6120
        %v6459 = vpop.permute.xlu0 %6458
        %6462 = vset.pattern.permute.xlu0 0
        %6463 = vperm.xlu0 %6462, %v6121
        %v6464 = vpop.permute.xlu0 %6463
        %6467 = vset.pattern.permute.xlu0 0
        %6468 = vperm.xlu0 %6467, %v6122
        %v6469 = vpop.permute.xlu0 %6468
        %6472 = vset.pattern.permute.xlu0 0
        %6473 = vperm.xlu0 %6472, %v6123
        %v6474 = vpop.permute.xlu0 %6473
        %v6476 = vadd.f32 %v6284, %v6319
        %v6477 = vadd.f32 %v6285, %v6324
        %v6478 = vadd.f32 %v6286, %v6329
        %v6479 = vadd.f32 %v6287, %v6334
        %v6480 = vadd.f32 %v6288, %v6339
        %v6481 = vadd.f32 %v6289, %v6344
        %v6482 = vadd.f32 %v6290, %v6349
        %v6483 = vadd.f32 %v6291, %v6354
        %v6484 = vadd.f32 %v6292, %v6359
        %v6485 = vadd.f32 %v6293, %v6364
        %v6486 = vadd.f32 %v6294, %v6369
        %v6487 = vadd.f32 %v6295, %v6374
        %v6488 = vadd.f32 %v6296, %v6379
        %v6489 = vadd.f32 %v6297, %v6384
        %v6490 = vadd.f32 %v6298, %v6389
        %v6491 = vadd.f32 %v6299, %v6394
        %v6492 = vadd.f32 %v6300, %v6399
        %v6493 = vadd.f32 %v6301, %v6404
        %v6494 = vadd.f32 %v6302, %v6409
        %v6495 = vadd.f32 %v6303, %v6414
        %v6496 = vadd.f32 %v6304, %v6419
        %v6497 = vadd.f32 %v6305, %v6424
        %v6498 = vadd.f32 %v6306, %v6429
        %v6499 = vadd.f32 %v6307, %v6434
        %v6500 = vadd.f32 %v6308, %v6439
        %v6501 = vadd.f32 %v6309, %v6444
        %v6502 = vadd.f32 %v6310, %v6449
        %v6503 = vadd.f32 %v6311, %v6454
        %v6504 = vadd.f32 %v6312, %v6459
        %v6505 = vadd.f32 %v6313, %v6464
        %v6506 = vadd.f32 %v6314, %v6469
        %v6507 = vadd.f32 %v6315, %v6474
        %v6508 = vadd.f32 %v6476, %v455
        %v6509 = vadd.f32 %v6477, %v456
        %v6510 = vadd.f32 %v6478, %v457
        %v6511 = vadd.f32 %v6479, %v458
        %v6512 = vadd.f32 %v6480, %v459
        %v6513 = vadd.f32 %v6481, %v460
        %v6514 = vadd.f32 %v6482, %v461
        %v6515 = vadd.f32 %v6483, %v462
        %v6516 = vadd.f32 %v6484, %v463
        %v6517 = vadd.f32 %v6485, %v464
        %v6518 = vadd.f32 %v6486, %v465
        %v6519 = vadd.f32 %v6487, %v466
        %v6520 = vadd.f32 %v6488, %v467
        %v6521 = vadd.f32 %v6489, %v468
        %v6522 = vadd.f32 %v6490, %v469
        %v6523 = vadd.f32 %v6491, %v470
        %v6524 = vadd.f32 %v6492, %v471
        %v6525 = vadd.f32 %v6493, %v472
        %v6526 = vadd.f32 %v6494, %v473
        %v6527 = vadd.f32 %v6495, %v474
        %v6528 = vadd.f32 %v6496, %v475
        %v6529 = vadd.f32 %v6497, %v476
        %v6530 = vadd.f32 %v6498, %v477
        %v6531 = vadd.f32 %v6499, %v478
        %v6532 = vadd.f32 %v6500, %v479
        %v6533 = vadd.f32 %v6501, %v480
        %v6534 = vadd.f32 %v6502, %v481
        %v6535 = vadd.f32 %v6503, %v482
        %v6536 = vadd.f32 %v6504, %v483
        %v6537 = vadd.f32 %v6505, %v484
        %v6538 = vadd.f32 %v6506, %v485
        %v6539 = vadd.f32 %v6507, %v486
        %6540 = vst [vmem:[%s450] sm:$0xff] %v6508
        %6541 = vst [vmem:[%s450 + $0x8] sm:$0xff] %v6509
        %6542 = vst [vmem:[%s450 + $0x10] sm:$0xff] %v6510
        %6543 = vst [vmem:[%s450 + $0x18] sm:$0xff] %v6511
        %6544 = vst [vmem:[%s450 + $0x20] sm:$0xff] %v6512
        %6545 = vst [vmem:[%s450 + $0x28] sm:$0xff] %v6513
        %6546 = vst [vmem:[%s450 + $0x30] sm:$0xff] %v6514
        %6547 = vst [vmem:[%s450 + $0x38] sm:$0xff] %v6515
        %6548 = vst [vmem:[%s450 + $0x40] sm:$0xff] %v6516
        %6549 = vst [vmem:[%s450 + $0x48] sm:$0xff] %v6517
        %6550 = vst [vmem:[%s450 + $0x50] sm:$0xff] %v6518
        %6551 = vst [vmem:[%s450 + $0x58] sm:$0xff] %v6519
        %6552 = vst [vmem:[%s450 + $0x60] sm:$0xff] %v6520
        %6553 = vst [vmem:[%s450 + $0x68] sm:$0xff] %v6521
        %6554 = vst [vmem:[%s450 + $0x70] sm:$0xff] %v6522
        %6555 = vst [vmem:[%s450 + $0x78] sm:$0xff] %v6523
        %6556 = vst [vmem:[%s450 + $0x80] sm:$0xff] %v6524
        %6557 = vst [vmem:[%s450 + $0x88] sm:$0xff] %v6525
        %6558 = vst [vmem:[%s450 + $0x90] sm:$0xff] %v6526
        %6559 = vst [vmem:[%s450 + $0x98] sm:$0xff] %v6527
        %6560 = vst [vmem:[%s450 + $0xa0] sm:$0xff] %v6528
        %6561 = vst [vmem:[%s450 + $0xa8] sm:$0xff] %v6529
        %6562 = vst [vmem:[%s450 + $0xb0] sm:$0xff] %v6530
        %6563 = vst [vmem:[%s450 + $0xb8] sm:$0xff] %v6531
        %6564 = vst [vmem:[%s450 + $0xc0] sm:$0xff] %v6532
        %6565 = vst [vmem:[%s450 + $0xc8] sm:$0xff] %v6533
        %6566 = vst [vmem:[%s450 + $0xd0] sm:$0xff] %v6534
        %6567 = vst [vmem:[%s450 + $0xd8] sm:$0xff] %v6535
        %6568 = vst [vmem:[%s450 + $0xe0] sm:$0xff] %v6536
        %6569 = vst [vmem:[%s450 + $0xe8] sm:$0xff] %v6537
        %6570 = vst [vmem:[%s450 + $0xf0] sm:$0xff] %v6538
        %6571 = vst [vmem:[%s450 + $0xf8] sm:$0xff] %v6539
        %s6572 = sand.u32 %s280, 1
        %s6573 = scalar_lea.sflag [#allocation4], %s6572
        %s6574 = sand.u32 %s280, 1
        %s6575 = smul.addr %s6574, 256
        %s6576 = scalar_lea.vmem [#allocation7], %s6575
        // Predicated region
        $region73: #{tpu_custom_call.1} parent=63 // pred_check
          %p6577 = pneg %p290
        $region74: #{tpu_custom_call.1} parent=63 // pred_check_branch
          %6579 = sbr.rel (%p6577) target = $region76
        $region75: #{tpu_custom_call.1} parent=63 // pred_region
          %s6580 = smul.u32 2, %s31
          %6582 = vsyncadd %s6573, 0
          %s6583 = smul.addr %s6580, 16
          %s6584 = smul.addr %s6583, 8
          %s6585 = scalar_lea.hbm %s11, %s6584
          %s6586 = sshll.u32 %s6576, 4
          %s6587 = int_to_ptr.vmem [resolvable:$true] %s6586
          %s6588 = sshll.u32 %s6585, 4
          %s6589 = int_to_ptr.hbm [resolvable:$true] %s6588
          %6594 = dma.vmem_to_hbm [thread:$0]  %s6587, 4096, %s6589, %s6573, 128, 128, 8
        $region76: #{tpu_custom_call.1} parent=63 // pred_fallthru
          _
      $region64: #{tpu_custom_call.1} parent=5 // pred_fallthru
        _
      %p6595 = scmp.le.s32.totalorder 2, %s26
      // Predicated region
      $region77: #{tpu_custom_call.1} parent=5 // pred_check
        %p6596 = pneg %p6595
      $region78: #{tpu_custom_call.1} parent=5 // pred_check_branch
        %6598 = sbr.rel (%p6596) target = $region80
      $region79: #{tpu_custom_call.1} parent=5 // pred_region
        %s6599 = ssub.s32 %s26, 2
        // Predicated region
        $region81: #{tpu_custom_call.1} parent=79 // pred_check
          %p6600 = pneg %p296
        $region82: #{tpu_custom_call.1} parent=79 // pred_check_branch
          %6602 = sbr.rel (%p6600) target = $region84
        $region83: #{tpu_custom_call.1} parent=79 // pred_region
          %s6603 = sand.u32 %s281, 1
          %s6604 = scalar_lea.sflag [#allocation4], %s6603
          %s6605 = sand.u32 %s281, 1
          %s6606 = smul.addr %s6605, 256
          %s6607 = scalar_lea.vmem [#allocation7], %s6606
          %6609 = dma.done %s6604, 4096
        $region84: #{tpu_custom_call.1} parent=79 // pred_fallthru
          _
      $region80: #{tpu_custom_call.1} parent=5 // pred_fallthru
        _
    $region6: #{tpu_custom_call.1} parent=1 // loop_footer
      %s30 = sadd.s32 1, %s26
    $region7: #{tpu_custom_call.1} parent=1 // loop_footer_branch
      %25 = sbr.rel target = $region3
    $region8: #{tpu_custom_call.1} parent=1 // loop_exit
      _
    %6610 = vsyncpa [#allocation3], 1
    %s6611 = scalar_lea.sflag [#allocation3], 1
    %6612 = vsyncpa %s6611, 1
    %6613 = vsyncpa [#allocation6], 1
    %s6614 = scalar_lea.sflag [#allocation6], 1
    %6615 = vsyncpa %s6614, 1
    %6616 = vsyncpa [#allocation4], 1
    %s6617 = scalar_lea.sflag [#allocation4], 1
    %6618 = vsyncpa %s6617, 1

</llo_original>
